<compile_context>
chip_gen: v5e
topology: v5e:2x2
jax: 0.10.0
libtpu: 0.0.40
codegen_flags: <defaults>
</compile_context>

<pallas_src>
import functools

import jax
import jax.numpy as jnp
from jax.experimental import pallas as pl
from jax.experimental.pallas import tpu as pltpu

IN_FEATURES = 10 ** 5    # fixed by the module definition
OUT_FEATURES = 3
K_TILE = 32768           # lane-dense reduction tile (multiple of 128)
NUM_SPLITS = 2           # split-K over a "parallel" grid axis (2 TCs on v7x)


def _linear_kernel(x_ref, w_ref, o_ref, acc_ref, *, k_features):
    """Accumulates one K-tile of x @ W.T into acc_ref (per split-K shard)."""
    c = pl.program_id(0)              # split-K shard ("parallel" axis)
    k = pl.program_id(1)              # K-tile within the shard ("arbitrary")
    nk = pl.num_programs(1)

    @pl.when(k == 0)
    def _():
        acc_ref[...] = jnp.zeros_like(acc_ref)

    k_tile = x_ref.shape[-1]
    n_out = w_ref.shape[0]

    # Lanes beyond the true feature count (last, partial tile) contain
    # unspecified buffer contents. Zero them on BOTH operands so garbage
    # (including NaN/Inf bit patterns) can never reach the reduction.
    kb = c * nk + k                               # global K-block index
    valid = k_features - kb * k_tile              # valid lanes in this tile
    lane = jax.lax.broadcasted_iota(jnp.int32, (1, k_tile), 1)
    lane_ok = lane < valid                        # (1, k_tile)

    x = jnp.where(lane_ok, x_ref[...], 0.0)       # (B, k_tile)
    w = jnp.where(lane_ok, w_ref[...], 0.0)       # (N, k_tile)

    # VPU multiply + lane reduction per output feature (N == 3): keeps the
    # weight tile in its lane-dense layout, no MXU/XLU relayout.
    parts = [
        jnp.sum(x * w[n:n + 1, :], axis=-1, keepdims=True)    # (B, 1)
        for n in range(n_out)
    ]
    acc_ref[...] += jnp.concatenate(parts, axis=-1)           # (B, N)

    @pl.when(k == nk - 1)
    def _():
        o_ref[...] = acc_ref[...].astype(o_ref.dtype)


@functools.partial(jax.jit, static_argnames=("k_tile", "num_splits"))
def mlp_forward(x, w, b, *, k_tile=K_TILE, num_splits=NUM_SPLITS):
    """x: (B, K) f32, w: (N, K) f32 (native PyTorch layout), b: (N,) -> (B, N)."""
    B, K = x.shape
    N = w.shape[0]

    total_blocks = pl.cdiv(K, k_tile)
    per_split = pl.cdiv(total_blocks, num_splits)

    def k_index(c, k):
        # Clamp so a (possibly) fully out-of-range trailing block never issues
        # an out-of-bounds DMA; its contribution is masked to zero in-kernel.
        return jnp.minimum(c * per_split + k, total_blocks - 1)

    partials = pl.pallas_call(
        functools.partial(_linear_kernel, k_features=K),
        out_shape=jax.ShapeDtypeStruct((num_splits, B, N), jnp.float32),
        grid_spec=pltpu.PrefetchScalarGridSpec(
            num_scalar_prefetch=0,
            grid=(num_splits, per_split),
            in_specs=[
                pl.BlockSpec((B, k_tile), lambda c, k: (0, k_index(c, k))),
                pl.BlockSpec((N, k_tile), lambda c, k: (0, k_index(c, k))),
            ],
            out_specs=pl.BlockSpec((None, B, N), lambda c, k: (c, 0, 0)),
            scratch_shapes=[pltpu.VMEM((B, N), jnp.float32)],
        ),
        compiler_params=pltpu.CompilerParams(
            dimension_semantics=("parallel", "arbitrary"),
        ),
    )(x, w)

    # Combine split-K partials and add the bias exactly once (tiny XLA op).
    return jnp.sum(partials, axis=0) + b[None, :]


if __name__ == "__main__":
    key = jax.random.PRNGKey(0)
    kx, kw, kb = jax.random.split(key, 3)

    B = 2  # small batch; the feature dim is fixed at 10**5 by the module

    # Deterministic parameter init, mimicking PyTorch's U(-1/sqrt(in), 1/sqrt(in)).
    bound = 1.0 / (IN_FEATURES ** 0.5)
    x = jax.random.normal(kx, (B, IN_FEATURES), dtype=jnp.float32)
    w = jax.random.uniform(
        kw, (OUT_FEATURES, IN_FEATURES), minval=-bound, maxval=bound,
        dtype=jnp.float32)
    b = jax.random.uniform(
        kb, (OUT_FEATURES,), minval=-bound, maxval=bound, dtype=jnp.float32)

    out = mlp_forward(x, w, b)
    jax.block_until_ready(out)

    # Sanity check against plain-JAX reference (x @ W.T + b).
    ref = x @ w.T + b
    assert out.shape == (B, OUT_FEATURES)
    assert jnp.allclose(out, ref, atol=2e-3, rtol=2e-3)

    print("KERNEL_OK")
</pallas_src>

<mosaic_0001>
module attributes {stable_mosaic.version = 11 : i64} {
  func.func @_linear_kernel(%arg0: i32, %arg1: i32, %arg2: memref<2x32768xf32, #tpu.memory_space<vmem>>, %arg3: memref<3x32768xf32, #tpu.memory_space<vmem>>, %arg4: memref<1x2x3xf32, #tpu.memory_space<vmem>>, %arg5: memref<2x3xf32, #tpu.memory_space<vmem>>) attributes {dimension_semantics = [#tpu.dimension_semantics<parallel>, #tpu.dimension_semantics<arbitrary>], iteration_bounds = array<i64: 2, 2>, scalar_prefetch = 0 : i64, scratch_operands = 1 : i64, tpu.core_type = #tpu.core_type<tc>, window_params = [{transform_indices = @transform_0, window_bounds = array<i64: 2, 32768>}, {transform_indices = @transform_1, window_bounds = array<i64: 3, 32768>}, {transform_indices = @transform_2, window_bounds = array<i64: 1, 2, 3>}]} {
    %c0_i32 = arith.constant 0 : i32
    %0 = arith.cmpi eq, %arg1, %c0_i32 : i32
    %1 = arith.extui %0 : i1 to i32
    %c0_i32_0 = arith.constant 0 : i32
    %2 = arith.cmpi ne, %1, %c0_i32_0 : i32
    scf.if %2 {
      %cst_13 = arith.constant 0.000000e+00 : f32
      %42 = vector.broadcast %cst_13 : f32 to vector<2x3xf32>
      %c0_14 = arith.constant 0 : index
      %c0_15 = arith.constant 0 : index
      %43 = vector.load %arg5[%c0_14, %c0_15] : memref<2x3xf32, #tpu.memory_space<vmem>>, vector<2x3xf32>
      tpu.vector_store %arg5[%c0_14, %c0_15], %42 {strides = array<i32>} : memref<2x3xf32, #tpu.memory_space<vmem>>, vector<2x3xf32>,
    } else {
    }
    %c2_i32 = arith.constant 2 : i32
    %3 = arith.muli %arg0, %c2_i32 : i32
    %4 = arith.addi %3, %arg1 : i32
    %c32768_i32 = arith.constant 32768 : i32
    %5 = arith.muli %4, %c32768_i32 : i32
    %c100000_i32 = arith.constant 100000 : i32
    %6 = arith.subi %c100000_i32, %5 : i32
    %7 = tpu.iota {dimensions = array<i32: 1>} : vector<1x32768xi32>
    %8 = vector.broadcast %6 : i32 to vector<1x32768xi32>
    %9 = arith.cmpi slt, %7, %8 : vector<1x32768xi32>
    %c0 = arith.constant 0 : index
    %c0_1 = arith.constant 0 : index
    %10 = vector.load %arg2[%c0, %c0_1] : memref<2x32768xf32, #tpu.memory_space<vmem>>, vector<2x32768xf32>
    %cst = arith.constant 0.000000e+00 : f32
    %11 = vector.shape_cast %9 : vector<1x32768xi1> to vector<1x32768xi1>
    %12 = vector.broadcast %11 : vector<1x32768xi1> to vector<2x32768xi1>
    %13 = vector.broadcast %cst : f32 to vector<2x32768xf32>
    %14 = arith.select %12, %10, %13 : vector<2x32768xi1>, vector<2x32768xf32>
    %c0_2 = arith.constant 0 : index
    %c0_3 = arith.constant 0 : index
    %15 = vector.load %arg3[%c0_2, %c0_3] : memref<3x32768xf32, #tpu.memory_space<vmem>>, vector<3x32768xf32>
    %cst_4 = arith.constant 0.000000e+00 : f32
    %16 = vector.shape_cast %9 : vector<1x32768xi1> to vector<1x32768xi1>
    %17 = vector.broadcast %16 : vector<1x32768xi1> to vector<3x32768xi1>
    %18 = vector.broadcast %cst_4 : f32 to vector<3x32768xf32>
    %19 = arith.select %17, %15, %18 : vector<3x32768xi1>, vector<3x32768xf32>
    %20 = vector.extract_strided_slice %19 {offsets = [0, 0], sizes = [1, 32768], strides = [1, 1]} : vector<3x32768xf32> to vector<1x32768xf32>
    %21 = vector.broadcast %20 : vector<1x32768xf32> to vector<2x32768xf32>
    %22 = arith.mulf %14, %21 : vector<2x32768xf32>
    %cst_5 = arith.constant dense<0.000000e+00> : vector<2xf32>
    %23 = vector.multi_reduction <add>, %22, %cst_5 [1] : vector<2x32768xf32> to vector<2xf32>
    %24 = vector.shape_cast %23 : vector<2xf32> to vector<2x1xf32>
    %25 = vector.extract_strided_slice %19 {offsets = [1, 0], sizes = [1, 32768], strides = [1, 1]} : vector<3x32768xf32> to vector<1x32768xf32>
    %26 = vector.broadcast %25 : vector<1x32768xf32> to vector<2x32768xf32>
    %27 = arith.mulf %14, %26 : vector<2x32768xf32>
    %cst_6 = arith.constant dense<0.000000e+00> : vector<2xf32>
    %28 = vector.multi_reduction <add>, %27, %cst_6 [1] : vector<2x32768xf32> to vector<2xf32>
    %29 = vector.shape_cast %28 : vector<2xf32> to vector<2x1xf32>
    %30 = vector.extract_strided_slice %19 {offsets = [2, 0], sizes = [1, 32768], strides = [1, 1]} : vector<3x32768xf32> to vector<1x32768xf32>
    %31 = vector.broadcast %30 : vector<1x32768xf32> to vector<2x32768xf32>
    %32 = arith.mulf %14, %31 : vector<2x32768xf32>
    %cst_7 = arith.constant dense<0.000000e+00> : vector<2xf32>
    %33 = vector.multi_reduction <add>, %32, %cst_7 [1] : vector<2x32768xf32> to vector<2xf32>
    %34 = vector.shape_cast %33 : vector<2xf32> to vector<2x1xf32>
    %c0_8 = arith.constant 0 : index
    %c0_9 = arith.constant 0 : index
    %35 = vector.load %arg5[%c0_8, %c0_9] : memref<2x3xf32, #tpu.memory_space<vmem>>, vector<2x3xf32>
    %36 = tpu.concatenate %24, %29, %34 in 1 : vector<2x1xf32>, vector<2x1xf32>, vector<2x1xf32> -> vector<2x3xf32>
    %37 = arith.addf %35, %36 : vector<2x3xf32>
    %c0_10 = arith.constant 0 : index
    %c0_11 = arith.constant 0 : index
    %38 = vector.load %arg5[%c0_10, %c0_11] : memref<2x3xf32, #tpu.memory_space<vmem>>, vector<2x3xf32>
    tpu.vector_store %arg5[%c0_10, %c0_11], %37 {strides = array<i32>} : memref<2x3xf32, #tpu.memory_space<vmem>>, vector<2x3xf32>,
    %c1_i32 = arith.constant 1 : i32
    %39 = arith.cmpi eq, %arg1, %c1_i32 : i32
    %40 = arith.extui %39 : i1 to i32
    %c0_i32_12 = arith.constant 0 : i32
    %41 = arith.cmpi ne, %40, %c0_i32_12 : i32
    scf.if %41 {
      %c0_13 = arith.constant 0 : index
      %c0_14 = arith.constant 0 : index
      %42 = vector.load %arg5[%c0_13, %c0_14] : memref<2x3xf32, #tpu.memory_space<vmem>>, vector<2x3xf32>
      %c0_15 = arith.constant 0 : index
      %c0_16 = arith.constant 0 : index
      %c0_17 = arith.constant 0 : index
      %43 = vector.load %arg4[%c0_15, %c0_16, %c0_17] : memref<1x2x3xf32, #tpu.memory_space<vmem>>, vector<1x2x3xf32>
      %44 = vector.shape_cast %43 : vector<1x2x3xf32> to vector<2x3xf32>
      %45 = vector.shape_cast %42 : vector<2x3xf32> to vector<1x2x3xf32>
      tpu.vector_store %arg4[%c0_15, %c0_16, %c0_17], %45 {strides = array<i32>} : memref<1x2x3xf32, #tpu.memory_space<vmem>>, vector<1x2x3xf32>,
    } else {
    }
    return
  }
  func.func @transform_0(%arg0: i32, %arg1: i32) -> (i32, i32) {
    %c2_i32 = arith.constant 2 : i32
    %0 = arith.muli %arg0, %c2_i32 : i32
    %1 = arith.addi %0, %arg1 : i32
    %c3_i32 = arith.constant 3 : i32
    %2 = arith.minsi %1, %c3_i32 : i32
    %c0_i32 = arith.constant 0 : i32
    %c0_i32_0 = arith.constant 0 : i32
    return %c0_i32, %2 : i32, i32
  }
  func.func @transform_1(%arg0: i32, %arg1: i32) -> (i32, i32) {
    %c2_i32 = arith.constant 2 : i32
    %0 = arith.muli %arg0, %c2_i32 : i32
    %1 = arith.addi %0, %arg1 : i32
    %c3_i32 = arith.constant 3 : i32
    %2 = arith.minsi %1, %c3_i32 : i32
    %c0_i32 = arith.constant 0 : i32
    %c0_i32_0 = arith.constant 0 : i32
    return %c0_i32, %2 : i32, i32
  }
  func.func @transform_2(%arg0: i32, %arg1: i32) -> (i32, i32, i32) {
    %c0_i32 = arith.constant 0 : i32
    %c0_i32_0 = arith.constant 0 : i32
    %c0_i32_1 = arith.constant 0 : i32
    return %arg0, %c0_i32, %c0_i32_0 : i32, i32, i32
  }
}

</mosaic_0001>

<llo_original>
// kernel: mlp_forward.1
$region0: #{mlp_forward.1}
  #allocation0 [shape = 'u32[]', space=smem, size = 0x4, offset = 0x4, fixed_abs, tag = 'smem constant byte address 0x4 - core index']
  #allocation1 [shape = 'u32[72,128]{1,0:T(1,128)}', space=vmem, size = 0x9000, scoped, tag = 'internal scratch']
  #allocation2 [shape = 'f32[2,3]{1,0:T(2,128)}', space=vmem, size = 0x400, scoped, tag = 'scratch operand']
  %s0 = inlined_call_operand.hbm [shape: f32[2,100000], index: 0, kind: input, shape index: {}]
  %s1 = inlined_call_operand.hbm [shape: f32[3,100000], index: 1, kind: input, shape index: {}]
  %s2 = inlined_call_operand.vmem [shape: f32[2,2,3], index: 2, kind: output, shape index: {}]
  %s3 = sld [smem:[#allocation0]]
  $region57: #{mlp_forward.1} parent=0
    _
  %s5 = ssub.s32 1, %s3
  %s6 = scalar_select 0, %s5, %s3
  $region1: #{mlp_forward.1} parent=0
    #allocation3 [shape = 'u8[524288]{0}', space=vmem, size = 0x80000, scoped, tag = 'input window, operand 0']
    #allocation4 [shape = 's32[2]{0}', space=sflag, size = 0x8, scoped, tag = 'scoped memory for mlp_forward.1']
    #allocation5 [shape = 'u8[1048576]{0}', space=vmem, size = 0x100000, scoped, tag = 'input window, operand 1']
    #allocation6 [shape = 's32[2]{0}', space=sflag, size = 0x8, scoped, tag = 'scoped memory for mlp_forward.1']
    %7 = vsyncpa [#allocation4], 0
    %s8 = scalar_lea.sflag [#allocation4], 1
    %9 = vsyncpa %s8, 0
    %10 = vsyncpa [#allocation6], 0
    %s11 = scalar_lea.sflag [#allocation6], 1
    %12 = vsyncpa %s11, 0
    loop: start=0, step=1, limit=6
    $region2: #{mlp_forward.1} parent=1 // loop_pre_header
      _
    $region3: #{mlp_forward.1} parent=1 // loop_header
      %s14 = sphi 0, %s18
      %p15 = scmp.ge.s32.totalorder %s14, 6
      %s21 = sphi 0, %s33
      %s22 = sphi 0, %s29
      %s23 = sphi 0, %s21
      %s24 = sphi 0, %s22
      %s25 = sphi 0, %s23
      %s26 = sphi 0, %s24
      %s44 = sphi 0, %s46
      %s47 = sphi 0, %s44
      %s48 = sphi 0, %s47
      %s64 = sphi 0, %s48
      %s78 = sphi 0, %s80
      %s81 = sphi 0, %s78
      %s82 = sphi 0, %s81
      %s98 = sphi 0, %s82
      %s104 = sphi 0, %s106
      %s107 = sphi 0, %s104
      %s108 = sphi 0, %s107
      %s124 = sphi 0, %s108
    $region4: #{mlp_forward.1} parent=1 // loop_header_branch
      %17 = sbr.rel (%p15) target = $region8
    $region5: #{mlp_forward.1} parent=1 // loop_body
      %s19 = ssub.s32 %s14, 1
      %s20 = ssub.s32 %s14, 2
      %s27 = sadd.s32 1, %s22
      %p28 = scmp.ge.s32.totalorder %s27, 2
      %s29 = scalar_select %p28, 0, %s27
      %s30 = sadd.s32 1, %s21
      %s31 = scalar_select %p28, %s30, %s21
      %p32 = scmp.ge.s32.totalorder %s31, 2
      %s33 = scalar_select %p32, 0, %s31
      %s34 = smul.u32 %s21, 2
      %s35 = sadd.s32 %s34, %s22
      %p36 = scmp.lt.s32.totalorder %s35, 3
      %s37 = scalar_select %p36, %s35, 3
      %s38 = smul.u32 %s33, 2
      %s39 = sadd.s32 %s38, %s29
      %p40 = scmp.lt.s32.totalorder %s39, 3
      %s41 = scalar_select %p40, %s39, 3
      %s42 = ssub.s32 %s37, %s41
      %p43 = scmp.eq.s32.totalorder %s42, 0
      %s45 = sadd.s32 %s44, 1
      %s46 = scalar_select %p43, %s44, %s45
      %p49 = pneg %p43
      %p50 = scmp.eq.s32.totalorder %s14, 3
      %p51 = por %p49, %p50
      %p52 = scmp.ne.s32.totalorder %s44, %s47
      %p53 = scmp.eq.s32.totalorder %s14, 0
      %p54 = por %p52, %p53
      %p55 = scmp.ne.s32.totalorder %s44, %s47
      %p56 = scmp.eq.s32.totalorder %s19, 3
      %p57 = por %p55, %p56
      %p58 = scmp.ne.s32.totalorder %s47, %s48
      %p59 = scmp.eq.s32.totalorder %s19, 0
      %p60 = por %p58, %p59
      %p61 = scmp.ne.s32.totalorder %s47, %s48
      %p62 = scmp.eq.s32.totalorder %s20, 3
      %p63 = por %p61, %p62
      %p65 = scmp.ne.s32.totalorder %s48, %s64
      %p66 = scmp.eq.s32.totalorder %s20, 0
      %p67 = por %p65, %p66
      %s68 = smul.u32 %s21, 2
      %s69 = sadd.s32 %s68, %s22
      %p70 = scmp.lt.s32.totalorder %s69, 3
      %s71 = scalar_select %p70, %s69, 3
      %s72 = smul.u32 %s33, 2
      %s73 = sadd.s32 %s72, %s29
      %p74 = scmp.lt.s32.totalorder %s73, 3
      %s75 = scalar_select %p74, %s73, 3
      %s76 = ssub.s32 %s71, %s75
      %p77 = scmp.eq.s32.totalorder %s76, 0
      %s79 = sadd.s32 %s78, 1
      %s80 = scalar_select %p77, %s78, %s79
      %p83 = pneg %p77
      %p84 = scmp.eq.s32.totalorder %s14, 3
      %p85 = por %p83, %p84
      %p86 = scmp.ne.s32.totalorder %s78, %s81
      %p87 = scmp.eq.s32.totalorder %s14, 0
      %p88 = por %p86, %p87
      %p89 = scmp.ne.s32.totalorder %s78, %s81
      %p90 = scmp.eq.s32.totalorder %s19, 3
      %p91 = por %p89, %p90
      %p92 = scmp.ne.s32.totalorder %s81, %s82
      %p93 = scmp.eq.s32.totalorder %s19, 0
      %p94 = por %p92, %p93
      %p95 = scmp.ne.s32.totalorder %s81, %s82
      %p96 = scmp.eq.s32.totalorder %s20, 3
      %p97 = por %p95, %p96
      %p99 = scmp.ne.s32.totalorder %s82, %s98
      %p100 = scmp.eq.s32.totalorder %s20, 0
      %p101 = por %p99, %p100
      %s102 = ssub.s32 %s21, %s33
      %p103 = scmp.eq.s32.totalorder %s102, 0
      %s105 = sadd.s32 %s104, 1
      %s106 = scalar_select %p103, %s104, %s105
      %p109 = pneg %p103
      %p110 = scmp.eq.s32.totalorder %s14, 3
      %p111 = por %p109, %p110
      %p112 = scmp.ne.s32.totalorder %s104, %s107
      %p113 = scmp.eq.s32.totalorder %s14, 0
      %p114 = por %p112, %p113
      %p115 = scmp.ne.s32.totalorder %s104, %s107
      %p116 = scmp.eq.s32.totalorder %s19, 3
      %p117 = por %p115, %p116
      %p118 = scmp.ne.s32.totalorder %s107, %s108
      %p119 = scmp.eq.s32.totalorder %s19, 0
      %p120 = por %p118, %p119
      %p121 = scmp.ne.s32.totalorder %s107, %s108
      %p122 = scmp.eq.s32.totalorder %s20, 3
      %p123 = por %p121, %p122
      %p125 = scmp.ne.s32.totalorder %s108, %s124
      %p126 = scmp.eq.s32.totalorder %s20, 0
      %p127 = por %p125, %p126
      %p128 = scmp.le.s32.totalorder 1, %s14
      %p129 = scmp.lt.s32.totalorder %s14, 5
      %p130 = pnand %p128, %p129
      %p131 = pneg %p130
      // Predicated region
      $region9: #{mlp_forward.1} parent=5 // pred_check
        _
      $region10: #{mlp_forward.1} parent=5 // pred_check_branch
        %133 = sbr.rel (%p130) target = $region12
      $region11: #{mlp_forward.1} parent=5 // pred_region
        %s134 = ssub.s32 %s14, 1
      $region12: #{mlp_forward.1} parent=5 // pred_fallthru
        _
      %p135 = scmp.lt.s32.totalorder %s14, 4
      // Predicated region
      $region13: #{mlp_forward.1} parent=5 // pred_check
        %p136 = pneg %p135
      $region14: #{mlp_forward.1} parent=5 // pred_check_branch
        %138 = sbr.rel (%p136) target = $region16
      $region15: #{mlp_forward.1} parent=5 // pred_region
        // Predicated region
        $region17: #{mlp_forward.1} parent=15 // pred_check
          %p139 = pneg %p54
        $region18: #{mlp_forward.1} parent=15 // pred_check_branch
          %141 = sbr.rel (%p139) target = $region20
        $region19: #{mlp_forward.1} parent=15 // pred_region
          %s142 = sand.u32 %s44, 1
          %s143 = scalar_lea.sflag [#allocation4], %s142
          %s144 = sand.u32 %s44, 1
          %s145 = smul.addr %s144, 512
          %s146 = scalar_lea.vmem [#allocation3], %s145
          %s147 = smul.u32 %s21, 2
          %s148 = sadd.s32 %s147, %s22
          %p149 = scmp.lt.s32.totalorder %s148, 3
          %s150 = scalar_select %p149, %s148, 3
          %s151 = smul.u32 256, %s150
          %s152 = ssub.s32 782, %s151
          %p153 = scmp.lt.s32.totalorder %s152, 256
          %s154 = scalar_select %p153, %s152, 256
          %s155 = smul.u32 2, %s154
          %s156 = ssub.s32 512, %s155
          %s157 = sshll.u32 %s156, 4
          %158 = vsyncadd %s143, %s157
          %p159 = scmp.ne.s32.totalorder 0, %s155
          %s160 = smul.addr %s151, 2
          %s161 = scalar_lea.hbm %s0, %s160
          %s162 = smul.u32 %s154, 2
          %s163 = sshll.u32 %s162, 4
          %s164 = sshll.u32 %s161, 4
          %s165 = int_to_ptr.hbm [resolvable:$true] %s164
          %s166 = sshll.u32 %s146, 4
          %s167 = int_to_ptr.vmem [resolvable:$true] %s166
          %169 = dma.hbm_to_vmem [thread:$0]  (%p159), %s165, %s163, %s167, %s143
        $region20: #{mlp_forward.1} parent=15 // pred_fallthru
          _
        // Predicated region
        $region21: #{mlp_forward.1} parent=15 // pred_check
          %p170 = pneg %p88
        $region22: #{mlp_forward.1} parent=15 // pred_check_branch
          %172 = sbr.rel (%p170) target = $region24
        $region23: #{mlp_forward.1} parent=15 // pred_region
          %s173 = sand.u32 %s78, 1
          %s174 = scalar_lea.sflag [#allocation6], %s173
          %s175 = sand.u32 %s78, 1
          %s176 = smul.addr %s175, 1024
          %s177 = scalar_lea.vmem [#allocation5], %s176
          %s178 = smul.u32 %s21, 2
          %s179 = sadd.s32 %s178, %s22
          %p180 = scmp.lt.s32.totalorder %s179, 3
          %s181 = scalar_select %p180, %s179, 3
          %s182 = smul.u32 256, %s181
          %s183 = ssub.s32 782, %s182
          %p184 = scmp.lt.s32.totalorder %s183, 256
          %s185 = scalar_select %p184, %s183, 256
          %s186 = smul.u32 4, %s185
          %s187 = ssub.s32 1024, %s186
          %s188 = sshll.u32 %s187, 4
          %189 = vsyncadd %s174, %s188
          %p190 = scmp.ne.s32.totalorder 0, %s186
          %s191 = smul.addr %s182, 4
          %s192 = scalar_lea.hbm %s1, %s191
          %s193 = smul.u32 %s185, 4
          %s194 = sshll.u32 %s193, 4
          %s195 = sshll.u32 %s192, 4
          %s196 = int_to_ptr.hbm [resolvable:$true] %s195
          %s197 = sshll.u32 %s177, 4
          %s198 = int_to_ptr.vmem [resolvable:$true] %s197
          %200 = dma.hbm_to_vmem [thread:$0]  (%p190), %s196, %s194, %s198, %s174
        $region24: #{mlp_forward.1} parent=15 // pred_fallthru
          _
      $region16: #{mlp_forward.1} parent=5 // pred_fallthru
        _
      %p201 = scmp.le.s32.totalorder 1, %s14
      %p202 = scmp.lt.s32.totalorder %s14, 5
      %p203 = pnand %p201, %p202
      %p204 = pneg %p203
      // Predicated region
      $region25: #{mlp_forward.1} parent=5 // pred_check
        _
      $region26: #{mlp_forward.1} parent=5 // pred_check_branch
        %206 = sbr.rel (%p203) target = $region28
      $region27: #{mlp_forward.1} parent=5 // pred_region
        %s207 = ssub.s32 %s14, 1
        %s208 = sand.u32 %s47, 1
        %s209 = scalar_lea.sflag [#allocation4], %s208
        %s210 = sand.u32 %s47, 1
        %s211 = smul.addr %s210, 512
        %s212 = scalar_lea.vmem [#allocation3], %s211
        // Predicated region
        $region29: #{mlp_forward.1} parent=27 // pred_check
          %p213 = pneg %p60
        $region30: #{mlp_forward.1} parent=27 // pred_check_branch
          %215 = sbr.rel (%p213) target = $region32
        $region31: #{mlp_forward.1} parent=27 // pred_region
          %217 = dma.done %s209, 8192
        $region32: #{mlp_forward.1} parent=27 // pred_fallthru
          _
        %s218 = sand.u32 %s81, 1
        %s219 = scalar_lea.sflag [#allocation6], %s218
        %s220 = sand.u32 %s81, 1
        %s221 = smul.addr %s220, 1024
        %s222 = scalar_lea.vmem [#allocation5], %s221
        // Predicated region
        $region33: #{mlp_forward.1} parent=27 // pred_check
          %p223 = pneg %p94
        $region34: #{mlp_forward.1} parent=27 // pred_check_branch
          %225 = sbr.rel (%p223) target = $region36
        $region35: #{mlp_forward.1} parent=27 // pred_region
          %227 = dma.done %s219, 16384
        $region36: #{mlp_forward.1} parent=27 // pred_fallthru
          _
        %s228 = sand.u32 %s47, 1
        %s229 = scalar_lea.sflag [#allocation4], %s228
        %s230 = sand.u32 %s47, 1
        %s231 = smul.addr %s230, 512
        %s232 = scalar_lea.vmem [#allocation3], %s231
        %p233 = pneg %p60
        %p234 = pneg %p57
        %s235 = sand.u32 %s81, 1
        %s236 = scalar_lea.sflag [#allocation6], %s235
        %s237 = sand.u32 %s81, 1
        %s238 = smul.addr %s237, 1024
        %s239 = scalar_lea.vmem [#allocation5], %s238
        %p240 = pneg %p94
        %p241 = pneg %p91
        %p242 = pneg %p120
        %p243 = pneg %p117
        %p244 = scmp.lt.s32.totalorder %s23, 1
        %s245 = scalar_select %p244, %s23, 1
        %s246 = smul.addr %s245, 2
        %s247 = scalar_lea.vmem %s2, %s246
        %s248 = smul.u32 %s23, 2
        %s249 = sadd.s32 %s248, %s24
        %p250 = scmp.lt.s32.totalorder %s249, 3
        %s251 = scalar_select %p250, %s249, 3
        %s252 = smul.u32 256, %s251
        %s253 = ssub.s32 782, %s252
        %p254 = scmp.lt.s32.totalorder %s253, 256
        %s255 = scalar_select %p254, %s253, 256
        %s256 = smul.u32 2, %s255
        %s257 = smul.u32 %s23, 2
        %s258 = sadd.s32 %s257, %s24
        %p259 = scmp.lt.s32.totalorder %s258, 3
        %s260 = scalar_select %p259, %s258, 3
        %s261 = smul.u32 256, %s260
        %s262 = ssub.s32 782, %s261
        %p263 = scmp.lt.s32.totalorder %s262, 256
        %s264 = scalar_select %p263, %s262, 256
        %s265 = smul.u32 4, %s264
        %p266 = scmp.lt.s32.totalorder %s23, 1
        %s267 = scalar_select %p266, %s23, 1
        %s268 = smul.addr %s267, 2
        %s269 = scalar_lea.vmem %s2, %s268
        %p270 = scmp.eq.s32.totalorder %s24, 0
        // Predicated region
        $region37: #{mlp_forward.1} parent=27 // pred_check
          %p271 = pneg %p270
        $region38: #{mlp_forward.1} parent=27 // pred_check_branch
          %273 = sbr.rel (%p271) target = $region40
        $region39: #{mlp_forward.1} parent=27 // pred_region
          %vm274 = vcmask 17408
          %275 = vst.msk [vmem:[#allocation2] sm:$0x3] %vm274, 0.0
        $region40: #{mlp_forward.1} parent=27 // pred_fallthru
          _
        %s276 = smul.u32 %s23, 2
        %s277 = sadd.s32 %s276, %s24
        %s278 = smul.u32 %s277, 32768
        %s279 = ssub.s32 100000, %s278
        %v280 = vlaneseq
        %v281 = vand.u32 %v280, 127
        %v282 = vadd.s32 %v281, 128
        %v283 = vadd.s32 %v281, 256
        %v284 = vadd.s32 %v281, 384
        %v285 = vadd.s32 %v281, 512
        %v286 = vadd.s32 %v281, 640
        %v287 = vadd.s32 %v281, 768
        %v288 = vadd.s32 %v281, 896
        %v289 = vadd.s32 %v281, 1024
        %v290 = vadd.s32 %v281, 1152
        %v291 = vadd.s32 %v281, 1280
        %v292 = vadd.s32 %v281, 1408
        %v293 = vadd.s32 %v281, 1536
        %v294 = vadd.s32 %v281, 1664
        %v295 = vadd.s32 %v281, 1792
        %v296 = vadd.s32 %v281, 1920
        %v297 = vadd.s32 %v281, 2048
        %v298 = vadd.s32 %v281, 2176
        %v299 = vadd.s32 %v281, 2304
        %v300 = vadd.s32 %v281, 2432
        %v301 = vadd.s32 %v281, 2560
        %v302 = vadd.s32 %v281, 2688
        %v303 = vadd.s32 %v281, 2816
        %v304 = vadd.s32 %v281, 2944
        %v305 = vadd.s32 %v281, 3072
        %v306 = vadd.s32 %v281, 3200
        %v307 = vadd.s32 %v281, 3328
        %v308 = vadd.s32 %v281, 3456
        %v309 = vadd.s32 %v281, 3584
        %v310 = vadd.s32 %v281, 3712
        %v311 = vadd.s32 %v281, 3840
        %v312 = vadd.s32 %v281, 3968
        %v313 = vadd.s32 %v281, 4096
        %v314 = vadd.s32 %v281, 4224
        %v315 = vadd.s32 %v281, 4352
        %v316 = vadd.s32 %v281, 4480
        %v317 = vadd.s32 %v281, 4608
        %v318 = vadd.s32 %v281, 4736
        %v319 = vadd.s32 %v281, 4864
        %v320 = vadd.s32 %v281, 4992
        %v321 = vadd.s32 %v281, 5120
        %v322 = vadd.s32 %v281, 5248
        %v323 = vadd.s32 %v281, 5376
        %v324 = vadd.s32 %v281, 5504
        %v325 = vadd.s32 %v281, 5632
        %v326 = vadd.s32 %v281, 5760
        %v327 = vadd.s32 %v281, 5888
        %v328 = vadd.s32 %v281, 6016
        %v329 = vadd.s32 %v281, 6144
        %v330 = vadd.s32 %v281, 6272
        %v331 = vadd.s32 %v281, 6400
        %v332 = vadd.s32 %v281, 6528
        %v333 = vadd.s32 %v281, 6656
        %v334 = vadd.s32 %v281, 6784
        %v335 = vadd.s32 %v281, 6912
        %v336 = vadd.s32 %v281, 7040
        %v337 = vadd.s32 %v281, 7168
        %v338 = vadd.s32 %v281, 7296
        %v339 = vadd.s32 %v281, 7424
        %v340 = vadd.s32 %v281, 7552
        %v341 = vadd.s32 %v281, 7680
        %v342 = vadd.s32 %v281, 7808
        %v343 = vadd.s32 %v281, 7936
        %v344 = vadd.s32 %v281, 8064
        %v345 = vadd.s32 %v281, 8192
        %v346 = vadd.s32 %v281, 8320
        %v347 = vadd.s32 %v281, 8448
        %v348 = vadd.s32 %v281, 8576
        %v349 = vadd.s32 %v281, 8704
        %v350 = vadd.s32 %v281, 8832
        %v351 = vadd.s32 %v281, 8960
        %v352 = vadd.s32 %v281, 9088
        %v353 = vadd.s32 %v281, 9216
        %v354 = vadd.s32 %v281, 9344
        %v355 = vadd.s32 %v281, 9472
        %v356 = vadd.s32 %v281, 9600
        %v357 = vadd.s32 %v281, 9728
        %v358 = vadd.s32 %v281, 9856
        %v359 = vadd.s32 %v281, 9984
        %v360 = vadd.s32 %v281, 10112
        %v361 = vadd.s32 %v281, 10240
        %v362 = vadd.s32 %v281, 10368
        %v363 = vadd.s32 %v281, 10496
        %v364 = vadd.s32 %v281, 10624
        %v365 = vadd.s32 %v281, 10752
        %v366 = vadd.s32 %v281, 10880
        %v367 = vadd.s32 %v281, 11008
        %v368 = vadd.s32 %v281, 11136
        %v369 = vadd.s32 %v281, 11264
        %v370 = vadd.s32 %v281, 11392
        %v371 = vadd.s32 %v281, 11520
        %v372 = vadd.s32 %v281, 11648
        %v373 = vadd.s32 %v281, 11776
        %v374 = vadd.s32 %v281, 11904
        %v375 = vadd.s32 %v281, 12032
        %v376 = vadd.s32 %v281, 12160
        %v377 = vadd.s32 %v281, 12288
        %v378 = vadd.s32 %v281, 12416
        %v379 = vadd.s32 %v281, 12544
        %v380 = vadd.s32 %v281, 12672
        %v381 = vadd.s32 %v281, 12800
        %v382 = vadd.s32 %v281, 12928
        %v383 = vadd.s32 %v281, 13056
        %v384 = vadd.s32 %v281, 13184
        %v385 = vadd.s32 %v281, 13312
        %v386 = vadd.s32 %v281, 13440
        %v387 = vadd.s32 %v281, 13568
        %v388 = vadd.s32 %v281, 13696
        %v389 = vadd.s32 %v281, 13824
        %v390 = vadd.s32 %v281, 13952
        %v391 = vadd.s32 %v281, 14080
        %v392 = vadd.s32 %v281, 14208
        %v393 = vadd.s32 %v281, 14336
        %v394 = vadd.s32 %v281, 14464
        %v395 = vadd.s32 %v281, 14592
        %v396 = vadd.s32 %v281, 14720
        %v397 = vadd.s32 %v281, 14848
        %v398 = vadd.s32 %v281, 14976
        %v399 = vadd.s32 %v281, 15104
        %v400 = vadd.s32 %v281, 15232
        %v401 = vadd.s32 %v281, 15360
        %v402 = vadd.s32 %v281, 15488
        %v403 = vadd.s32 %v281, 15616
        %v404 = vadd.s32 %v281, 15744
        %v405 = vadd.s32 %v281, 15872
        %v406 = vadd.s32 %v281, 16000
        %v407 = vadd.s32 %v281, 16128
        %v408 = vadd.s32 %v281, 16256
        %v409 = vadd.s32 %v281, 16384
        %v410 = vadd.s32 %v281, 16512
        %v411 = vadd.s32 %v281, 16640
        %v412 = vadd.s32 %v281, 16768
        %v413 = vadd.s32 %v281, 16896
        %v414 = vadd.s32 %v281, 17024
        %v415 = vadd.s32 %v281, 17152
        %v416 = vadd.s32 %v281, 17280
        %v417 = vadd.s32 %v281, 17408
        %v418 = vadd.s32 %v281, 17536
        %v419 = vadd.s32 %v281, 17664
        %v420 = vadd.s32 %v281, 17792
        %v421 = vadd.s32 %v281, 17920
        %v422 = vadd.s32 %v281, 18048
        %v423 = vadd.s32 %v281, 18176
        %v424 = vadd.s32 %v281, 18304
        %v425 = vadd.s32 %v281, 18432
        %v426 = vadd.s32 %v281, 18560
        %v427 = vadd.s32 %v281, 18688
        %v428 = vadd.s32 %v281, 18816
        %v429 = vadd.s32 %v281, 18944
        %v430 = vadd.s32 %v281, 19072
        %v431 = vadd.s32 %v281, 19200
        %v432 = vadd.s32 %v281, 19328
        %v433 = vadd.s32 %v281, 19456
        %v434 = vadd.s32 %v281, 19584
        %v435 = vadd.s32 %v281, 19712
        %v436 = vadd.s32 %v281, 19840
        %v437 = vadd.s32 %v281, 19968
        %v438 = vadd.s32 %v281, 20096
        %v439 = vadd.s32 %v281, 20224
        %v440 = vadd.s32 %v281, 20352
        %v441 = vadd.s32 %v281, 20480
        %v442 = vadd.s32 %v281, 20608
        %v443 = vadd.s32 %v281, 20736
        %v444 = vadd.s32 %v281, 20864
        %v445 = vadd.s32 %v281, 20992
        %v446 = vadd.s32 %v281, 21120
        %v447 = vadd.s32 %v281, 21248
        %v448 = vadd.s32 %v281, 21376
        %v449 = vadd.s32 %v281, 21504
        %v450 = vadd.s32 %v281, 21632
        %v451 = vadd.s32 %v281, 21760
        %v452 = vadd.s32 %v281, 21888
        %v453 = vadd.s32 %v281, 22016
        %v454 = vadd.s32 %v281, 22144
        %v455 = vadd.s32 %v281, 22272
        %v456 = vadd.s32 %v281, 22400
        %v457 = vadd.s32 %v281, 22528
        %v458 = vadd.s32 %v281, 22656
        %v459 = vadd.s32 %v281, 22784
        %v460 = vadd.s32 %v281, 22912
        %v461 = vadd.s32 %v281, 23040
        %v462 = vadd.s32 %v281, 23168
        %v463 = vadd.s32 %v281, 23296
        %v464 = vadd.s32 %v281, 23424
        %v465 = vadd.s32 %v281, 23552
        %v466 = vadd.s32 %v281, 23680
        %v467 = vadd.s32 %v281, 23808
        %v468 = vadd.s32 %v281, 23936
        %v469 = vadd.s32 %v281, 24064
        %v470 = vadd.s32 %v281, 24192
        %v471 = vadd.s32 %v281, 24320
        %v472 = vadd.s32 %v281, 24448
        %v473 = vadd.s32 %v281, 24576
        %v474 = vadd.s32 %v281, 24704
        %v475 = vadd.s32 %v281, 24832
        %v476 = vadd.s32 %v281, 24960
        %v477 = vadd.s32 %v281, 25088
        %v478 = vadd.s32 %v281, 25216
        %v479 = vadd.s32 %v281, 25344
        %v480 = vadd.s32 %v281, 25472
        %v481 = vadd.s32 %v281, 25600
        %v482 = vadd.s32 %v281, 25728
        %v483 = vadd.s32 %v281, 25856
        %v484 = vadd.s32 %v281, 25984
        %v485 = vadd.s32 %v281, 26112
        %v486 = vadd.s32 %v281, 26240
        %v487 = vadd.s32 %v281, 26368
        %v488 = vadd.s32 %v281, 26496
        %v489 = vadd.s32 %v281, 26624
        %v490 = vadd.s32 %v281, 26752
        %v491 = vadd.s32 %v281, 26880
        %v492 = vadd.s32 %v281, 27008
        %v493 = vadd.s32 %v281, 27136
        %v494 = vadd.s32 %v281, 27264
        %v495 = vadd.s32 %v281, 27392
        %v496 = vadd.s32 %v281, 27520
        %v497 = vadd.s32 %v281, 27648
        %v498 = vadd.s32 %v281, 27776
        %v499 = vadd.s32 %v281, 27904
        %v500 = vadd.s32 %v281, 28032
        %v501 = vadd.s32 %v281, 28160
        %v502 = vadd.s32 %v281, 28288
        %v503 = vadd.s32 %v281, 28416
        %v504 = vadd.s32 %v281, 28544
        %v505 = vadd.s32 %v281, 28672
        %v506 = vadd.s32 %v281, 28800
        %v507 = vadd.s32 %v281, 28928
        %v508 = vadd.s32 %v281, 29056
        %v509 = vadd.s32 %v281, 29184
        %v510 = vadd.s32 %v281, 29312
        %v511 = vadd.s32 %v281, 29440
        %v512 = vadd.s32 %v281, 29568
        %v513 = vadd.s32 %v281, 29696
        %v514 = vadd.s32 %v281, 29824
        %v515 = vadd.s32 %v281, 29952
        %v516 = vadd.s32 %v281, 30080
        %v517 = vadd.s32 %v281, 30208
        %v518 = vadd.s32 %v281, 30336
        %v519 = vadd.s32 %v281, 30464
        %v520 = vadd.s32 %v281, 30592
        %v521 = vadd.s32 %v281, 30720
        %v522 = vadd.s32 %v281, 30848
        %v523 = vadd.s32 %v281, 30976
        %v524 = vadd.s32 %v281, 31104
        %v525 = vadd.s32 %v281, 31232
        %v526 = vadd.s32 %v281, 31360
        %v527 = vadd.s32 %v281, 31488
        %v528 = vadd.s32 %v281, 31616
        %v529 = vadd.s32 %v281, 31744
        %v530 = vadd.s32 %v281, 31872
        %v531 = vadd.s32 %v281, 32000
        %v532 = vadd.s32 %v281, 32128
        %v533 = vadd.s32 %v281, 32256
        %v534 = vadd.s32 %v281, 32384
        %v535 = vadd.s32 %v281, 32512
        %v536 = vadd.s32 %v281, 32640
        %v537 = vstv %s279
        %vm538 = vcmp.lt.s32.totalorder %v281, %v537
        %vm539 = vcmp.lt.s32.totalorder %v282, %v537
        %vm540 = vcmp.lt.s32.totalorder %v283, %v537
        %vm541 = vcmp.lt.s32.totalorder %v284, %v537
        %vm542 = vcmp.lt.s32.totalorder %v285, %v537
        %vm543 = vcmp.lt.s32.totalorder %v286, %v537
        %vm544 = vcmp.lt.s32.totalorder %v287, %v537
        %vm545 = vcmp.lt.s32.totalorder %v288, %v537
        %vm546 = vcmp.lt.s32.totalorder %v289, %v537
        %vm547 = vcmp.lt.s32.totalorder %v290, %v537
        %vm548 = vcmp.lt.s32.totalorder %v291, %v537
        %vm549 = vcmp.lt.s32.totalorder %v292, %v537
        %vm550 = vcmp.lt.s32.totalorder %v293, %v537
        %vm551 = vcmp.lt.s32.totalorder %v294, %v537
        %vm552 = vcmp.lt.s32.totalorder %v295, %v537
        %vm553 = vcmp.lt.s32.totalorder %v296, %v537
        %vm554 = vcmp.lt.s32.totalorder %v297, %v537
        %vm555 = vcmp.lt.s32.totalorder %v298, %v537
        %vm556 = vcmp.lt.s32.totalorder %v299, %v537
        %vm557 = vcmp.lt.s32.totalorder %v300, %v537
        %vm558 = vcmp.lt.s32.totalorder %v301, %v537
        %vm559 = vcmp.lt.s32.totalorder %v302, %v537
        %vm560 = vcmp.lt.s32.totalorder %v303, %v537
        %vm561 = vcmp.lt.s32.totalorder %v304, %v537
        %vm562 = vcmp.lt.s32.totalorder %v305, %v537
        %vm563 = vcmp.lt.s32.totalorder %v306, %v537
        %vm564 = vcmp.lt.s32.totalorder %v307, %v537
        %vm565 = vcmp.lt.s32.totalorder %v308, %v537
        %vm566 = vcmp.lt.s32.totalorder %v309, %v537
        %vm567 = vcmp.lt.s32.totalorder %v310, %v537
        %vm568 = vcmp.lt.s32.totalorder %v311, %v537
        %vm569 = vcmp.lt.s32.totalorder %v312, %v537
        %vm570 = vcmp.lt.s32.totalorder %v313, %v537
        %vm571 = vcmp.lt.s32.totalorder %v314, %v537
        %vm572 = vcmp.lt.s32.totalorder %v315, %v537
        %vm573 = vcmp.lt.s32.totalorder %v316, %v537
        %vm574 = vcmp.lt.s32.totalorder %v317, %v537
        %vm575 = vcmp.lt.s32.totalorder %v318, %v537
        %vm576 = vcmp.lt.s32.totalorder %v319, %v537
        %vm577 = vcmp.lt.s32.totalorder %v320, %v537
        %vm578 = vcmp.lt.s32.totalorder %v321, %v537
        %vm579 = vcmp.lt.s32.totalorder %v322, %v537
        %vm580 = vcmp.lt.s32.totalorder %v323, %v537
        %vm581 = vcmp.lt.s32.totalorder %v324, %v537
        %vm582 = vcmp.lt.s32.totalorder %v325, %v537
        %vm583 = vcmp.lt.s32.totalorder %v326, %v537
        %vm584 = vcmp.lt.s32.totalorder %v327, %v537
        %vm585 = vcmp.lt.s32.totalorder %v328, %v537
        %vm586 = vcmp.lt.s32.totalorder %v329, %v537
        %vm587 = vcmp.lt.s32.totalorder %v330, %v537
        %vm588 = vcmp.lt.s32.totalorder %v331, %v537
        %vm589 = vcmp.lt.s32.totalorder %v332, %v537
        %vm590 = vcmp.lt.s32.totalorder %v333, %v537
        %vm591 = vcmp.lt.s32.totalorder %v334, %v537
        %vm592 = vcmp.lt.s32.totalorder %v335, %v537
        %vm593 = vcmp.lt.s32.totalorder %v336, %v537
        %vm594 = vcmp.lt.s32.totalorder %v337, %v537
        %vm595 = vcmp.lt.s32.totalorder %v338, %v537
        %vm596 = vcmp.lt.s32.totalorder %v339, %v537
        %vm597 = vcmp.lt.s32.totalorder %v340, %v537
        %vm598 = vcmp.lt.s32.totalorder %v341, %v537
        %vm599 = vcmp.lt.s32.totalorder %v342, %v537
        %vm600 = vcmp.lt.s32.totalorder %v343, %v537
        %vm601 = vcmp.lt.s32.totalorder %v344, %v537
        %vm602 = vcmp.lt.s32.totalorder %v345, %v537
        %vm603 = vcmp.lt.s32.totalorder %v346, %v537
        %vm604 = vcmp.lt.s32.totalorder %v347, %v537
        %vm605 = vcmp.lt.s32.totalorder %v348, %v537
        %vm606 = vcmp.lt.s32.totalorder %v349, %v537
        %vm607 = vcmp.lt.s32.totalorder %v350, %v537
        %vm608 = vcmp.lt.s32.totalorder %v351, %v537
        %vm609 = vcmp.lt.s32.totalorder %v352, %v537
        %vm610 = vcmp.lt.s32.totalorder %v353, %v537
        %vm611 = vcmp.lt.s32.totalorder %v354, %v537
        %vm612 = vcmp.lt.s32.totalorder %v355, %v537
        %vm613 = vcmp.lt.s32.totalorder %v356, %v537
        %vm614 = vcmp.lt.s32.totalorder %v357, %v537
        %vm615 = vcmp.lt.s32.totalorder %v358, %v537
        %vm616 = vcmp.lt.s32.totalorder %v359, %v537
        %vm617 = vcmp.lt.s32.totalorder %v360, %v537
        %vm618 = vcmp.lt.s32.totalorder %v361, %v537
        %vm619 = vcmp.lt.s32.totalorder %v362, %v537
        %vm620 = vcmp.lt.s32.totalorder %v363, %v537
        %vm621 = vcmp.lt.s32.totalorder %v364, %v537
        %vm622 = vcmp.lt.s32.totalorder %v365, %v537
        %vm623 = vcmp.lt.s32.totalorder %v366, %v537
        %vm624 = vcmp.lt.s32.totalorder %v367, %v537
        %vm625 = vcmp.lt.s32.totalorder %v368, %v537
        %vm626 = vcmp.lt.s32.totalorder %v369, %v537
        %vm627 = vcmp.lt.s32.totalorder %v370, %v537
        %vm628 = vcmp.lt.s32.totalorder %v371, %v537
        %vm629 = vcmp.lt.s32.totalorder %v372, %v537
        %vm630 = vcmp.lt.s32.totalorder %v373, %v537
        %vm631 = vcmp.lt.s32.totalorder %v374, %v537
        %vm632 = vcmp.lt.s32.totalorder %v375, %v537
        %vm633 = vcmp.lt.s32.totalorder %v376, %v537
        %vm634 = vcmp.lt.s32.totalorder %v377, %v537
        %vm635 = vcmp.lt.s32.totalorder %v378, %v537
        %vm636 = vcmp.lt.s32.totalorder %v379, %v537
        %vm637 = vcmp.lt.s32.totalorder %v380, %v537
        %vm638 = vcmp.lt.s32.totalorder %v381, %v537
        %vm639 = vcmp.lt.s32.totalorder %v382, %v537
        %vm640 = vcmp.lt.s32.totalorder %v383, %v537
        %vm641 = vcmp.lt.s32.totalorder %v384, %v537
        %vm642 = vcmp.lt.s32.totalorder %v385, %v537
        %vm643 = vcmp.lt.s32.totalorder %v386, %v537
        %vm644 = vcmp.lt.s32.totalorder %v387, %v537
        %vm645 = vcmp.lt.s32.totalorder %v388, %v537
        %vm646 = vcmp.lt.s32.totalorder %v389, %v537
        %vm647 = vcmp.lt.s32.totalorder %v390, %v537
        %vm648 = vcmp.lt.s32.totalorder %v391, %v537
        %vm649 = vcmp.lt.s32.totalorder %v392, %v537
        %vm650 = vcmp.lt.s32.totalorder %v393, %v537
        %vm651 = vcmp.lt.s32.totalorder %v394, %v537
        %vm652 = vcmp.lt.s32.totalorder %v395, %v537
        %vm653 = vcmp.lt.s32.totalorder %v396, %v537
        %vm654 = vcmp.lt.s32.totalorder %v397, %v537
        %vm655 = vcmp.lt.s32.totalorder %v398, %v537
        %vm656 = vcmp.lt.s32.totalorder %v399, %v537
        %vm657 = vcmp.lt.s32.totalorder %v400, %v537
        %vm658 = vcmp.lt.s32.totalorder %v401, %v537
        %vm659 = vcmp.lt.s32.totalorder %v402, %v537
        %vm660 = vcmp.lt.s32.totalorder %v403, %v537
        %vm661 = vcmp.lt.s32.totalorder %v404, %v537
        %vm662 = vcmp.lt.s32.totalorder %v405, %v537
        %vm663 = vcmp.lt.s32.totalorder %v406, %v537
        %vm664 = vcmp.lt.s32.totalorder %v407, %v537
        %vm665 = vcmp.lt.s32.totalorder %v408, %v537
        %vm666 = vcmp.lt.s32.totalorder %v409, %v537
        %vm667 = vcmp.lt.s32.totalorder %v410, %v537
        %vm668 = vcmp.lt.s32.totalorder %v411, %v537
        %vm669 = vcmp.lt.s32.totalorder %v412, %v537
        %vm670 = vcmp.lt.s32.totalorder %v413, %v537
        %vm671 = vcmp.lt.s32.totalorder %v414, %v537
        %vm672 = vcmp.lt.s32.totalorder %v415, %v537
        %vm673 = vcmp.lt.s32.totalorder %v416, %v537
        %vm674 = vcmp.lt.s32.totalorder %v417, %v537
        %vm675 = vcmp.lt.s32.totalorder %v418, %v537
        %vm676 = vcmp.lt.s32.totalorder %v419, %v537
        %vm677 = vcmp.lt.s32.totalorder %v420, %v537
        %vm678 = vcmp.lt.s32.totalorder %v421, %v537
        %vm679 = vcmp.lt.s32.totalorder %v422, %v537
        %vm680 = vcmp.lt.s32.totalorder %v423, %v537
        %vm681 = vcmp.lt.s32.totalorder %v424, %v537
        %vm682 = vcmp.lt.s32.totalorder %v425, %v537
        %vm683 = vcmp.lt.s32.totalorder %v426, %v537
        %vm684 = vcmp.lt.s32.totalorder %v427, %v537
        %vm685 = vcmp.lt.s32.totalorder %v428, %v537
        %vm686 = vcmp.lt.s32.totalorder %v429, %v537
        %vm687 = vcmp.lt.s32.totalorder %v430, %v537
        %vm688 = vcmp.lt.s32.totalorder %v431, %v537
        %vm689 = vcmp.lt.s32.totalorder %v432, %v537
        %vm690 = vcmp.lt.s32.totalorder %v433, %v537
        %vm691 = vcmp.lt.s32.totalorder %v434, %v537
        %vm692 = vcmp.lt.s32.totalorder %v435, %v537
        %vm693 = vcmp.lt.s32.totalorder %v436, %v537
        %vm694 = vcmp.lt.s32.totalorder %v437, %v537
        %vm695 = vcmp.lt.s32.totalorder %v438, %v537
        %vm696 = vcmp.lt.s32.totalorder %v439, %v537
        %vm697 = vcmp.lt.s32.totalorder %v440, %v537
        %vm698 = vcmp.lt.s32.totalorder %v441, %v537
        %vm699 = vcmp.lt.s32.totalorder %v442, %v537
        %vm700 = vcmp.lt.s32.totalorder %v443, %v537
        %vm701 = vcmp.lt.s32.totalorder %v444, %v537
        %vm702 = vcmp.lt.s32.totalorder %v445, %v537
        %vm703 = vcmp.lt.s32.totalorder %v446, %v537
        %vm704 = vcmp.lt.s32.totalorder %v447, %v537
        %vm705 = vcmp.lt.s32.totalorder %v448, %v537
        %vm706 = vcmp.lt.s32.totalorder %v449, %v537
        %vm707 = vcmp.lt.s32.totalorder %v450, %v537
        %vm708 = vcmp.lt.s32.totalorder %v451, %v537
        %vm709 = vcmp.lt.s32.totalorder %v452, %v537
        %vm710 = vcmp.lt.s32.totalorder %v453, %v537
        %vm711 = vcmp.lt.s32.totalorder %v454, %v537
        %vm712 = vcmp.lt.s32.totalorder %v455, %v537
        %vm713 = vcmp.lt.s32.totalorder %v456, %v537
        %vm714 = vcmp.lt.s32.totalorder %v457, %v537
        %vm715 = vcmp.lt.s32.totalorder %v458, %v537
        %vm716 = vcmp.lt.s32.totalorder %v459, %v537
        %vm717 = vcmp.lt.s32.totalorder %v460, %v537
        %vm718 = vcmp.lt.s32.totalorder %v461, %v537
        %vm719 = vcmp.lt.s32.totalorder %v462, %v537
        %vm720 = vcmp.lt.s32.totalorder %v463, %v537
        %vm721 = vcmp.lt.s32.totalorder %v464, %v537
        %vm722 = vcmp.lt.s32.totalorder %v465, %v537
        %vm723 = vcmp.lt.s32.totalorder %v466, %v537
        %vm724 = vcmp.lt.s32.totalorder %v467, %v537
        %vm725 = vcmp.lt.s32.totalorder %v468, %v537
        %vm726 = vcmp.lt.s32.totalorder %v469, %v537
        %vm727 = vcmp.lt.s32.totalorder %v470, %v537
        %vm728 = vcmp.lt.s32.totalorder %v471, %v537
        %vm729 = vcmp.lt.s32.totalorder %v472, %v537
        %vm730 = vcmp.lt.s32.totalorder %v473, %v537
        %vm731 = vcmp.lt.s32.totalorder %v474, %v537
        %vm732 = vcmp.lt.s32.totalorder %v475, %v537
        %vm733 = vcmp.lt.s32.totalorder %v476, %v537
        %vm734 = vcmp.lt.s32.totalorder %v477, %v537
        %vm735 = vcmp.lt.s32.totalorder %v478, %v537
        %vm736 = vcmp.lt.s32.totalorder %v479, %v537
        %vm737 = vcmp.lt.s32.totalorder %v480, %v537
        %vm738 = vcmp.lt.s32.totalorder %v481, %v537
        %vm739 = vcmp.lt.s32.totalorder %v482, %v537
        %vm740 = vcmp.lt.s32.totalorder %v483, %v537
        %vm741 = vcmp.lt.s32.totalorder %v484, %v537
        %vm742 = vcmp.lt.s32.totalorder %v485, %v537
        %vm743 = vcmp.lt.s32.totalorder %v486, %v537
        %vm744 = vcmp.lt.s32.totalorder %v487, %v537
        %vm745 = vcmp.lt.s32.totalorder %v488, %v537
        %vm746 = vcmp.lt.s32.totalorder %v489, %v537
        %vm747 = vcmp.lt.s32.totalorder %v490, %v537
        %vm748 = vcmp.lt.s32.totalorder %v491, %v537
        %vm749 = vcmp.lt.s32.totalorder %v492, %v537
        %vm750 = vcmp.lt.s32.totalorder %v493, %v537
        %vm751 = vcmp.lt.s32.totalorder %v494, %v537
        %vm752 = vcmp.lt.s32.totalorder %v495, %v537
        %vm753 = vcmp.lt.s32.totalorder %v496, %v537
        %vm754 = vcmp.lt.s32.totalorder %v497, %v537
        %vm755 = vcmp.lt.s32.totalorder %v498, %v537
        %vm756 = vcmp.lt.s32.totalorder %v499, %v537
        %vm757 = vcmp.lt.s32.totalorder %v500, %v537
        %vm758 = vcmp.lt.s32.totalorder %v501, %v537
        %vm759 = vcmp.lt.s32.totalorder %v502, %v537
        %vm760 = vcmp.lt.s32.totalorder %v503, %v537
        %vm761 = vcmp.lt.s32.totalorder %v504, %v537
        %vm762 = vcmp.lt.s32.totalorder %v505, %v537
        %vm763 = vcmp.lt.s32.totalorder %v506, %v537
        %vm764 = vcmp.lt.s32.totalorder %v507, %v537
        %vm765 = vcmp.lt.s32.totalorder %v508, %v537
        %vm766 = vcmp.lt.s32.totalorder %v509, %v537
        %vm767 = vcmp.lt.s32.totalorder %v510, %v537
        %vm768 = vcmp.lt.s32.totalorder %v511, %v537
        %vm769 = vcmp.lt.s32.totalorder %v512, %v537
        %vm770 = vcmp.lt.s32.totalorder %v513, %v537
        %vm771 = vcmp.lt.s32.totalorder %v514, %v537
        %vm772 = vcmp.lt.s32.totalorder %v515, %v537
        %vm773 = vcmp.lt.s32.totalorder %v516, %v537
        %vm774 = vcmp.lt.s32.totalorder %v517, %v537
        %vm775 = vcmp.lt.s32.totalorder %v518, %v537
        %vm776 = vcmp.lt.s32.totalorder %v519, %v537
        %vm777 = vcmp.lt.s32.totalorder %v520, %v537
        %vm778 = vcmp.lt.s32.totalorder %v521, %v537
        %vm779 = vcmp.lt.s32.totalorder %v522, %v537
        %vm780 = vcmp.lt.s32.totalorder %v523, %v537
        %vm781 = vcmp.lt.s32.totalorder %v524, %v537
        %vm782 = vcmp.lt.s32.totalorder %v525, %v537
        %vm783 = vcmp.lt.s32.totalorder %v526, %v537
        %vm784 = vcmp.lt.s32.totalorder %v527, %v537
        %vm785 = vcmp.lt.s32.totalorder %v528, %v537
        %vm786 = vcmp.lt.s32.totalorder %v529, %v537
        %vm787 = vcmp.lt.s32.totalorder %v530, %v537
        %vm788 = vcmp.lt.s32.totalorder %v531, %v537
        %vm789 = vcmp.lt.s32.totalorder %v532, %v537
        %vm790 = vcmp.lt.s32.totalorder %v533, %v537
        %vm791 = vcmp.lt.s32.totalorder %v534, %v537
        %vm792 = vcmp.lt.s32.totalorder %v535, %v537
        %vm793 = vcmp.lt.s32.totalorder %v536, %v537
        %v794 = vld [vmem:[%s212] sm:$0xff]
        %v795 = vld [vmem:[%s212 + $0x8] sm:$0xff]
        %v796 = vld [vmem:[%s212 + $0x10] sm:$0xff]
        %v797 = vld [vmem:[%s212 + $0x18] sm:$0xff]
        %v798 = vld [vmem:[%s212 + $0x20] sm:$0xff]
        %v799 = vld [vmem:[%s212 + $0x28] sm:$0xff]
        %v800 = vld [vmem:[%s212 + $0x30] sm:$0xff]
        %v801 = vld [vmem:[%s212 + $0x38] sm:$0xff]
        %v802 = vld [vmem:[%s212 + $0x40] sm:$0xff]
        %v803 = vld [vmem:[%s212 + $0x48] sm:$0xff]
        %v804 = vld [vmem:[%s212 + $0x50] sm:$0xff]
        %v805 = vld [vmem:[%s212 + $0x58] sm:$0xff]
        %v806 = vld [vmem:[%s212 + $0x60] sm:$0xff]
        %v807 = vld [vmem:[%s212 + $0x68] sm:$0xff]
        %v808 = vld [vmem:[%s212 + $0x70] sm:$0xff]
        %v809 = vld [vmem:[%s212 + $0x78] sm:$0xff]
        %v810 = vld [vmem:[%s212 + $0x80] sm:$0xff]
        %v811 = vld [vmem:[%s212 + $0x88] sm:$0xff]
        %v812 = vld [vmem:[%s212 + $0x90] sm:$0xff]
        %v813 = vld [vmem:[%s212 + $0x98] sm:$0xff]
        %v814 = vld [vmem:[%s212 + $0xa0] sm:$0xff]
        %v815 = vld [vmem:[%s212 + $0xa8] sm:$0xff]
        %v816 = vld [vmem:[%s212 + $0xb0] sm:$0xff]
        %v817 = vld [vmem:[%s212 + $0xb8] sm:$0xff]
        %v818 = vld [vmem:[%s212 + $0xc0] sm:$0xff]
        %v819 = vld [vmem:[%s212 + $0xc8] sm:$0xff]
        %v820 = vld [vmem:[%s212 + $0xd0] sm:$0xff]
        %v821 = vld [vmem:[%s212 + $0xd8] sm:$0xff]
        %v822 = vld [vmem:[%s212 + $0xe0] sm:$0xff]
        %v823 = vld [vmem:[%s212 + $0xe8] sm:$0xff]
        %v824 = vld [vmem:[%s212 + $0xf0] sm:$0xff]
        %v825 = vld [vmem:[%s212 + $0xf8] sm:$0xff]
        %v826 = vld [vmem:[%s212 + $0x100] sm:$0xff]
        %v827 = vld [vmem:[%s212 + $0x108] sm:$0xff]
        %v828 = vld [vmem:[%s212 + $0x110] sm:$0xff]
        %v829 = vld [vmem:[%s212 + $0x118] sm:$0xff]
        %v830 = vld [vmem:[%s212 + $0x120] sm:$0xff]
        %v831 = vld [vmem:[%s212 + $0x128] sm:$0xff]
        %v832 = vld [vmem:[%s212 + $0x130] sm:$0xff]
        %v833 = vld [vmem:[%s212 + $0x138] sm:$0xff]
        %v834 = vld [vmem:[%s212 + $0x140] sm:$0xff]
        %v835 = vld [vmem:[%s212 + $0x148] sm:$0xff]
        %v836 = vld [vmem:[%s212 + $0x150] sm:$0xff]
        %v837 = vld [vmem:[%s212 + $0x158] sm:$0xff]
        %v838 = vld [vmem:[%s212 + $0x160] sm:$0xff]
        %v839 = vld [vmem:[%s212 + $0x168] sm:$0xff]
        %v840 = vld [vmem:[%s212 + $0x170] sm:$0xff]
        %v841 = vld [vmem:[%s212 + $0x178] sm:$0xff]
        %v842 = vld [vmem:[%s212 + $0x180] sm:$0xff]
        %v843 = vld [vmem:[%s212 + $0x188] sm:$0xff]
        %v844 = vld [vmem:[%s212 + $0x190] sm:$0xff]
        %v845 = vld [vmem:[%s212 + $0x198] sm:$0xff]
        %v846 = vld [vmem:[%s212 + $0x1a0] sm:$0xff]
        %v847 = vld [vmem:[%s212 + $0x1a8] sm:$0xff]
        %v848 = vld [vmem:[%s212 + $0x1b0] sm:$0xff]
        %v849 = vld [vmem:[%s212 + $0x1b8] sm:$0xff]
        %v850 = vld [vmem:[%s212 + $0x1c0] sm:$0xff]
        %v851 = vld [vmem:[%s212 + $0x1c8] sm:$0xff]
        %v852 = vld [vmem:[%s212 + $0x1d0] sm:$0xff]
        %v853 = vld [vmem:[%s212 + $0x1d8] sm:$0xff]
        %v854 = vld [vmem:[%s212 + $0x1e0] sm:$0xff]
        %v855 = vld [vmem:[%s212 + $0x1e8] sm:$0xff]
        %v856 = vld [vmem:[%s212 + $0x1f0] sm:$0xff]
        %v857 = vld [vmem:[%s212 + $0x1f8] sm:$0xff]
        %v858 = vsel %vm538, 1, 0
        %v859 = vsel %vm539, 1, 0
        %v860 = vsel %vm540, 1, 0
        %v861 = vsel %vm541, 1, 0
        %v862 = vsel %vm542, 1, 0
        %v863 = vsel %vm543, 1, 0
        %v864 = vsel %vm544, 1, 0
        %v865 = vsel %vm545, 1, 0
        %v866 = vsel %vm546, 1, 0
        %v867 = vsel %vm547, 1, 0
        %v868 = vsel %vm548, 1, 0
        %v869 = vsel %vm549, 1, 0
        %v870 = vsel %vm550, 1, 0
        %v871 = vsel %vm551, 1, 0
        %v872 = vsel %vm552, 1, 0
        %v873 = vsel %vm553, 1, 0
        %v874 = vsel %vm554, 1, 0
        %v875 = vsel %vm555, 1, 0
        %v876 = vsel %vm556, 1, 0
        %v877 = vsel %vm557, 1, 0
        %v878 = vsel %vm558, 1, 0
        %v879 = vsel %vm559, 1, 0
        %v880 = vsel %vm560, 1, 0
        %v881 = vsel %vm561, 1, 0
        %v882 = vsel %vm562, 1, 0
        %v883 = vsel %vm563, 1, 0
        %v884 = vsel %vm564, 1, 0
        %v885 = vsel %vm565, 1, 0
        %v886 = vsel %vm566, 1, 0
        %v887 = vsel %vm567, 1, 0
        %v888 = vsel %vm568, 1, 0
        %v889 = vsel %vm569, 1, 0
        %v890 = vsel %vm570, 1, 0
        %v891 = vsel %vm571, 1, 0
        %v892 = vsel %vm572, 1, 0
        %v893 = vsel %vm573, 1, 0
        %v894 = vsel %vm574, 1, 0
        %v895 = vsel %vm575, 1, 0
        %v896 = vsel %vm576, 1, 0
        %v897 = vsel %vm577, 1, 0
        %v898 = vsel %vm578, 1, 0
        %v899 = vsel %vm579, 1, 0
        %v900 = vsel %vm580, 1, 0
        %v901 = vsel %vm581, 1, 0
        %v902 = vsel %vm582, 1, 0
        %v903 = vsel %vm583, 1, 0
        %v904 = vsel %vm584, 1, 0
        %v905 = vsel %vm585, 1, 0
        %v906 = vsel %vm586, 1, 0
        %v907 = vsel %vm587, 1, 0
        %v908 = vsel %vm588, 1, 0
        %v909 = vsel %vm589, 1, 0
        %v910 = vsel %vm590, 1, 0
        %v911 = vsel %vm591, 1, 0
        %v912 = vsel %vm592, 1, 0
        %v913 = vsel %vm593, 1, 0
        %v914 = vsel %vm594, 1, 0
        %v915 = vsel %vm595, 1, 0
        %v916 = vsel %vm596, 1, 0
        %v917 = vsel %vm597, 1, 0
        %v918 = vsel %vm598, 1, 0
        %v919 = vsel %vm599, 1, 0
        %v920 = vsel %vm600, 1, 0
        %v921 = vsel %vm601, 1, 0
        %v922 = vsel %vm602, 1, 0
        %v923 = vsel %vm603, 1, 0
        %v924 = vsel %vm604, 1, 0
        %v925 = vsel %vm605, 1, 0
        %v926 = vsel %vm606, 1, 0
        %v927 = vsel %vm607, 1, 0
        %v928 = vsel %vm608, 1, 0
        %v929 = vsel %vm609, 1, 0
        %v930 = vsel %vm610, 1, 0
        %v931 = vsel %vm611, 1, 0
        %v932 = vsel %vm612, 1, 0
        %v933 = vsel %vm613, 1, 0
        %v934 = vsel %vm614, 1, 0
        %v935 = vsel %vm615, 1, 0
        %v936 = vsel %vm616, 1, 0
        %v937 = vsel %vm617, 1, 0
        %v938 = vsel %vm618, 1, 0
        %v939 = vsel %vm619, 1, 0
        %v940 = vsel %vm620, 1, 0
        %v941 = vsel %vm621, 1, 0
        %v942 = vsel %vm622, 1, 0
        %v943 = vsel %vm623, 1, 0
        %v944 = vsel %vm624, 1, 0
        %v945 = vsel %vm625, 1, 0
        %v946 = vsel %vm626, 1, 0
        %v947 = vsel %vm627, 1, 0
        %v948 = vsel %vm628, 1, 0
        %v949 = vsel %vm629, 1, 0
        %v950 = vsel %vm630, 1, 0
        %v951 = vsel %vm631, 1, 0
        %v952 = vsel %vm632, 1, 0
        %v953 = vsel %vm633, 1, 0
        %v954 = vsel %vm634, 1, 0
        %v955 = vsel %vm635, 1, 0
        %v956 = vsel %vm636, 1, 0
        %v957 = vsel %vm637, 1, 0
        %v958 = vsel %vm638, 1, 0
        %v959 = vsel %vm639, 1, 0
        %v960 = vsel %vm640, 1, 0
        %v961 = vsel %vm641, 1, 0
        %v962 = vsel %vm642, 1, 0
        %v963 = vsel %vm643, 1, 0
        %v964 = vsel %vm644, 1, 0
        %v965 = vsel %vm645, 1, 0
        %v966 = vsel %vm646, 1, 0
        %v967 = vsel %vm647, 1, 0
        %v968 = vsel %vm648, 1, 0
        %v969 = vsel %vm649, 1, 0
        %v970 = vsel %vm650, 1, 0
        %v971 = vsel %vm651, 1, 0
        %v972 = vsel %vm652, 1, 0
        %v973 = vsel %vm653, 1, 0
        %v974 = vsel %vm654, 1, 0
        %v975 = vsel %vm655, 1, 0
        %v976 = vsel %vm656, 1, 0
        %v977 = vsel %vm657, 1, 0
        %v978 = vsel %vm658, 1, 0
        %v979 = vsel %vm659, 1, 0
        %v980 = vsel %vm660, 1, 0
        %v981 = vsel %vm661, 1, 0
        %v982 = vsel %vm662, 1, 0
        %v983 = vsel %vm663, 1, 0
        %v984 = vsel %vm664, 1, 0
        %v985 = vsel %vm665, 1, 0
        %v986 = vsel %vm666, 1, 0
        %v987 = vsel %vm667, 1, 0
        %v988 = vsel %vm668, 1, 0
        %v989 = vsel %vm669, 1, 0
        %v990 = vsel %vm670, 1, 0
        %v991 = vsel %vm671, 1, 0
        %v992 = vsel %vm672, 1, 0
        %v993 = vsel %vm673, 1, 0
        %v994 = vsel %vm674, 1, 0
        %v995 = vsel %vm675, 1, 0
        %v996 = vsel %vm676, 1, 0
        %v997 = vsel %vm677, 1, 0
        %v998 = vsel %vm678, 1, 0
        %v999 = vsel %vm679, 1, 0
        %v1000 = vsel %vm680, 1, 0
        %v1001 = vsel %vm681, 1, 0
        %v1002 = vsel %vm682, 1, 0
        %v1003 = vsel %vm683, 1, 0
        %v1004 = vsel %vm684, 1, 0
        %v1005 = vsel %vm685, 1, 0
        %v1006 = vsel %vm686, 1, 0
        %v1007 = vsel %vm687, 1, 0
        %v1008 = vsel %vm688, 1, 0
        %v1009 = vsel %vm689, 1, 0
        %v1010 = vsel %vm690, 1, 0
        %v1011 = vsel %vm691, 1, 0
        %v1012 = vsel %vm692, 1, 0
        %v1013 = vsel %vm693, 1, 0
        %v1014 = vsel %vm694, 1, 0
        %v1015 = vsel %vm695, 1, 0
        %v1016 = vsel %vm696, 1, 0
        %v1017 = vsel %vm697, 1, 0
        %v1018 = vsel %vm698, 1, 0
        %v1019 = vsel %vm699, 1, 0
        %v1020 = vsel %vm700, 1, 0
        %v1021 = vsel %vm701, 1, 0
        %v1022 = vsel %vm702, 1, 0
        %v1023 = vsel %vm703, 1, 0
        %v1024 = vsel %vm704, 1, 0
        %v1025 = vsel %vm705, 1, 0
        %v1026 = vsel %vm706, 1, 0
        %v1027 = vsel %vm707, 1, 0
        %v1028 = vsel %vm708, 1, 0
        %v1029 = vsel %vm709, 1, 0
        %v1030 = vsel %vm710, 1, 0
        %v1031 = vsel %vm711, 1, 0
        %v1032 = vsel %vm712, 1, 0
        %v1033 = vsel %vm713, 1, 0
        %v1034 = vsel %vm714, 1, 0
        %v1035 = vsel %vm715, 1, 0
        %v1036 = vsel %vm716, 1, 0
        %v1037 = vsel %vm717, 1, 0
        %v1038 = vsel %vm718, 1, 0
        %v1039 = vsel %vm719, 1, 0
        %v1040 = vsel %vm720, 1, 0
        %v1041 = vsel %vm721, 1, 0
        %v1042 = vsel %vm722, 1, 0
        %v1043 = vsel %vm723, 1, 0
        %v1044 = vsel %vm724, 1, 0
        %v1045 = vsel %vm725, 1, 0
        %v1046 = vsel %vm726, 1, 0
        %v1047 = vsel %vm727, 1, 0
        %v1048 = vsel %vm728, 1, 0
        %v1049 = vsel %vm729, 1, 0
        %v1050 = vsel %vm730, 1, 0
        %v1051 = vsel %vm731, 1, 0
        %v1052 = vsel %vm732, 1, 0
        %v1053 = vsel %vm733, 1, 0
        %v1054 = vsel %vm734, 1, 0
        %v1055 = vsel %vm735, 1, 0
        %v1056 = vsel %vm736, 1, 0
        %v1057 = vsel %vm737, 1, 0
        %v1058 = vsel %vm738, 1, 0
        %v1059 = vsel %vm739, 1, 0
        %v1060 = vsel %vm740, 1, 0
        %v1061 = vsel %vm741, 1, 0
        %v1062 = vsel %vm742, 1, 0
        %v1063 = vsel %vm743, 1, 0
        %v1064 = vsel %vm744, 1, 0
        %v1065 = vsel %vm745, 1, 0
        %v1066 = vsel %vm746, 1, 0
        %v1067 = vsel %vm747, 1, 0
        %v1068 = vsel %vm748, 1, 0
        %v1069 = vsel %vm749, 1, 0
        %v1070 = vsel %vm750, 1, 0
        %v1071 = vsel %vm751, 1, 0
        %v1072 = vsel %vm752, 1, 0
        %v1073 = vsel %vm753, 1, 0
        %v1074 = vsel %vm754, 1, 0
        %v1075 = vsel %vm755, 1, 0
        %v1076 = vsel %vm756, 1, 0
        %v1077 = vsel %vm757, 1, 0
        %v1078 = vsel %vm758, 1, 0
        %v1079 = vsel %vm759, 1, 0
        %v1080 = vsel %vm760, 1, 0
        %v1081 = vsel %vm761, 1, 0
        %v1082 = vsel %vm762, 1, 0
        %v1083 = vsel %vm763, 1, 0
        %v1084 = vsel %vm764, 1, 0
        %v1085 = vsel %vm765, 1, 0
        %v1086 = vsel %vm766, 1, 0
        %v1087 = vsel %vm767, 1, 0
        %v1088 = vsel %vm768, 1, 0
        %v1089 = vsel %vm769, 1, 0
        %v1090 = vsel %vm770, 1, 0
        %v1091 = vsel %vm771, 1, 0
        %v1092 = vsel %vm772, 1, 0
        %v1093 = vsel %vm773, 1, 0
        %v1094 = vsel %vm774, 1, 0
        %v1095 = vsel %vm775, 1, 0
        %v1096 = vsel %vm776, 1, 0
        %v1097 = vsel %vm777, 1, 0
        %v1098 = vsel %vm778, 1, 0
        %v1099 = vsel %vm779, 1, 0
        %v1100 = vsel %vm780, 1, 0
        %v1101 = vsel %vm781, 1, 0
        %v1102 = vsel %vm782, 1, 0
        %v1103 = vsel %vm783, 1, 0
        %v1104 = vsel %vm784, 1, 0
        %v1105 = vsel %vm785, 1, 0
        %v1106 = vsel %vm786, 1, 0
        %v1107 = vsel %vm787, 1, 0
        %v1108 = vsel %vm788, 1, 0
        %v1109 = vsel %vm789, 1, 0
        %v1110 = vsel %vm790, 1, 0
        %v1111 = vsel %vm791, 1, 0
        %v1112 = vsel %vm792, 1, 0
        %v1113 = vsel %vm793, 1, 0
        %vm1114 = vcmp.eq.s32.totalorder %v858, 1
        %vm1115 = vcmp.eq.s32.totalorder %v859, 1
        %vm1116 = vcmp.eq.s32.totalorder %v860, 1
        %vm1117 = vcmp.eq.s32.totalorder %v861, 1
        %vm1118 = vcmp.eq.s32.totalorder %v862, 1
        %vm1119 = vcmp.eq.s32.totalorder %v863, 1
        %vm1120 = vcmp.eq.s32.totalorder %v864, 1
        %vm1121 = vcmp.eq.s32.totalorder %v865, 1
        %vm1122 = vcmp.eq.s32.totalorder %v866, 1
        %vm1123 = vcmp.eq.s32.totalorder %v867, 1
        %vm1124 = vcmp.eq.s32.totalorder %v868, 1
        %vm1125 = vcmp.eq.s32.totalorder %v869, 1
        %vm1126 = vcmp.eq.s32.totalorder %v870, 1
        %vm1127 = vcmp.eq.s32.totalorder %v871, 1
        %vm1128 = vcmp.eq.s32.totalorder %v872, 1
        %vm1129 = vcmp.eq.s32.totalorder %v873, 1
        %vm1130 = vcmp.eq.s32.totalorder %v874, 1
        %vm1131 = vcmp.eq.s32.totalorder %v875, 1
        %vm1132 = vcmp.eq.s32.totalorder %v876, 1
        %vm1133 = vcmp.eq.s32.totalorder %v877, 1
        %vm1134 = vcmp.eq.s32.totalorder %v878, 1
        %vm1135 = vcmp.eq.s32.totalorder %v879, 1
        %vm1136 = vcmp.eq.s32.totalorder %v880, 1
        %vm1137 = vcmp.eq.s32.totalorder %v881, 1
        %vm1138 = vcmp.eq.s32.totalorder %v882, 1
        %vm1139 = vcmp.eq.s32.totalorder %v883, 1
        %vm1140 = vcmp.eq.s32.totalorder %v884, 1
        %vm1141 = vcmp.eq.s32.totalorder %v885, 1
        %vm1142 = vcmp.eq.s32.totalorder %v886, 1
        %vm1143 = vcmp.eq.s32.totalorder %v887, 1
        %vm1144 = vcmp.eq.s32.totalorder %v888, 1
        %vm1145 = vcmp.eq.s32.totalorder %v889, 1
        %vm1146 = vcmp.eq.s32.totalorder %v890, 1
        %vm1147 = vcmp.eq.s32.totalorder %v891, 1
        %vm1148 = vcmp.eq.s32.totalorder %v892, 1
        %vm1149 = vcmp.eq.s32.totalorder %v893, 1
        %vm1150 = vcmp.eq.s32.totalorder %v894, 1
        %vm1151 = vcmp.eq.s32.totalorder %v895, 1
        %vm1152 = vcmp.eq.s32.totalorder %v896, 1
        %vm1153 = vcmp.eq.s32.totalorder %v897, 1
        %vm1154 = vcmp.eq.s32.totalorder %v898, 1
        %vm1155 = vcmp.eq.s32.totalorder %v899, 1
        %vm1156 = vcmp.eq.s32.totalorder %v900, 1
        %vm1157 = vcmp.eq.s32.totalorder %v901, 1
        %vm1158 = vcmp.eq.s32.totalorder %v902, 1
        %vm1159 = vcmp.eq.s32.totalorder %v903, 1
        %vm1160 = vcmp.eq.s32.totalorder %v904, 1
        %vm1161 = vcmp.eq.s32.totalorder %v905, 1
        %vm1162 = vcmp.eq.s32.totalorder %v906, 1
        %vm1163 = vcmp.eq.s32.totalorder %v907, 1
        %vm1164 = vcmp.eq.s32.totalorder %v908, 1
        %vm1165 = vcmp.eq.s32.totalorder %v909, 1
        %vm1166 = vcmp.eq.s32.totalorder %v910, 1
        %vm1167 = vcmp.eq.s32.totalorder %v911, 1
        %vm1168 = vcmp.eq.s32.totalorder %v912, 1
        %vm1169 = vcmp.eq.s32.totalorder %v913, 1
        %vm1170 = vcmp.eq.s32.totalorder %v914, 1
        %vm1171 = vcmp.eq.s32.totalorder %v915, 1
        %vm1172 = vcmp.eq.s32.totalorder %v916, 1
        %vm1173 = vcmp.eq.s32.totalorder %v917, 1
        %vm1174 = vcmp.eq.s32.totalorder %v918, 1
        %vm1175 = vcmp.eq.s32.totalorder %v919, 1
        %vm1176 = vcmp.eq.s32.totalorder %v920, 1
        %vm1177 = vcmp.eq.s32.totalorder %v921, 1
        %vm1178 = vcmp.eq.s32.totalorder %v922, 1
        %vm1179 = vcmp.eq.s32.totalorder %v923, 1
        %vm1180 = vcmp.eq.s32.totalorder %v924, 1
        %vm1181 = vcmp.eq.s32.totalorder %v925, 1
        %vm1182 = vcmp.eq.s32.totalorder %v926, 1
        %vm1183 = vcmp.eq.s32.totalorder %v927, 1
        %vm1184 = vcmp.eq.s32.totalorder %v928, 1
        %vm1185 = vcmp.eq.s32.totalorder %v929, 1
        %vm1186 = vcmp.eq.s32.totalorder %v930, 1
        %vm1187 = vcmp.eq.s32.totalorder %v931, 1
        %vm1188 = vcmp.eq.s32.totalorder %v932, 1
        %vm1189 = vcmp.eq.s32.totalorder %v933, 1
        %vm1190 = vcmp.eq.s32.totalorder %v934, 1
        %vm1191 = vcmp.eq.s32.totalorder %v935, 1
        %vm1192 = vcmp.eq.s32.totalorder %v936, 1
        %vm1193 = vcmp.eq.s32.totalorder %v937, 1
        %vm1194 = vcmp.eq.s32.totalorder %v938, 1
        %vm1195 = vcmp.eq.s32.totalorder %v939, 1
        %vm1196 = vcmp.eq.s32.totalorder %v940, 1
        %vm1197 = vcmp.eq.s32.totalorder %v941, 1
        %vm1198 = vcmp.eq.s32.totalorder %v942, 1
        %vm1199 = vcmp.eq.s32.totalorder %v943, 1
        %vm1200 = vcmp.eq.s32.totalorder %v944, 1
        %vm1201 = vcmp.eq.s32.totalorder %v945, 1
        %vm1202 = vcmp.eq.s32.totalorder %v946, 1
        %vm1203 = vcmp.eq.s32.totalorder %v947, 1
        %vm1204 = vcmp.eq.s32.totalorder %v948, 1
        %vm1205 = vcmp.eq.s32.totalorder %v949, 1
        %vm1206 = vcmp.eq.s32.totalorder %v950, 1
        %vm1207 = vcmp.eq.s32.totalorder %v951, 1
        %vm1208 = vcmp.eq.s32.totalorder %v952, 1
        %vm1209 = vcmp.eq.s32.totalorder %v953, 1
        %vm1210 = vcmp.eq.s32.totalorder %v954, 1
        %vm1211 = vcmp.eq.s32.totalorder %v955, 1
        %vm1212 = vcmp.eq.s32.totalorder %v956, 1
        %vm1213 = vcmp.eq.s32.totalorder %v957, 1
        %vm1214 = vcmp.eq.s32.totalorder %v958, 1
        %vm1215 = vcmp.eq.s32.totalorder %v959, 1
        %vm1216 = vcmp.eq.s32.totalorder %v960, 1
        %vm1217 = vcmp.eq.s32.totalorder %v961, 1
        %vm1218 = vcmp.eq.s32.totalorder %v962, 1
        %vm1219 = vcmp.eq.s32.totalorder %v963, 1
        %vm1220 = vcmp.eq.s32.totalorder %v964, 1
        %vm1221 = vcmp.eq.s32.totalorder %v965, 1
        %vm1222 = vcmp.eq.s32.totalorder %v966, 1
        %vm1223 = vcmp.eq.s32.totalorder %v967, 1
        %vm1224 = vcmp.eq.s32.totalorder %v968, 1
        %vm1225 = vcmp.eq.s32.totalorder %v969, 1
        %vm1226 = vcmp.eq.s32.totalorder %v970, 1
        %vm1227 = vcmp.eq.s32.totalorder %v971, 1
        %vm1228 = vcmp.eq.s32.totalorder %v972, 1
        %vm1229 = vcmp.eq.s32.totalorder %v973, 1
        %vm1230 = vcmp.eq.s32.totalorder %v974, 1
        %vm1231 = vcmp.eq.s32.totalorder %v975, 1
        %vm1232 = vcmp.eq.s32.totalorder %v976, 1
        %vm1233 = vcmp.eq.s32.totalorder %v977, 1
        %vm1234 = vcmp.eq.s32.totalorder %v978, 1
        %vm1235 = vcmp.eq.s32.totalorder %v979, 1
        %vm1236 = vcmp.eq.s32.totalorder %v980, 1
        %vm1237 = vcmp.eq.s32.totalorder %v981, 1
        %vm1238 = vcmp.eq.s32.totalorder %v982, 1
        %vm1239 = vcmp.eq.s32.totalorder %v983, 1
        %vm1240 = vcmp.eq.s32.totalorder %v984, 1
        %vm1241 = vcmp.eq.s32.totalorder %v985, 1
        %vm1242 = vcmp.eq.s32.totalorder %v986, 1
        %vm1243 = vcmp.eq.s32.totalorder %v987, 1
        %vm1244 = vcmp.eq.s32.totalorder %v988, 1
        %vm1245 = vcmp.eq.s32.totalorder %v989, 1
        %vm1246 = vcmp.eq.s32.totalorder %v990, 1
        %vm1247 = vcmp.eq.s32.totalorder %v991, 1
        %vm1248 = vcmp.eq.s32.totalorder %v992, 1
        %vm1249 = vcmp.eq.s32.totalorder %v993, 1
        %vm1250 = vcmp.eq.s32.totalorder %v994, 1
        %vm1251 = vcmp.eq.s32.totalorder %v995, 1
        %vm1252 = vcmp.eq.s32.totalorder %v996, 1
        %vm1253 = vcmp.eq.s32.totalorder %v997, 1
        %vm1254 = vcmp.eq.s32.totalorder %v998, 1
        %vm1255 = vcmp.eq.s32.totalorder %v999, 1
        %vm1256 = vcmp.eq.s32.totalorder %v1000, 1
        %vm1257 = vcmp.eq.s32.totalorder %v1001, 1
        %vm1258 = vcmp.eq.s32.totalorder %v1002, 1
        %vm1259 = vcmp.eq.s32.totalorder %v1003, 1
        %vm1260 = vcmp.eq.s32.totalorder %v1004, 1
        %vm1261 = vcmp.eq.s32.totalorder %v1005, 1
        %vm1262 = vcmp.eq.s32.totalorder %v1006, 1
        %vm1263 = vcmp.eq.s32.totalorder %v1007, 1
        %vm1264 = vcmp.eq.s32.totalorder %v1008, 1
        %vm1265 = vcmp.eq.s32.totalorder %v1009, 1
        %vm1266 = vcmp.eq.s32.totalorder %v1010, 1
        %vm1267 = vcmp.eq.s32.totalorder %v1011, 1
        %vm1268 = vcmp.eq.s32.totalorder %v1012, 1
        %vm1269 = vcmp.eq.s32.totalorder %v1013, 1
        %vm1270 = vcmp.eq.s32.totalorder %v1014, 1
        %vm1271 = vcmp.eq.s32.totalorder %v1015, 1
        %vm1272 = vcmp.eq.s32.totalorder %v1016, 1
        %vm1273 = vcmp.eq.s32.totalorder %v1017, 1
        %vm1274 = vcmp.eq.s32.totalorder %v1018, 1
        %vm1275 = vcmp.eq.s32.totalorder %v1019, 1
        %vm1276 = vcmp.eq.s32.totalorder %v1020, 1
        %vm1277 = vcmp.eq.s32.totalorder %v1021, 1
        %vm1278 = vcmp.eq.s32.totalorder %v1022, 1
        %vm1279 = vcmp.eq.s32.totalorder %v1023, 1
        %vm1280 = vcmp.eq.s32.totalorder %v1024, 1
        %vm1281 = vcmp.eq.s32.totalorder %v1025, 1
        %vm1282 = vcmp.eq.s32.totalorder %v1026, 1
        %vm1283 = vcmp.eq.s32.totalorder %v1027, 1
        %vm1284 = vcmp.eq.s32.totalorder %v1028, 1
        %vm1285 = vcmp.eq.s32.totalorder %v1029, 1
        %vm1286 = vcmp.eq.s32.totalorder %v1030, 1
        %vm1287 = vcmp.eq.s32.totalorder %v1031, 1
        %vm1288 = vcmp.eq.s32.totalorder %v1032, 1
        %vm1289 = vcmp.eq.s32.totalorder %v1033, 1
        %vm1290 = vcmp.eq.s32.totalorder %v1034, 1
        %vm1291 = vcmp.eq.s32.totalorder %v1035, 1
        %vm1292 = vcmp.eq.s32.totalorder %v1036, 1
        %vm1293 = vcmp.eq.s32.totalorder %v1037, 1
        %vm1294 = vcmp.eq.s32.totalorder %v1038, 1
        %vm1295 = vcmp.eq.s32.totalorder %v1039, 1
        %vm1296 = vcmp.eq.s32.totalorder %v1040, 1
        %vm1297 = vcmp.eq.s32.totalorder %v1041, 1
        %vm1298 = vcmp.eq.s32.totalorder %v1042, 1
        %vm1299 = vcmp.eq.s32.totalorder %v1043, 1
        %vm1300 = vcmp.eq.s32.totalorder %v1044, 1
        %vm1301 = vcmp.eq.s32.totalorder %v1045, 1
        %vm1302 = vcmp.eq.s32.totalorder %v1046, 1
        %vm1303 = vcmp.eq.s32.totalorder %v1047, 1
        %vm1304 = vcmp.eq.s32.totalorder %v1048, 1
        %vm1305 = vcmp.eq.s32.totalorder %v1049, 1
        %vm1306 = vcmp.eq.s32.totalorder %v1050, 1
        %vm1307 = vcmp.eq.s32.totalorder %v1051, 1
        %vm1308 = vcmp.eq.s32.totalorder %v1052, 1
        %vm1309 = vcmp.eq.s32.totalorder %v1053, 1
        %vm1310 = vcmp.eq.s32.totalorder %v1054, 1
        %vm1311 = vcmp.eq.s32.totalorder %v1055, 1
        %vm1312 = vcmp.eq.s32.totalorder %v1056, 1
        %vm1313 = vcmp.eq.s32.totalorder %v1057, 1
        %vm1314 = vcmp.eq.s32.totalorder %v1058, 1
        %vm1315 = vcmp.eq.s32.totalorder %v1059, 1
        %vm1316 = vcmp.eq.s32.totalorder %v1060, 1
        %vm1317 = vcmp.eq.s32.totalorder %v1061, 1
        %vm1318 = vcmp.eq.s32.totalorder %v1062, 1
        %vm1319 = vcmp.eq.s32.totalorder %v1063, 1
        %vm1320 = vcmp.eq.s32.totalorder %v1064, 1
        %vm1321 = vcmp.eq.s32.totalorder %v1065, 1
        %vm1322 = vcmp.eq.s32.totalorder %v1066, 1
        %vm1323 = vcmp.eq.s32.totalorder %v1067, 1
        %vm1324 = vcmp.eq.s32.totalorder %v1068, 1
        %vm1325 = vcmp.eq.s32.totalorder %v1069, 1
        %vm1326 = vcmp.eq.s32.totalorder %v1070, 1
        %vm1327 = vcmp.eq.s32.totalorder %v1071, 1
        %vm1328 = vcmp.eq.s32.totalorder %v1072, 1
        %vm1329 = vcmp.eq.s32.totalorder %v1073, 1
        %vm1330 = vcmp.eq.s32.totalorder %v1074, 1
        %vm1331 = vcmp.eq.s32.totalorder %v1075, 1
        %vm1332 = vcmp.eq.s32.totalorder %v1076, 1
        %vm1333 = vcmp.eq.s32.totalorder %v1077, 1
        %vm1334 = vcmp.eq.s32.totalorder %v1078, 1
        %vm1335 = vcmp.eq.s32.totalorder %v1079, 1
        %vm1336 = vcmp.eq.s32.totalorder %v1080, 1
        %vm1337 = vcmp.eq.s32.totalorder %v1081, 1
        %vm1338 = vcmp.eq.s32.totalorder %v1082, 1
        %vm1339 = vcmp.eq.s32.totalorder %v1083, 1
        %vm1340 = vcmp.eq.s32.totalorder %v1084, 1
        %vm1341 = vcmp.eq.s32.totalorder %v1085, 1
        %vm1342 = vcmp.eq.s32.totalorder %v1086, 1
        %vm1343 = vcmp.eq.s32.totalorder %v1087, 1
        %vm1344 = vcmp.eq.s32.totalorder %v1088, 1
        %vm1345 = vcmp.eq.s32.totalorder %v1089, 1
        %vm1346 = vcmp.eq.s32.totalorder %v1090, 1
        %vm1347 = vcmp.eq.s32.totalorder %v1091, 1
        %vm1348 = vcmp.eq.s32.totalorder %v1092, 1
        %vm1349 = vcmp.eq.s32.totalorder %v1093, 1
        %vm1350 = vcmp.eq.s32.totalorder %v1094, 1
        %vm1351 = vcmp.eq.s32.totalorder %v1095, 1
        %vm1352 = vcmp.eq.s32.totalorder %v1096, 1
        %vm1353 = vcmp.eq.s32.totalorder %v1097, 1
        %vm1354 = vcmp.eq.s32.totalorder %v1098, 1
        %vm1355 = vcmp.eq.s32.totalorder %v1099, 1
        %vm1356 = vcmp.eq.s32.totalorder %v1100, 1
        %vm1357 = vcmp.eq.s32.totalorder %v1101, 1
        %vm1358 = vcmp.eq.s32.totalorder %v1102, 1
        %vm1359 = vcmp.eq.s32.totalorder %v1103, 1
        %vm1360 = vcmp.eq.s32.totalorder %v1104, 1
        %vm1361 = vcmp.eq.s32.totalorder %v1105, 1
        %vm1362 = vcmp.eq.s32.totalorder %v1106, 1
        %vm1363 = vcmp.eq.s32.totalorder %v1107, 1
        %vm1364 = vcmp.eq.s32.totalorder %v1108, 1
        %vm1365 = vcmp.eq.s32.totalorder %v1109, 1
        %vm1366 = vcmp.eq.s32.totalorder %v1110, 1
        %vm1367 = vcmp.eq.s32.totalorder %v1111, 1
        %vm1368 = vcmp.eq.s32.totalorder %v1112, 1
        %vm1369 = vcmp.eq.s32.totalorder %v1113, 1
        %1434 = vst [vmem:[#allocation1] ss:$4 sm:$0xff] %v794
        %s1435 = scalar_lea.vmem [#allocation1], 32
        %1436 = vst [vmem:[%s1435] ss:$4 sm:$0xff] %v795
        %v1437 = vld.sshfl [vmem:[#allocation1] sm:$0xff pattern:$0x73625140]
        %v1438 = vld.sshfl [vmem:[#allocation1 + $0x8] sm:$0xff pattern:$0x73625140]
        %v1439 = vld.sshfl [vmem:[#allocation1 + $0x10] sm:$0xff pattern:$0x73625140]
        %v1440 = vld.sshfl [vmem:[#allocation1 + $0x18] sm:$0xff pattern:$0x73625140]
        %v1441 = vld.sshfl [vmem:[#allocation1 + $0x20] sm:$0xff pattern:$0x73625140]
        %v1442 = vld.sshfl [vmem:[#allocation1 + $0x28] sm:$0xff pattern:$0x73625140]
        %v1443 = vld.sshfl [vmem:[#allocation1 + $0x30] sm:$0xff pattern:$0x73625140]
        %v1444 = vld.sshfl [vmem:[#allocation1 + $0x38] sm:$0xff pattern:$0x73625140]
        %1445 = vst [vmem:[#allocation1] ss:$4 sm:$0xff] %v796
        %1446 = vst [vmem:[%s1435] ss:$4 sm:$0xff] %v797
        %v1447 = vld.sshfl [vmem:[#allocation1] sm:$0xff pattern:$0x73625140]
        %v1448 = vld.sshfl [vmem:[#allocation1 + $0x8] sm:$0xff pattern:$0x73625140]
        %v1449 = vld.sshfl [vmem:[#allocation1 + $0x10] sm:$0xff pattern:$0x73625140]
        %v1450 = vld.sshfl [vmem:[#allocation1 + $0x18] sm:$0xff pattern:$0x73625140]
        %v1451 = vld.sshfl [vmem:[#allocation1 + $0x20] sm:$0xff pattern:$0x73625140]
        %v1452 = vld.sshfl [vmem:[#allocation1 + $0x28] sm:$0xff pattern:$0x73625140]
        %v1453 = vld.sshfl [vmem:[#allocation1 + $0x30] sm:$0xff pattern:$0x73625140]
        %v1454 = vld.sshfl [vmem:[#allocation1 + $0x38] sm:$0xff pattern:$0x73625140]
        %1455 = vst [vmem:[#allocation1] ss:$4 sm:$0xff] %v798
        %1456 = vst [vmem:[%s1435] ss:$4 sm:$0xff] %v799
        %v1457 = vld.sshfl [vmem:[#allocation1] sm:$0xff pattern:$0x73625140]
        %v1458 = vld.sshfl [vmem:[#allocation1 + $0x8] sm:$0xff pattern:$0x73625140]
        %v1459 = vld.sshfl [vmem:[#allocation1 + $0x10] sm:$0xff pattern:$0x73625140]
        %v1460 = vld.sshfl [vmem:[#allocation1 + $0x18] sm:$0xff pattern:$0x73625140]
        %v1461 = vld.sshfl [vmem:[#allocation1 + $0x20] sm:$0xff pattern:$0x73625140]
        %v1462 = vld.sshfl [vmem:[#allocation1 + $0x28] sm:$0xff pattern:$0x73625140]
        %v1463 = vld.sshfl [vmem:[#allocation1 + $0x30] sm:$0xff pattern:$0x73625140]
        %v1464 = vld.sshfl [vmem:[#allocation1 + $0x38] sm:$0xff pattern:$0x73625140]
        %1465 = vst [vmem:[#allocation1] ss:$4 sm:$0xff] %v800
        %1466 = vst [vmem:[%s1435] ss:$4 sm:$0xff] %v801
        %v1467 = vld.sshfl [vmem:[#allocation1] sm:$0xff pattern:$0x73625140]
        %v1468 = vld.sshfl [vmem:[#allocation1 + $0x8] sm:$0xff pattern:$0x73625140]
        %v1469 = vld.sshfl [vmem:[#allocation1 + $0x10] sm:$0xff pattern:$0x73625140]
        %v1470 = vld.sshfl [vmem:[#allocation1 + $0x18] sm:$0xff pattern:$0x73625140]
        %v1471 = vld.sshfl [vmem:[#allocation1 + $0x20] sm:$0xff pattern:$0x73625140]
        %v1472 = vld.sshfl [vmem:[#allocation1 + $0x28] sm:$0xff pattern:$0x73625140]
        %v1473 = vld.sshfl [vmem:[#allocation1 + $0x30] sm:$0xff pattern:$0x73625140]
        %v1474 = vld.sshfl [vmem:[#allocation1 + $0x38] sm:$0xff pattern:$0x73625140]
        %1475 = vst [vmem:[#allocation1] ss:$4 sm:$0xff] %v802
        %1476 = vst [vmem:[%s1435] ss:$4 sm:$0xff] %v803
        %v1477 = vld.sshfl [vmem:[#allocation1] sm:$0xff pattern:$0x73625140]
        %v1478 = vld.sshfl [vmem:[#allocation1 + $0x8] sm:$0xff pattern:$0x73625140]
        %v1479 = vld.sshfl [vmem:[#allocation1 + $0x10] sm:$0xff pattern:$0x73625140]
        %v1480 = vld.sshfl [vmem:[#allocation1 + $0x18] sm:$0xff pattern:$0x73625140]
        %v1481 = vld.sshfl [vmem:[#allocation1 + $0x20] sm:$0xff pattern:$0x73625140]
        %v1482 = vld.sshfl [vmem:[#allocation1 + $0x28] sm:$0xff pattern:$0x73625140]
        %v1483 = vld.sshfl [vmem:[#allocation1 + $0x30] sm:$0xff pattern:$0x73625140]
        %v1484 = vld.sshfl [vmem:[#allocation1 + $0x38] sm:$0xff pattern:$0x73625140]
        %1485 = vst [vmem:[#allocation1] ss:$4 sm:$0xff] %v804
        %1486 = vst [vmem:[%s1435] ss:$4 sm:$0xff] %v805
        %v1487 = vld.sshfl [vmem:[#allocation1] sm:$0xff pattern:$0x73625140]
        %v1488 = vld.sshfl [vmem:[#allocation1 + $0x8] sm:$0xff pattern:$0x73625140]
        %v1489 = vld.sshfl [vmem:[#allocation1 + $0x10] sm:$0xff pattern:$0x73625140]
        %v1490 = vld.sshfl [vmem:[#allocation1 + $0x18] sm:$0xff pattern:$0x73625140]
        %v1491 = vld.sshfl [vmem:[#allocation1 + $0x20] sm:$0xff pattern:$0x73625140]
        %v1492 = vld.sshfl [vmem:[#allocation1 + $0x28] sm:$0xff pattern:$0x73625140]
        %v1493 = vld.sshfl [vmem:[#allocation1 + $0x30] sm:$0xff pattern:$0x73625140]
        %v1494 = vld.sshfl [vmem:[#allocation1 + $0x38] sm:$0xff pattern:$0x73625140]
        %1495 = vst [vmem:[#allocation1] ss:$4 sm:$0xff] %v806
        %1496 = vst [vmem:[%s1435] ss:$4 sm:$0xff] %v807
        %v1497 = vld.sshfl [vmem:[#allocation1] sm:$0xff pattern:$0x73625140]
        %v1498 = vld.sshfl [vmem:[#allocation1 + $0x8] sm:$0xff pattern:$0x73625140]
        %v1499 = vld.sshfl [vmem:[#allocation1 + $0x10] sm:$0xff pattern:$0x73625140]
        %v1500 = vld.sshfl [vmem:[#allocation1 + $0x18] sm:$0xff pattern:$0x73625140]
        %v1501 = vld.sshfl [vmem:[#allocation1 + $0x20] sm:$0xff pattern:$0x73625140]
        %v1502 = vld.sshfl [vmem:[#allocation1 + $0x28] sm:$0xff pattern:$0x73625140]
        %v1503 = vld.sshfl [vmem:[#allocation1 + $0x30] sm:$0xff pattern:$0x73625140]
        %v1504 = vld.sshfl [vmem:[#allocation1 + $0x38] sm:$0xff pattern:$0x73625140]
        %1505 = vst [vmem:[#allocation1] ss:$4 sm:$0xff] %v808
        %1506 = vst [vmem:[%s1435] ss:$4 sm:$0xff] %v809
        %v1507 = vld.sshfl [vmem:[#allocation1] sm:$0xff pattern:$0x73625140]
        %v1508 = vld.sshfl [vmem:[#allocation1 + $0x8] sm:$0xff pattern:$0x73625140]
        %v1509 = vld.sshfl [vmem:[#allocation1 + $0x10] sm:$0xff pattern:$0x73625140]
        %v1510 = vld.sshfl [vmem:[#allocation1 + $0x18] sm:$0xff pattern:$0x73625140]
        %v1511 = vld.sshfl [vmem:[#allocation1 + $0x20] sm:$0xff pattern:$0x73625140]
        %v1512 = vld.sshfl [vmem:[#allocation1 + $0x28] sm:$0xff pattern:$0x73625140]
        %v1513 = vld.sshfl [vmem:[#allocation1 + $0x30] sm:$0xff pattern:$0x73625140]
        %v1514 = vld.sshfl [vmem:[#allocation1 + $0x38] sm:$0xff pattern:$0x73625140]
        %1515 = vst [vmem:[#allocation1] ss:$4 sm:$0xff] %v810
        %1516 = vst [vmem:[%s1435] ss:$4 sm:$0xff] %v811
        %v1517 = vld.sshfl [vmem:[#allocation1] sm:$0xff pattern:$0x73625140]
        %v1518 = vld.sshfl [vmem:[#allocation1 + $0x8] sm:$0xff pattern:$0x73625140]
        %v1519 = vld.sshfl [vmem:[#allocation1 + $0x10] sm:$0xff pattern:$0x73625140]
        %v1520 = vld.sshfl [vmem:[#allocation1 + $0x18] sm:$0xff pattern:$0x73625140]
        %v1521 = vld.sshfl [vmem:[#allocation1 + $0x20] sm:$0xff pattern:$0x73625140]
        %v1522 = vld.sshfl [vmem:[#allocation1 + $0x28] sm:$0xff pattern:$0x73625140]
        %v1523 = vld.sshfl [vmem:[#allocation1 + $0x30] sm:$0xff pattern:$0x73625140]
        %v1524 = vld.sshfl [vmem:[#allocation1 + $0x38] sm:$0xff pattern:$0x73625140]
        %1525 = vst [vmem:[#allocation1] ss:$4 sm:$0xff] %v812
        %1526 = vst [vmem:[%s1435] ss:$4 sm:$0xff] %v813
        %v1527 = vld.sshfl [vmem:[#allocation1] sm:$0xff pattern:$0x73625140]
        %v1528 = vld.sshfl [vmem:[#allocation1 + $0x8] sm:$0xff pattern:$0x73625140]
        %v1529 = vld.sshfl [vmem:[#allocation1 + $0x10] sm:$0xff pattern:$0x73625140]
        %v1530 = vld.sshfl [vmem:[#allocation1 + $0x18] sm:$0xff pattern:$0x73625140]
        %v1531 = vld.sshfl [vmem:[#allocation1 + $0x20] sm:$0xff pattern:$0x73625140]
        %v1532 = vld.sshfl [vmem:[#allocation1 + $0x28] sm:$0xff pattern:$0x73625140]
        %v1533 = vld.sshfl [vmem:[#allocation1 + $0x30] sm:$0xff pattern:$0x73625140]
        %v1534 = vld.sshfl [vmem:[#allocation1 + $0x38] sm:$0xff pattern:$0x73625140]
        %1535 = vst [vmem:[#allocation1] ss:$4 sm:$0xff] %v814
        %1536 = vst [vmem:[%s1435] ss:$4 sm:$0xff] %v815
        %v1537 = vld.sshfl [vmem:[#allocation1] sm:$0xff pattern:$0x73625140]
        %v1538 = vld.sshfl [vmem:[#allocation1 + $0x8] sm:$0xff pattern:$0x73625140]
        %v1539 = vld.sshfl [vmem:[#allocation1 + $0x10] sm:$0xff pattern:$0x73625140]
        %v1540 = vld.sshfl [vmem:[#allocation1 + $0x18] sm:$0xff pattern:$0x73625140]
        %v1541 = vld.sshfl [vmem:[#allocation1 + $0x20] sm:$0xff pattern:$0x73625140]
        %v1542 = vld.sshfl [vmem:[#allocation1 + $0x28] sm:$0xff pattern:$0x73625140]
        %v1543 = vld.sshfl [vmem:[#allocation1 + $0x30] sm:$0xff pattern:$0x73625140]
        %v1544 = vld.sshfl [vmem:[#allocation1 + $0x38] sm:$0xff pattern:$0x73625140]
        %1545 = vst [vmem:[#allocation1] ss:$4 sm:$0xff] %v816
        %1546 = vst [vmem:[%s1435] ss:$4 sm:$0xff] %v817
        %v1547 = vld.sshfl [vmem:[#allocation1] sm:$0xff pattern:$0x73625140]
        %v1548 = vld.sshfl [vmem:[#allocation1 + $0x8] sm:$0xff pattern:$0x73625140]
        %v1549 = vld.sshfl [vmem:[#allocation1 + $0x10] sm:$0xff pattern:$0x73625140]
        %v1550 = vld.sshfl [vmem:[#allocation1 + $0x18] sm:$0xff pattern:$0x73625140]
        %v1551 = vld.sshfl [vmem:[#allocation1 + $0x20] sm:$0xff pattern:$0x73625140]
        %v1552 = vld.sshfl [vmem:[#allocation1 + $0x28] sm:$0xff pattern:$0x73625140]
        %v1553 = vld.sshfl [vmem:[#allocation1 + $0x30] sm:$0xff pattern:$0x73625140]
        %v1554 = vld.sshfl [vmem:[#allocation1 + $0x38] sm:$0xff pattern:$0x73625140]
        %1555 = vst [vmem:[#allocation1] ss:$4 sm:$0xff] %v818
        %1556 = vst [vmem:[%s1435] ss:$4 sm:$0xff] %v819
        %v1557 = vld.sshfl [vmem:[#allocation1] sm:$0xff pattern:$0x73625140]
        %v1558 = vld.sshfl [vmem:[#allocation1 + $0x8] sm:$0xff pattern:$0x73625140]
        %v1559 = vld.sshfl [vmem:[#allocation1 + $0x10] sm:$0xff pattern:$0x73625140]
        %v1560 = vld.sshfl [vmem:[#allocation1 + $0x18] sm:$0xff pattern:$0x73625140]
        %v1561 = vld.sshfl [vmem:[#allocation1 + $0x20] sm:$0xff pattern:$0x73625140]
        %v1562 = vld.sshfl [vmem:[#allocation1 + $0x28] sm:$0xff pattern:$0x73625140]
        %v1563 = vld.sshfl [vmem:[#allocation1 + $0x30] sm:$0xff pattern:$0x73625140]
        %v1564 = vld.sshfl [vmem:[#allocation1 + $0x38] sm:$0xff pattern:$0x73625140]
        %1565 = vst [vmem:[#allocation1] ss:$4 sm:$0xff] %v820
        %1566 = vst [vmem:[%s1435] ss:$4 sm:$0xff] %v821
        %v1567 = vld.sshfl [vmem:[#allocation1] sm:$0xff pattern:$0x73625140]
        %v1568 = vld.sshfl [vmem:[#allocation1 + $0x8] sm:$0xff pattern:$0x73625140]
        %v1569 = vld.sshfl [vmem:[#allocation1 + $0x10] sm:$0xff pattern:$0x73625140]
        %v1570 = vld.sshfl [vmem:[#allocation1 + $0x18] sm:$0xff pattern:$0x73625140]
        %v1571 = vld.sshfl [vmem:[#allocation1 + $0x20] sm:$0xff pattern:$0x73625140]
        %v1572 = vld.sshfl [vmem:[#allocation1 + $0x28] sm:$0xff pattern:$0x73625140]
        %v1573 = vld.sshfl [vmem:[#allocation1 + $0x30] sm:$0xff pattern:$0x73625140]
        %v1574 = vld.sshfl [vmem:[#allocation1 + $0x38] sm:$0xff pattern:$0x73625140]
        %1575 = vst [vmem:[#allocation1] ss:$4 sm:$0xff] %v822
        %1576 = vst [vmem:[%s1435] ss:$4 sm:$0xff] %v823
        %v1577 = vld.sshfl [vmem:[#allocation1] sm:$0xff pattern:$0x73625140]
        %v1578 = vld.sshfl [vmem:[#allocation1 + $0x8] sm:$0xff pattern:$0x73625140]
        %v1579 = vld.sshfl [vmem:[#allocation1 + $0x10] sm:$0xff pattern:$0x73625140]
        %v1580 = vld.sshfl [vmem:[#allocation1 + $0x18] sm:$0xff pattern:$0x73625140]
        %v1581 = vld.sshfl [vmem:[#allocation1 + $0x20] sm:$0xff pattern:$0x73625140]
        %v1582 = vld.sshfl [vmem:[#allocation1 + $0x28] sm:$0xff pattern:$0x73625140]
        %v1583 = vld.sshfl [vmem:[#allocation1 + $0x30] sm:$0xff pattern:$0x73625140]
        %v1584 = vld.sshfl [vmem:[#allocation1 + $0x38] sm:$0xff pattern:$0x73625140]
        %1585 = vst [vmem:[#allocation1] ss:$4 sm:$0xff] %v824
        %1586 = vst [vmem:[%s1435] ss:$4 sm:$0xff] %v825
        %v1587 = vld.sshfl [vmem:[#allocation1] sm:$0xff pattern:$0x73625140]
        %v1588 = vld.sshfl [vmem:[#allocation1 + $0x8] sm:$0xff pattern:$0x73625140]
        %v1589 = vld.sshfl [vmem:[#allocation1 + $0x10] sm:$0xff pattern:$0x73625140]
        %v1590 = vld.sshfl [vmem:[#allocation1 + $0x18] sm:$0xff pattern:$0x73625140]
        %v1591 = vld.sshfl [vmem:[#allocation1 + $0x20] sm:$0xff pattern:$0x73625140]
        %v1592 = vld.sshfl [vmem:[#allocation1 + $0x28] sm:$0xff pattern:$0x73625140]
        %v1593 = vld.sshfl [vmem:[#allocation1 + $0x30] sm:$0xff pattern:$0x73625140]
        %v1594 = vld.sshfl [vmem:[#allocation1 + $0x38] sm:$0xff pattern:$0x73625140]
        %1595 = vst [vmem:[#allocation1] ss:$4 sm:$0xff] %v826
        %1596 = vst [vmem:[%s1435] ss:$4 sm:$0xff] %v827
        %v1597 = vld.sshfl [vmem:[#allocation1] sm:$0xff pattern:$0x73625140]
        %v1598 = vld.sshfl [vmem:[#allocation1 + $0x8] sm:$0xff pattern:$0x73625140]
        %v1599 = vld.sshfl [vmem:[#allocation1 + $0x10] sm:$0xff pattern:$0x73625140]
        %v1600 = vld.sshfl [vmem:[#allocation1 + $0x18] sm:$0xff pattern:$0x73625140]
        %v1601 = vld.sshfl [vmem:[#allocation1 + $0x20] sm:$0xff pattern:$0x73625140]
        %v1602 = vld.sshfl [vmem:[#allocation1 + $0x28] sm:$0xff pattern:$0x73625140]
        %v1603 = vld.sshfl [vmem:[#allocation1 + $0x30] sm:$0xff pattern:$0x73625140]
        %v1604 = vld.sshfl [vmem:[#allocation1 + $0x38] sm:$0xff pattern:$0x73625140]
        %1605 = vst [vmem:[#allocation1] ss:$4 sm:$0xff] %v828
        %1606 = vst [vmem:[%s1435] ss:$4 sm:$0xff] %v829
        %v1607 = vld.sshfl [vmem:[#allocation1] sm:$0xff pattern:$0x73625140]
        %v1608 = vld.sshfl [vmem:[#allocation1 + $0x8] sm:$0xff pattern:$0x73625140]
        %v1609 = vld.sshfl [vmem:[#allocation1 + $0x10] sm:$0xff pattern:$0x73625140]
        %v1610 = vld.sshfl [vmem:[#allocation1 + $0x18] sm:$0xff pattern:$0x73625140]
        %v1611 = vld.sshfl [vmem:[#allocation1 + $0x20] sm:$0xff pattern:$0x73625140]
        %v1612 = vld.sshfl [vmem:[#allocation1 + $0x28] sm:$0xff pattern:$0x73625140]
        %v1613 = vld.sshfl [vmem:[#allocation1 + $0x30] sm:$0xff pattern:$0x73625140]
        %v1614 = vld.sshfl [vmem:[#allocation1 + $0x38] sm:$0xff pattern:$0x73625140]
        %1615 = vst [vmem:[#allocation1] ss:$4 sm:$0xff] %v830
        %1616 = vst [vmem:[%s1435] ss:$4 sm:$0xff] %v831
        %v1617 = vld.sshfl [vmem:[#allocation1] sm:$0xff pattern:$0x73625140]
        %v1618 = vld.sshfl [vmem:[#allocation1 + $0x8] sm:$0xff pattern:$0x73625140]
        %v1619 = vld.sshfl [vmem:[#allocation1 + $0x10] sm:$0xff pattern:$0x73625140]
        %v1620 = vld.sshfl [vmem:[#allocation1 + $0x18] sm:$0xff pattern:$0x73625140]
        %v1621 = vld.sshfl [vmem:[#allocation1 + $0x20] sm:$0xff pattern:$0x73625140]
        %v1622 = vld.sshfl [vmem:[#allocation1 + $0x28] sm:$0xff pattern:$0x73625140]
        %v1623 = vld.sshfl [vmem:[#allocation1 + $0x30] sm:$0xff pattern:$0x73625140]
        %v1624 = vld.sshfl [vmem:[#allocation1 + $0x38] sm:$0xff pattern:$0x73625140]
        %1625 = vst [vmem:[#allocation1] ss:$4 sm:$0xff] %v832
        %1626 = vst [vmem:[%s1435] ss:$4 sm:$0xff] %v833
        %v1627 = vld.sshfl [vmem:[#allocation1] sm:$0xff pattern:$0x73625140]
        %v1628 = vld.sshfl [vmem:[#allocation1 + $0x8] sm:$0xff pattern:$0x73625140]
        %v1629 = vld.sshfl [vmem:[#allocation1 + $0x10] sm:$0xff pattern:$0x73625140]
        %v1630 = vld.sshfl [vmem:[#allocation1 + $0x18] sm:$0xff pattern:$0x73625140]
        %v1631 = vld.sshfl [vmem:[#allocation1 + $0x20] sm:$0xff pattern:$0x73625140]
        %v1632 = vld.sshfl [vmem:[#allocation1 + $0x28] sm:$0xff pattern:$0x73625140]
        %v1633 = vld.sshfl [vmem:[#allocation1 + $0x30] sm:$0xff pattern:$0x73625140]
        %v1634 = vld.sshfl [vmem:[#allocation1 + $0x38] sm:$0xff pattern:$0x73625140]
        %1635 = vst [vmem:[#allocation1] ss:$4 sm:$0xff] %v834
        %1636 = vst [vmem:[%s1435] ss:$4 sm:$0xff] %v835
        %v1637 = vld.sshfl [vmem:[#allocation1] sm:$0xff pattern:$0x73625140]
        %v1638 = vld.sshfl [vmem:[#allocation1 + $0x8] sm:$0xff pattern:$0x73625140]
        %v1639 = vld.sshfl [vmem:[#allocation1 + $0x10] sm:$0xff pattern:$0x73625140]
        %v1640 = vld.sshfl [vmem:[#allocation1 + $0x18] sm:$0xff pattern:$0x73625140]
        %v1641 = vld.sshfl [vmem:[#allocation1 + $0x20] sm:$0xff pattern:$0x73625140]
        %v1642 = vld.sshfl [vmem:[#allocation1 + $0x28] sm:$0xff pattern:$0x73625140]
        %v1643 = vld.sshfl [vmem:[#allocation1 + $0x30] sm:$0xff pattern:$0x73625140]
        %v1644 = vld.sshfl [vmem:[#allocation1 + $0x38] sm:$0xff pattern:$0x73625140]
        %1645 = vst [vmem:[#allocation1] ss:$4 sm:$0xff] %v836
        %1646 = vst [vmem:[%s1435] ss:$4 sm:$0xff] %v837
        %v1647 = vld.sshfl [vmem:[#allocation1] sm:$0xff pattern:$0x73625140]
        %v1648 = vld.sshfl [vmem:[#allocation1 + $0x8] sm:$0xff pattern:$0x73625140]
        %v1649 = vld.sshfl [vmem:[#allocation1 + $0x10] sm:$0xff pattern:$0x73625140]
        %v1650 = vld.sshfl [vmem:[#allocation1 + $0x18] sm:$0xff pattern:$0x73625140]
        %v1651 = vld.sshfl [vmem:[#allocation1 + $0x20] sm:$0xff pattern:$0x73625140]
        %v1652 = vld.sshfl [vmem:[#allocation1 + $0x28] sm:$0xff pattern:$0x73625140]
        %v1653 = vld.sshfl [vmem:[#allocation1 + $0x30] sm:$0xff pattern:$0x73625140]
        %v1654 = vld.sshfl [vmem:[#allocation1 + $0x38] sm:$0xff pattern:$0x73625140]
        %1655 = vst [vmem:[#allocation1] ss:$4 sm:$0xff] %v838
        %1656 = vst [vmem:[%s1435] ss:$4 sm:$0xff] %v839
        %v1657 = vld.sshfl [vmem:[#allocation1] sm:$0xff pattern:$0x73625140]
        %v1658 = vld.sshfl [vmem:[#allocation1 + $0x8] sm:$0xff pattern:$0x73625140]
        %v1659 = vld.sshfl [vmem:[#allocation1 + $0x10] sm:$0xff pattern:$0x73625140]
        %v1660 = vld.sshfl [vmem:[#allocation1 + $0x18] sm:$0xff pattern:$0x73625140]
        %v1661 = vld.sshfl [vmem:[#allocation1 + $0x20] sm:$0xff pattern:$0x73625140]
        %v1662 = vld.sshfl [vmem:[#allocation1 + $0x28] sm:$0xff pattern:$0x73625140]
        %v1663 = vld.sshfl [vmem:[#allocation1 + $0x30] sm:$0xff pattern:$0x73625140]
        %v1664 = vld.sshfl [vmem:[#allocation1 + $0x38] sm:$0xff pattern:$0x73625140]
        %1665 = vst [vmem:[#allocation1] ss:$4 sm:$0xff] %v840
        %1666 = vst [vmem:[%s1435] ss:$4 sm:$0xff] %v841
        %v1667 = vld.sshfl [vmem:[#allocation1] sm:$0xff pattern:$0x73625140]
        %v1668 = vld.sshfl [vmem:[#allocation1 + $0x8] sm:$0xff pattern:$0x73625140]
        %v1669 = vld.sshfl [vmem:[#allocation1 + $0x10] sm:$0xff pattern:$0x73625140]
        %v1670 = vld.sshfl [vmem:[#allocation1 + $0x18] sm:$0xff pattern:$0x73625140]
        %v1671 = vld.sshfl [vmem:[#allocation1 + $0x20] sm:$0xff pattern:$0x73625140]
        %v1672 = vld.sshfl [vmem:[#allocation1 + $0x28] sm:$0xff pattern:$0x73625140]
        %v1673 = vld.sshfl [vmem:[#allocation1 + $0x30] sm:$0xff pattern:$0x73625140]
        %v1674 = vld.sshfl [vmem:[#allocation1 + $0x38] sm:$0xff pattern:$0x73625140]
        %1675 = vst [vmem:[#allocation1] ss:$4 sm:$0xff] %v842
        %1676 = vst [vmem:[%s1435] ss:$4 sm:$0xff] %v843
        %v1677 = vld.sshfl [vmem:[#allocation1] sm:$0xff pattern:$0x73625140]
        %v1678 = vld.sshfl [vmem:[#allocation1 + $0x8] sm:$0xff pattern:$0x73625140]
        %v1679 = vld.sshfl [vmem:[#allocation1 + $0x10] sm:$0xff pattern:$0x73625140]
        %v1680 = vld.sshfl [vmem:[#allocation1 + $0x18] sm:$0xff pattern:$0x73625140]
        %v1681 = vld.sshfl [vmem:[#allocation1 + $0x20] sm:$0xff pattern:$0x73625140]
        %v1682 = vld.sshfl [vmem:[#allocation1 + $0x28] sm:$0xff pattern:$0x73625140]
        %v1683 = vld.sshfl [vmem:[#allocation1 + $0x30] sm:$0xff pattern:$0x73625140]
        %v1684 = vld.sshfl [vmem:[#allocation1 + $0x38] sm:$0xff pattern:$0x73625140]
        %1685 = vst [vmem:[#allocation1] ss:$4 sm:$0xff] %v844
        %1686 = vst [vmem:[%s1435] ss:$4 sm:$0xff] %v845
        %v1687 = vld.sshfl [vmem:[#allocation1] sm:$0xff pattern:$0x73625140]
        %v1688 = vld.sshfl [vmem:[#allocation1 + $0x8] sm:$0xff pattern:$0x73625140]
        %v1689 = vld.sshfl [vmem:[#allocation1 + $0x10] sm:$0xff pattern:$0x73625140]
        %v1690 = vld.sshfl [vmem:[#allocation1 + $0x18] sm:$0xff pattern:$0x73625140]
        %v1691 = vld.sshfl [vmem:[#allocation1 + $0x20] sm:$0xff pattern:$0x73625140]
        %v1692 = vld.sshfl [vmem:[#allocation1 + $0x28] sm:$0xff pattern:$0x73625140]
        %v1693 = vld.sshfl [vmem:[#allocation1 + $0x30] sm:$0xff pattern:$0x73625140]
        %v1694 = vld.sshfl [vmem:[#allocation1 + $0x38] sm:$0xff pattern:$0x73625140]
        %1695 = vst [vmem:[#allocation1] ss:$4 sm:$0xff] %v846
        %1696 = vst [vmem:[%s1435] ss:$4 sm:$0xff] %v847
        %v1697 = vld.sshfl [vmem:[#allocation1] sm:$0xff pattern:$0x73625140]
        %v1698 = vld.sshfl [vmem:[#allocation1 + $0x8] sm:$0xff pattern:$0x73625140]
        %v1699 = vld.sshfl [vmem:[#allocation1 + $0x10] sm:$0xff pattern:$0x73625140]
        %v1700 = vld.sshfl [vmem:[#allocation1 + $0x18] sm:$0xff pattern:$0x73625140]
        %v1701 = vld.sshfl [vmem:[#allocation1 + $0x20] sm:$0xff pattern:$0x73625140]
        %v1702 = vld.sshfl [vmem:[#allocation1 + $0x28] sm:$0xff pattern:$0x73625140]
        %v1703 = vld.sshfl [vmem:[#allocation1 + $0x30] sm:$0xff pattern:$0x73625140]
        %v1704 = vld.sshfl [vmem:[#allocation1 + $0x38] sm:$0xff pattern:$0x73625140]
        %1705 = vst [vmem:[#allocation1] ss:$4 sm:$0xff] %v848
        %1706 = vst [vmem:[%s1435] ss:$4 sm:$0xff] %v849
        %v1707 = vld.sshfl [vmem:[#allocation1] sm:$0xff pattern:$0x73625140]
        %v1708 = vld.sshfl [vmem:[#allocation1 + $0x8] sm:$0xff pattern:$0x73625140]
        %v1709 = vld.sshfl [vmem:[#allocation1 + $0x10] sm:$0xff pattern:$0x73625140]
        %v1710 = vld.sshfl [vmem:[#allocation1 + $0x18] sm:$0xff pattern:$0x73625140]
        %v1711 = vld.sshfl [vmem:[#allocation1 + $0x20] sm:$0xff pattern:$0x73625140]
        %v1712 = vld.sshfl [vmem:[#allocation1 + $0x28] sm:$0xff pattern:$0x73625140]
        %v1713 = vld.sshfl [vmem:[#allocation1 + $0x30] sm:$0xff pattern:$0x73625140]
        %v1714 = vld.sshfl [vmem:[#allocation1 + $0x38] sm:$0xff pattern:$0x73625140]
        %1715 = vst [vmem:[#allocation1] ss:$4 sm:$0xff] %v850
        %1716 = vst [vmem:[%s1435] ss:$4 sm:$0xff] %v851
        %v1717 = vld.sshfl [vmem:[#allocation1] sm:$0xff pattern:$0x73625140]
        %v1718 = vld.sshfl [vmem:[#allocation1 + $0x8] sm:$0xff pattern:$0x73625140]
        %v1719 = vld.sshfl [vmem:[#allocation1 + $0x10] sm:$0xff pattern:$0x73625140]
        %v1720 = vld.sshfl [vmem:[#allocation1 + $0x18] sm:$0xff pattern:$0x73625140]
        %v1721 = vld.sshfl [vmem:[#allocation1 + $0x20] sm:$0xff pattern:$0x73625140]
        %v1722 = vld.sshfl [vmem:[#allocation1 + $0x28] sm:$0xff pattern:$0x73625140]
        %v1723 = vld.sshfl [vmem:[#allocation1 + $0x30] sm:$0xff pattern:$0x73625140]
        %v1724 = vld.sshfl [vmem:[#allocation1 + $0x38] sm:$0xff pattern:$0x73625140]
        %1725 = vst [vmem:[#allocation1] ss:$4 sm:$0xff] %v852
        %1726 = vst [vmem:[%s1435] ss:$4 sm:$0xff] %v853
        %v1727 = vld.sshfl [vmem:[#allocation1] sm:$0xff pattern:$0x73625140]
        %v1728 = vld.sshfl [vmem:[#allocation1 + $0x8] sm:$0xff pattern:$0x73625140]
        %v1729 = vld.sshfl [vmem:[#allocation1 + $0x10] sm:$0xff pattern:$0x73625140]
        %v1730 = vld.sshfl [vmem:[#allocation1 + $0x18] sm:$0xff pattern:$0x73625140]
        %v1731 = vld.sshfl [vmem:[#allocation1 + $0x20] sm:$0xff pattern:$0x73625140]
        %v1732 = vld.sshfl [vmem:[#allocation1 + $0x28] sm:$0xff pattern:$0x73625140]
        %v1733 = vld.sshfl [vmem:[#allocation1 + $0x30] sm:$0xff pattern:$0x73625140]
        %v1734 = vld.sshfl [vmem:[#allocation1 + $0x38] sm:$0xff pattern:$0x73625140]
        %1735 = vst [vmem:[#allocation1] ss:$4 sm:$0xff] %v854
        %1736 = vst [vmem:[%s1435] ss:$4 sm:$0xff] %v855
        %v1737 = vld.sshfl [vmem:[#allocation1] sm:$0xff pattern:$0x73625140]
        %v1738 = vld.sshfl [vmem:[#allocation1 + $0x8] sm:$0xff pattern:$0x73625140]
        %v1739 = vld.sshfl [vmem:[#allocation1 + $0x10] sm:$0xff pattern:$0x73625140]
        %v1740 = vld.sshfl [vmem:[#allocation1 + $0x18] sm:$0xff pattern:$0x73625140]
        %v1741 = vld.sshfl [vmem:[#allocation1 + $0x20] sm:$0xff pattern:$0x73625140]
        %v1742 = vld.sshfl [vmem:[#allocation1 + $0x28] sm:$0xff pattern:$0x73625140]
        %v1743 = vld.sshfl [vmem:[#allocation1 + $0x30] sm:$0xff pattern:$0x73625140]
        %v1744 = vld.sshfl [vmem:[#allocation1 + $0x38] sm:$0xff pattern:$0x73625140]
        %1745 = vst [vmem:[#allocation1] ss:$4 sm:$0xff] %v856
        %1746 = vst [vmem:[%s1435] ss:$4 sm:$0xff] %v857
        %v1747 = vld.sshfl [vmem:[#allocation1] sm:$0xff pattern:$0x73625140]
        %v1748 = vld.sshfl [vmem:[#allocation1 + $0x8] sm:$0xff pattern:$0x73625140]
        %v1749 = vld.sshfl [vmem:[#allocation1 + $0x10] sm:$0xff pattern:$0x73625140]
        %v1750 = vld.sshfl [vmem:[#allocation1 + $0x18] sm:$0xff pattern:$0x73625140]
        %v1751 = vld.sshfl [vmem:[#allocation1 + $0x20] sm:$0xff pattern:$0x73625140]
        %v1752 = vld.sshfl [vmem:[#allocation1 + $0x28] sm:$0xff pattern:$0x73625140]
        %v1753 = vld.sshfl [vmem:[#allocation1 + $0x30] sm:$0xff pattern:$0x73625140]
        %v1754 = vld.sshfl [vmem:[#allocation1 + $0x38] sm:$0xff pattern:$0x73625140]
        %v2011 = vsel %vm1114, %v1437, 0.0
        %v2012 = vsel %vm1115, %v1438, 0.0
        %v2013 = vsel %vm1116, %v1439, 0.0
        %v2014 = vsel %vm1117, %v1440, 0.0
        %v2015 = vsel %vm1118, %v1441, 0.0
        %v2016 = vsel %vm1119, %v1442, 0.0
        %v2017 = vsel %vm1120, %v1443, 0.0
        %v2018 = vsel %vm1121, %v1444, 0.0
        %v2019 = vsel %vm1122, %v1447, 0.0
        %v2020 = vsel %vm1123, %v1448, 0.0
        %v2021 = vsel %vm1124, %v1449, 0.0
        %v2022 = vsel %vm1125, %v1450, 0.0
        %v2023 = vsel %vm1126, %v1451, 0.0
        %v2024 = vsel %vm1127, %v1452, 0.0
        %v2025 = vsel %vm1128, %v1453, 0.0
        %v2026 = vsel %vm1129, %v1454, 0.0
        %v2027 = vsel %vm1130, %v1457, 0.0
        %v2028 = vsel %vm1131, %v1458, 0.0
        %v2029 = vsel %vm1132, %v1459, 0.0
        %v2030 = vsel %vm1133, %v1460, 0.0
        %v2031 = vsel %vm1134, %v1461, 0.0
        %v2032 = vsel %vm1135, %v1462, 0.0
        %v2033 = vsel %vm1136, %v1463, 0.0
        %v2034 = vsel %vm1137, %v1464, 0.0
        %v2035 = vsel %vm1138, %v1467, 0.0
        %v2036 = vsel %vm1139, %v1468, 0.0
        %v2037 = vsel %vm1140, %v1469, 0.0
        %v2038 = vsel %vm1141, %v1470, 0.0
        %v2039 = vsel %vm1142, %v1471, 0.0
        %v2040 = vsel %vm1143, %v1472, 0.0
        %v2041 = vsel %vm1144, %v1473, 0.0
        %v2042 = vsel %vm1145, %v1474, 0.0
        %v2043 = vsel %vm1146, %v1477, 0.0
        %v2044 = vsel %vm1147, %v1478, 0.0
        %v2045 = vsel %vm1148, %v1479, 0.0
        %v2046 = vsel %vm1149, %v1480, 0.0
        %v2047 = vsel %vm1150, %v1481, 0.0
        %v2048 = vsel %vm1151, %v1482, 0.0
        %v2049 = vsel %vm1152, %v1483, 0.0
        %v2050 = vsel %vm1153, %v1484, 0.0
        %v2051 = vsel %vm1154, %v1487, 0.0
        %v2052 = vsel %vm1155, %v1488, 0.0
        %v2053 = vsel %vm1156, %v1489, 0.0
        %v2054 = vsel %vm1157, %v1490, 0.0
        %v2055 = vsel %vm1158, %v1491, 0.0
        %v2056 = vsel %vm1159, %v1492, 0.0
        %v2057 = vsel %vm1160, %v1493, 0.0
        %v2058 = vsel %vm1161, %v1494, 0.0
        %v2059 = vsel %vm1162, %v1497, 0.0
        %v2060 = vsel %vm1163, %v1498, 0.0
        %v2061 = vsel %vm1164, %v1499, 0.0
        %v2062 = vsel %vm1165, %v1500, 0.0
        %v2063 = vsel %vm1166, %v1501, 0.0
        %v2064 = vsel %vm1167, %v1502, 0.0
        %v2065 = vsel %vm1168, %v1503, 0.0
        %v2066 = vsel %vm1169, %v1504, 0.0
        %v2067 = vsel %vm1170, %v1507, 0.0
        %v2068 = vsel %vm1171, %v1508, 0.0
        %v2069 = vsel %vm1172, %v1509, 0.0
        %v2070 = vsel %vm1173, %v1510, 0.0
        %v2071 = vsel %vm1174, %v1511, 0.0
        %v2072 = vsel %vm1175, %v1512, 0.0
        %v2073 = vsel %vm1176, %v1513, 0.0
        %v2074 = vsel %vm1177, %v1514, 0.0
        %v2075 = vsel %vm1178, %v1517, 0.0
        %v2076 = vsel %vm1179, %v1518, 0.0
        %v2077 = vsel %vm1180, %v1519, 0.0
        %v2078 = vsel %vm1181, %v1520, 0.0
        %v2079 = vsel %vm1182, %v1521, 0.0
        %v2080 = vsel %vm1183, %v1522, 0.0
        %v2081 = vsel %vm1184, %v1523, 0.0
        %v2082 = vsel %vm1185, %v1524, 0.0
        %v2083 = vsel %vm1186, %v1527, 0.0
        %v2084 = vsel %vm1187, %v1528, 0.0
        %v2085 = vsel %vm1188, %v1529, 0.0
        %v2086 = vsel %vm1189, %v1530, 0.0
        %v2087 = vsel %vm1190, %v1531, 0.0
        %v2088 = vsel %vm1191, %v1532, 0.0
        %v2089 = vsel %vm1192, %v1533, 0.0
        %v2090 = vsel %vm1193, %v1534, 0.0
        %v2091 = vsel %vm1194, %v1537, 0.0
        %v2092 = vsel %vm1195, %v1538, 0.0
        %v2093 = vsel %vm1196, %v1539, 0.0
        %v2094 = vsel %vm1197, %v1540, 0.0
        %v2095 = vsel %vm1198, %v1541, 0.0
        %v2096 = vsel %vm1199, %v1542, 0.0
        %v2097 = vsel %vm1200, %v1543, 0.0
        %v2098 = vsel %vm1201, %v1544, 0.0
        %v2099 = vsel %vm1202, %v1547, 0.0
        %v2100 = vsel %vm1203, %v1548, 0.0
        %v2101 = vsel %vm1204, %v1549, 0.0
        %v2102 = vsel %vm1205, %v1550, 0.0
        %v2103 = vsel %vm1206, %v1551, 0.0
        %v2104 = vsel %vm1207, %v1552, 0.0
        %v2105 = vsel %vm1208, %v1553, 0.0
        %v2106 = vsel %vm1209, %v1554, 0.0
        %v2107 = vsel %vm1210, %v1557, 0.0
        %v2108 = vsel %vm1211, %v1558, 0.0
        %v2109 = vsel %vm1212, %v1559, 0.0
        %v2110 = vsel %vm1213, %v1560, 0.0
        %v2111 = vsel %vm1214, %v1561, 0.0
        %v2112 = vsel %vm1215, %v1562, 0.0
        %v2113 = vsel %vm1216, %v1563, 0.0
        %v2114 = vsel %vm1217, %v1564, 0.0
        %v2115 = vsel %vm1218, %v1567, 0.0
        %v2116 = vsel %vm1219, %v1568, 0.0
        %v2117 = vsel %vm1220, %v1569, 0.0
        %v2118 = vsel %vm1221, %v1570, 0.0
        %v2119 = vsel %vm1222, %v1571, 0.0
        %v2120 = vsel %vm1223, %v1572, 0.0
        %v2121 = vsel %vm1224, %v1573, 0.0
        %v2122 = vsel %vm1225, %v1574, 0.0
        %v2123 = vsel %vm1226, %v1577, 0.0
        %v2124 = vsel %vm1227, %v1578, 0.0
        %v2125 = vsel %vm1228, %v1579, 0.0
        %v2126 = vsel %vm1229, %v1580, 0.0
        %v2127 = vsel %vm1230, %v1581, 0.0
        %v2128 = vsel %vm1231, %v1582, 0.0
        %v2129 = vsel %vm1232, %v1583, 0.0
        %v2130 = vsel %vm1233, %v1584, 0.0
        %v2131 = vsel %vm1234, %v1587, 0.0
        %v2132 = vsel %vm1235, %v1588, 0.0
        %v2133 = vsel %vm1236, %v1589, 0.0
        %v2134 = vsel %vm1237, %v1590, 0.0
        %v2135 = vsel %vm1238, %v1591, 0.0
        %v2136 = vsel %vm1239, %v1592, 0.0
        %v2137 = vsel %vm1240, %v1593, 0.0
        %v2138 = vsel %vm1241, %v1594, 0.0
        %v2139 = vsel %vm1242, %v1597, 0.0
        %v2140 = vsel %vm1243, %v1598, 0.0
        %v2141 = vsel %vm1244, %v1599, 0.0
        %v2142 = vsel %vm1245, %v1600, 0.0
        %v2143 = vsel %vm1246, %v1601, 0.0
        %v2144 = vsel %vm1247, %v1602, 0.0
        %v2145 = vsel %vm1248, %v1603, 0.0
        %v2146 = vsel %vm1249, %v1604, 0.0
        %v2147 = vsel %vm1250, %v1607, 0.0
        %v2148 = vsel %vm1251, %v1608, 0.0
        %v2149 = vsel %vm1252, %v1609, 0.0
        %v2150 = vsel %vm1253, %v1610, 0.0
        %v2151 = vsel %vm1254, %v1611, 0.0
        %v2152 = vsel %vm1255, %v1612, 0.0
        %v2153 = vsel %vm1256, %v1613, 0.0
        %v2154 = vsel %vm1257, %v1614, 0.0
        %v2155 = vsel %vm1258, %v1617, 0.0
        %v2156 = vsel %vm1259, %v1618, 0.0
        %v2157 = vsel %vm1260, %v1619, 0.0
        %v2158 = vsel %vm1261, %v1620, 0.0
        %v2159 = vsel %vm1262, %v1621, 0.0
        %v2160 = vsel %vm1263, %v1622, 0.0
        %v2161 = vsel %vm1264, %v1623, 0.0
        %v2162 = vsel %vm1265, %v1624, 0.0
        %v2163 = vsel %vm1266, %v1627, 0.0
        %v2164 = vsel %vm1267, %v1628, 0.0
        %v2165 = vsel %vm1268, %v1629, 0.0
        %v2166 = vsel %vm1269, %v1630, 0.0
        %v2167 = vsel %vm1270, %v1631, 0.0
        %v2168 = vsel %vm1271, %v1632, 0.0
        %v2169 = vsel %vm1272, %v1633, 0.0
        %v2170 = vsel %vm1273, %v1634, 0.0
        %v2171 = vsel %vm1274, %v1637, 0.0
        %v2172 = vsel %vm1275, %v1638, 0.0
        %v2173 = vsel %vm1276, %v1639, 0.0
        %v2174 = vsel %vm1277, %v1640, 0.0
        %v2175 = vsel %vm1278, %v1641, 0.0
        %v2176 = vsel %vm1279, %v1642, 0.0
        %v2177 = vsel %vm1280, %v1643, 0.0
        %v2178 = vsel %vm1281, %v1644, 0.0
        %v2179 = vsel %vm1282, %v1647, 0.0
        %v2180 = vsel %vm1283, %v1648, 0.0
        %v2181 = vsel %vm1284, %v1649, 0.0
        %v2182 = vsel %vm1285, %v1650, 0.0
        %v2183 = vsel %vm1286, %v1651, 0.0
        %v2184 = vsel %vm1287, %v1652, 0.0
        %v2185 = vsel %vm1288, %v1653, 0.0
        %v2186 = vsel %vm1289, %v1654, 0.0
        %v2187 = vsel %vm1290, %v1657, 0.0
        %v2188 = vsel %vm1291, %v1658, 0.0
        %v2189 = vsel %vm1292, %v1659, 0.0
        %v2190 = vsel %vm1293, %v1660, 0.0
        %v2191 = vsel %vm1294, %v1661, 0.0
        %v2192 = vsel %vm1295, %v1662, 0.0
        %v2193 = vsel %vm1296, %v1663, 0.0
        %v2194 = vsel %vm1297, %v1664, 0.0
        %v2195 = vsel %vm1298, %v1667, 0.0
        %v2196 = vsel %vm1299, %v1668, 0.0
        %v2197 = vsel %vm1300, %v1669, 0.0
        %v2198 = vsel %vm1301, %v1670, 0.0
        %v2199 = vsel %vm1302, %v1671, 0.0
        %v2200 = vsel %vm1303, %v1672, 0.0
        %v2201 = vsel %vm1304, %v1673, 0.0
        %v2202 = vsel %vm1305, %v1674, 0.0
        %v2203 = vsel %vm1306, %v1677, 0.0
        %v2204 = vsel %vm1307, %v1678, 0.0
        %v2205 = vsel %vm1308, %v1679, 0.0
        %v2206 = vsel %vm1309, %v1680, 0.0
        %v2207 = vsel %vm1310, %v1681, 0.0
        %v2208 = vsel %vm1311, %v1682, 0.0
        %v2209 = vsel %vm1312, %v1683, 0.0
        %v2210 = vsel %vm1313, %v1684, 0.0
        %v2211 = vsel %vm1314, %v1687, 0.0
        %v2212 = vsel %vm1315, %v1688, 0.0
        %v2213 = vsel %vm1316, %v1689, 0.0
        %v2214 = vsel %vm1317, %v1690, 0.0
        %v2215 = vsel %vm1318, %v1691, 0.0
        %v2216 = vsel %vm1319, %v1692, 0.0
        %v2217 = vsel %vm1320, %v1693, 0.0
        %v2218 = vsel %vm1321, %v1694, 0.0
        %v2219 = vsel %vm1322, %v1697, 0.0
        %v2220 = vsel %vm1323, %v1698, 0.0
        %v2221 = vsel %vm1324, %v1699, 0.0
        %v2222 = vsel %vm1325, %v1700, 0.0
        %v2223 = vsel %vm1326, %v1701, 0.0
        %v2224 = vsel %vm1327, %v1702, 0.0
        %v2225 = vsel %vm1328, %v1703, 0.0
        %v2226 = vsel %vm1329, %v1704, 0.0
        %v2227 = vsel %vm1330, %v1707, 0.0
        %v2228 = vsel %vm1331, %v1708, 0.0
        %v2229 = vsel %vm1332, %v1709, 0.0
        %v2230 = vsel %vm1333, %v1710, 0.0
        %v2231 = vsel %vm1334, %v1711, 0.0
        %v2232 = vsel %vm1335, %v1712, 0.0
        %v2233 = vsel %vm1336, %v1713, 0.0
        %v2234 = vsel %vm1337, %v1714, 0.0
        %v2235 = vsel %vm1338, %v1717, 0.0
        %v2236 = vsel %vm1339, %v1718, 0.0
        %v2237 = vsel %vm1340, %v1719, 0.0
        %v2238 = vsel %vm1341, %v1720, 0.0
        %v2239 = vsel %vm1342, %v1721, 0.0
        %v2240 = vsel %vm1343, %v1722, 0.0
        %v2241 = vsel %vm1344, %v1723, 0.0
        %v2242 = vsel %vm1345, %v1724, 0.0
        %v2243 = vsel %vm1346, %v1727, 0.0
        %v2244 = vsel %vm1347, %v1728, 0.0
        %v2245 = vsel %vm1348, %v1729, 0.0
        %v2246 = vsel %vm1349, %v1730, 0.0
        %v2247 = vsel %vm1350, %v1731, 0.0
        %v2248 = vsel %vm1351, %v1732, 0.0
        %v2249 = vsel %vm1352, %v1733, 0.0
        %v2250 = vsel %vm1353, %v1734, 0.0
        %v2251 = vsel %vm1354, %v1737, 0.0
        %v2252 = vsel %vm1355, %v1738, 0.0
        %v2253 = vsel %vm1356, %v1739, 0.0
        %v2254 = vsel %vm1357, %v1740, 0.0
        %v2255 = vsel %vm1358, %v1741, 0.0
        %v2256 = vsel %vm1359, %v1742, 0.0
        %v2257 = vsel %vm1360, %v1743, 0.0
        %v2258 = vsel %vm1361, %v1744, 0.0
        %v2259 = vsel %vm1362, %v1747, 0.0
        %v2260 = vsel %vm1363, %v1748, 0.0
        %v2261 = vsel %vm1364, %v1749, 0.0
        %v2262 = vsel %vm1365, %v1750, 0.0
        %v2263 = vsel %vm1366, %v1751, 0.0
        %v2264 = vsel %vm1367, %v1752, 0.0
        %v2265 = vsel %vm1368, %v1753, 0.0
        %v2266 = vsel %vm1369, %v1754, 0.0
        %v2267 = vld [vmem:[%s222] sm:$0x77]
        %v2268 = vld [vmem:[%s222 + $0x8] sm:$0x77]
        %v2269 = vld [vmem:[%s222 + $0x10] sm:$0x77]
        %v2270 = vld [vmem:[%s222 + $0x18] sm:$0x77]
        %v2271 = vld [vmem:[%s222 + $0x20] sm:$0x77]
        %v2272 = vld [vmem:[%s222 + $0x28] sm:$0x77]
        %v2273 = vld [vmem:[%s222 + $0x30] sm:$0x77]
        %v2274 = vld [vmem:[%s222 + $0x38] sm:$0x77]
        %v2275 = vld [vmem:[%s222 + $0x40] sm:$0x77]
        %v2276 = vld [vmem:[%s222 + $0x48] sm:$0x77]
        %v2277 = vld [vmem:[%s222 + $0x50] sm:$0x77]
        %v2278 = vld [vmem:[%s222 + $0x58] sm:$0x77]
        %v2279 = vld [vmem:[%s222 + $0x60] sm:$0x77]
        %v2280 = vld [vmem:[%s222 + $0x68] sm:$0x77]
        %v2281 = vld [vmem:[%s222 + $0x70] sm:$0x77]
        %v2282 = vld [vmem:[%s222 + $0x78] sm:$0x77]
        %v2283 = vld [vmem:[%s222 + $0x80] sm:$0x77]
        %v2284 = vld [vmem:[%s222 + $0x88] sm:$0x77]
        %v2285 = vld [vmem:[%s222 + $0x90] sm:$0x77]
        %v2286 = vld [vmem:[%s222 + $0x98] sm:$0x77]
        %v2287 = vld [vmem:[%s222 + $0xa0] sm:$0x77]
        %v2288 = vld [vmem:[%s222 + $0xa8] sm:$0x77]
        %v2289 = vld [vmem:[%s222 + $0xb0] sm:$0x77]
        %v2290 = vld [vmem:[%s222 + $0xb8] sm:$0x77]
        %v2291 = vld [vmem:[%s222 + $0xc0] sm:$0x77]
        %v2292 = vld [vmem:[%s222 + $0xc8] sm:$0x77]
        %v2293 = vld [vmem:[%s222 + $0xd0] sm:$0x77]
        %v2294 = vld [vmem:[%s222 + $0xd8] sm:$0x77]
        %v2295 = vld [vmem:[%s222 + $0xe0] sm:$0x77]
        %v2296 = vld [vmem:[%s222 + $0xe8] sm:$0x77]
        %v2297 = vld [vmem:[%s222 + $0xf0] sm:$0x77]
        %v2298 = vld [vmem:[%s222 + $0xf8] sm:$0x77]
        %v2299 = vld [vmem:[%s222 + $0x100] sm:$0x77]
        %v2300 = vld [vmem:[%s222 + $0x108] sm:$0x77]
        %v2301 = vld [vmem:[%s222 + $0x110] sm:$0x77]
        %v2302 = vld [vmem:[%s222 + $0x118] sm:$0x77]
        %v2303 = vld [vmem:[%s222 + $0x120] sm:$0x77]
        %v2304 = vld [vmem:[%s222 + $0x128] sm:$0x77]
        %v2305 = vld [vmem:[%s222 + $0x130] sm:$0x77]
        %v2306 = vld [vmem:[%s222 + $0x138] sm:$0x77]
        %v2307 = vld [vmem:[%s222 + $0x140] sm:$0x77]
        %v2308 = vld [vmem:[%s222 + $0x148] sm:$0x77]
        %v2309 = vld [vmem:[%s222 + $0x150] sm:$0x77]
        %v2310 = vld [vmem:[%s222 + $0x158] sm:$0x77]
        %v2311 = vld [vmem:[%s222 + $0x160] sm:$0x77]
        %v2312 = vld [vmem:[%s222 + $0x168] sm:$0x77]
        %v2313 = vld [vmem:[%s222 + $0x170] sm:$0x77]
        %v2314 = vld [vmem:[%s222 + $0x178] sm:$0x77]
        %v2315 = vld [vmem:[%s222 + $0x180] sm:$0x77]
        %v2316 = vld [vmem:[%s222 + $0x188] sm:$0x77]
        %v2317 = vld [vmem:[%s222 + $0x190] sm:$0x77]
        %v2318 = vld [vmem:[%s222 + $0x198] sm:$0x77]
        %v2319 = vld [vmem:[%s222 + $0x1a0] sm:$0x77]
        %v2320 = vld [vmem:[%s222 + $0x1a8] sm:$0x77]
        %v2321 = vld [vmem:[%s222 + $0x1b0] sm:$0x77]
        %v2322 = vld [vmem:[%s222 + $0x1b8] sm:$0x77]
        %v2323 = vld [vmem:[%s222 + $0x1c0] sm:$0x77]
        %v2324 = vld [vmem:[%s222 + $0x1c8] sm:$0x77]
        %v2325 = vld [vmem:[%s222 + $0x1d0] sm:$0x77]
        %v2326 = vld [vmem:[%s222 + $0x1d8] sm:$0x77]
        %v2327 = vld [vmem:[%s222 + $0x1e0] sm:$0x77]
        %v2328 = vld [vmem:[%s222 + $0x1e8] sm:$0x77]
        %v2329 = vld [vmem:[%s222 + $0x1f0] sm:$0x77]
        %v2330 = vld [vmem:[%s222 + $0x1f8] sm:$0x77]
        %v2331 = vld [vmem:[%s222 + $0x200] sm:$0x77]
        %v2332 = vld [vmem:[%s222 + $0x208] sm:$0x77]
        %v2333 = vld [vmem:[%s222 + $0x210] sm:$0x77]
        %v2334 = vld [vmem:[%s222 + $0x218] sm:$0x77]
        %v2335 = vld [vmem:[%s222 + $0x220] sm:$0x77]
        %v2336 = vld [vmem:[%s222 + $0x228] sm:$0x77]
        %v2337 = vld [vmem:[%s222 + $0x230] sm:$0x77]
        %v2338 = vld [vmem:[%s222 + $0x238] sm:$0x77]
        %v2339 = vld [vmem:[%s222 + $0x240] sm:$0x77]
        %v2340 = vld [vmem:[%s222 + $0x248] sm:$0x77]
        %v2341 = vld [vmem:[%s222 + $0x250] sm:$0x77]
        %v2342 = vld [vmem:[%s222 + $0x258] sm:$0x77]
        %v2343 = vld [vmem:[%s222 + $0x260] sm:$0x77]
        %v2344 = vld [vmem:[%s222 + $0x268] sm:$0x77]
        %v2345 = vld [vmem:[%s222 + $0x270] sm:$0x77]
        %v2346 = vld [vmem:[%s222 + $0x278] sm:$0x77]
        %v2347 = vld [vmem:[%s222 + $0x280] sm:$0x77]
        %v2348 = vld [vmem:[%s222 + $0x288] sm:$0x77]
        %v2349 = vld [vmem:[%s222 + $0x290] sm:$0x77]
        %v2350 = vld [vmem:[%s222 + $0x298] sm:$0x77]
        %v2351 = vld [vmem:[%s222 + $0x2a0] sm:$0x77]
        %v2352 = vld [vmem:[%s222 + $0x2a8] sm:$0x77]
        %v2353 = vld [vmem:[%s222 + $0x2b0] sm:$0x77]
        %v2354 = vld [vmem:[%s222 + $0x2b8] sm:$0x77]
        %v2355 = vld [vmem:[%s222 + $0x2c0] sm:$0x77]
        %v2356 = vld [vmem:[%s222 + $0x2c8] sm:$0x77]
        %v2357 = vld [vmem:[%s222 + $0x2d0] sm:$0x77]
        %v2358 = vld [vmem:[%s222 + $0x2d8] sm:$0x77]
        %v2359 = vld [vmem:[%s222 + $0x2e0] sm:$0x77]
        %v2360 = vld [vmem:[%s222 + $0x2e8] sm:$0x77]
        %v2361 = vld [vmem:[%s222 + $0x2f0] sm:$0x77]
        %v2362 = vld [vmem:[%s222 + $0x2f8] sm:$0x77]
        %v2363 = vld [vmem:[%s222 + $0x300] sm:$0x77]
        %v2364 = vld [vmem:[%s222 + $0x308] sm:$0x77]
        %v2365 = vld [vmem:[%s222 + $0x310] sm:$0x77]
        %v2366 = vld [vmem:[%s222 + $0x318] sm:$0x77]
        %v2367 = vld [vmem:[%s222 + $0x320] sm:$0x77]
        %v2368 = vld [vmem:[%s222 + $0x328] sm:$0x77]
        %v2369 = vld [vmem:[%s222 + $0x330] sm:$0x77]
        %v2370 = vld [vmem:[%s222 + $0x338] sm:$0x77]
        %v2371 = vld [vmem:[%s222 + $0x340] sm:$0x77]
        %v2372 = vld [vmem:[%s222 + $0x348] sm:$0x77]
        %v2373 = vld [vmem:[%s222 + $0x350] sm:$0x77]
        %v2374 = vld [vmem:[%s222 + $0x358] sm:$0x77]
        %v2375 = vld [vmem:[%s222 + $0x360] sm:$0x77]
        %v2376 = vld [vmem:[%s222 + $0x368] sm:$0x77]
        %v2377 = vld [vmem:[%s222 + $0x370] sm:$0x77]
        %v2378 = vld [vmem:[%s222 + $0x378] sm:$0x77]
        %v2379 = vld [vmem:[%s222 + $0x380] sm:$0x77]
        %v2380 = vld [vmem:[%s222 + $0x388] sm:$0x77]
        %v2381 = vld [vmem:[%s222 + $0x390] sm:$0x77]
        %v2382 = vld [vmem:[%s222 + $0x398] sm:$0x77]
        %v2383 = vld [vmem:[%s222 + $0x3a0] sm:$0x77]
        %v2384 = vld [vmem:[%s222 + $0x3a8] sm:$0x77]
        %v2385 = vld [vmem:[%s222 + $0x3b0] sm:$0x77]
        %v2386 = vld [vmem:[%s222 + $0x3b8] sm:$0x77]
        %v2387 = vld [vmem:[%s222 + $0x3c0] sm:$0x77]
        %v2388 = vld [vmem:[%s222 + $0x3c8] sm:$0x77]
        %v2389 = vld [vmem:[%s222 + $0x3d0] sm:$0x77]
        %v2390 = vld [vmem:[%s222 + $0x3d8] sm:$0x77]
        %v2391 = vld [vmem:[%s222 + $0x3e0] sm:$0x77]
        %v2392 = vld [vmem:[%s222 + $0x3e8] sm:$0x77]
        %v2393 = vld [vmem:[%s222 + $0x3f0] sm:$0x77]
        %v2394 = vld [vmem:[%s222 + $0x3f8] sm:$0x77]
        %2523 = vst [vmem:[#allocation1] ss:$2 sm:$0xff] %v2267
        %s2524 = scalar_lea.vmem [#allocation1], 16
        %2525 = vst [vmem:[%s2524] ss:$2 sm:$0xff] %v2268
        %s2526 = scalar_lea.vmem [#allocation1], 32
        %2527 = vst [vmem:[%s2526] ss:$2 sm:$0xff] %v2269
        %s2528 = scalar_lea.vmem [#allocation1], 48
        %2529 = vst [vmem:[%s2528] ss:$2 sm:$0xff] %v2270
        %v2530 = vld.sshfl [vmem:[#allocation1] sm:$0xff pattern:$0x75316420]
        %v2531 = vld.sshfl [vmem:[#allocation1 + $0x8] sm:$0xff pattern:$0x75316420]
        %v2532 = vld.sshfl [vmem:[#allocation1 + $0x10] sm:$0xff pattern:$0x75316420]
        %v2533 = vld.sshfl [vmem:[#allocation1 + $0x18] sm:$0xff pattern:$0x75316420]
        %v2534 = vld.sshfl [vmem:[#allocation1 + $0x20] sm:$0xff pattern:$0x75316420]
        %v2535 = vld.sshfl [vmem:[#allocation1 + $0x28] sm:$0xff pattern:$0x75316420]
        %v2536 = vld.sshfl [vmem:[#allocation1 + $0x30] sm:$0xff pattern:$0x75316420]
        %v2537 = vld.sshfl [vmem:[#allocation1 + $0x38] sm:$0xff pattern:$0x75316420]
        %2538 = vst [vmem:[#allocation1] ss:$2 sm:$0xff] %v2271
        %2539 = vst [vmem:[%s2524] ss:$2 sm:$0xff] %v2272
        %2540 = vst [vmem:[%s2526] ss:$2 sm:$0xff] %v2273
        %2541 = vst [vmem:[%s2528] ss:$2 sm:$0xff] %v2274
        %v2542 = vld.sshfl [vmem:[#allocation1] sm:$0xff pattern:$0x75316420]
        %v2543 = vld.sshfl [vmem:[#allocation1 + $0x8] sm:$0xff pattern:$0x75316420]
        %v2544 = vld.sshfl [vmem:[#allocation1 + $0x10] sm:$0xff pattern:$0x75316420]
        %v2545 = vld.sshfl [vmem:[#allocation1 + $0x18] sm:$0xff pattern:$0x75316420]
        %v2546 = vld.sshfl [vmem:[#allocation1 + $0x20] sm:$0xff pattern:$0x75316420]
        %v2547 = vld.sshfl [vmem:[#allocation1 + $0x28] sm:$0xff pattern:$0x75316420]
        %v2548 = vld.sshfl [vmem:[#allocation1 + $0x30] sm:$0xff pattern:$0x75316420]
        %v2549 = vld.sshfl [vmem:[#allocation1 + $0x38] sm:$0xff pattern:$0x75316420]
        %2550 = vst [vmem:[#allocation1] ss:$2 sm:$0xff] %v2275
        %2551 = vst [vmem:[%s2524] ss:$2 sm:$0xff] %v2276
        %2552 = vst [vmem:[%s2526] ss:$2 sm:$0xff] %v2277
        %2553 = vst [vmem:[%s2528] ss:$2 sm:$0xff] %v2278
        %v2554 = vld.sshfl [vmem:[#allocation1] sm:$0xff pattern:$0x75316420]
        %v2555 = vld.sshfl [vmem:[#allocation1 + $0x8] sm:$0xff pattern:$0x75316420]
        %v2556 = vld.sshfl [vmem:[#allocation1 + $0x10] sm:$0xff pattern:$0x75316420]
        %v2557 = vld.sshfl [vmem:[#allocation1 + $0x18] sm:$0xff pattern:$0x75316420]
        %v2558 = vld.sshfl [vmem:[#allocation1 + $0x20] sm:$0xff pattern:$0x75316420]
        %v2559 = vld.sshfl [vmem:[#allocation1 + $0x28] sm:$0xff pattern:$0x75316420]
        %v2560 = vld.sshfl [vmem:[#allocation1 + $0x30] sm:$0xff pattern:$0x75316420]
        %v2561 = vld.sshfl [vmem:[#allocation1 + $0x38] sm:$0xff pattern:$0x75316420]
        %2562 = vst [vmem:[#allocation1] ss:$2 sm:$0xff] %v2279
        %2563 = vst [vmem:[%s2524] ss:$2 sm:$0xff] %v2280
        %2564 = vst [vmem:[%s2526] ss:$2 sm:$0xff] %v2281
        %2565 = vst [vmem:[%s2528] ss:$2 sm:$0xff] %v2282
        %v2566 = vld.sshfl [vmem:[#allocation1] sm:$0xff pattern:$0x75316420]
        %v2567 = vld.sshfl [vmem:[#allocation1 + $0x8] sm:$0xff pattern:$0x75316420]
        %v2568 = vld.sshfl [vmem:[#allocation1 + $0x10] sm:$0xff pattern:$0x75316420]
        %v2569 = vld.sshfl [vmem:[#allocation1 + $0x18] sm:$0xff pattern:$0x75316420]
        %v2570 = vld.sshfl [vmem:[#allocation1 + $0x20] sm:$0xff pattern:$0x75316420]
        %v2571 = vld.sshfl [vmem:[#allocation1 + $0x28] sm:$0xff pattern:$0x75316420]
        %v2572 = vld.sshfl [vmem:[#allocation1 + $0x30] sm:$0xff pattern:$0x75316420]
        %v2573 = vld.sshfl [vmem:[#allocation1 + $0x38] sm:$0xff pattern:$0x75316420]
        %2574 = vst [vmem:[#allocation1] ss:$2 sm:$0xff] %v2283
        %2575 = vst [vmem:[%s2524] ss:$2 sm:$0xff] %v2284
        %2576 = vst [vmem:[%s2526] ss:$2 sm:$0xff] %v2285
        %2577 = vst [vmem:[%s2528] ss:$2 sm:$0xff] %v2286
        %v2578 = vld.sshfl [vmem:[#allocation1] sm:$0xff pattern:$0x75316420]
        %v2579 = vld.sshfl [vmem:[#allocation1 + $0x8] sm:$0xff pattern:$0x75316420]
        %v2580 = vld.sshfl [vmem:[#allocation1 + $0x10] sm:$0xff pattern:$0x75316420]
        %v2581 = vld.sshfl [vmem:[#allocation1 + $0x18] sm:$0xff pattern:$0x75316420]
        %v2582 = vld.sshfl [vmem:[#allocation1 + $0x20] sm:$0xff pattern:$0x75316420]
        %v2583 = vld.sshfl [vmem:[#allocation1 + $0x28] sm:$0xff pattern:$0x75316420]
        %v2584 = vld.sshfl [vmem:[#allocation1 + $0x30] sm:$0xff pattern:$0x75316420]
        %v2585 = vld.sshfl [vmem:[#allocation1 + $0x38] sm:$0xff pattern:$0x75316420]
        %2586 = vst [vmem:[#allocation1] ss:$2 sm:$0xff] %v2287
        %2587 = vst [vmem:[%s2524] ss:$2 sm:$0xff] %v2288
        %2588 = vst [vmem:[%s2526] ss:$2 sm:$0xff] %v2289
        %2589 = vst [vmem:[%s2528] ss:$2 sm:$0xff] %v2290
        %v2590 = vld.sshfl [vmem:[#allocation1] sm:$0xff pattern:$0x75316420]
        %v2591 = vld.sshfl [vmem:[#allocation1 + $0x8] sm:$0xff pattern:$0x75316420]
        %v2592 = vld.sshfl [vmem:[#allocation1 + $0x10] sm:$0xff pattern:$0x75316420]
        %v2593 = vld.sshfl [vmem:[#allocation1 + $0x18] sm:$0xff pattern:$0x75316420]
        %v2594 = vld.sshfl [vmem:[#allocation1 + $0x20] sm:$0xff pattern:$0x75316420]
        %v2595 = vld.sshfl [vmem:[#allocation1 + $0x28] sm:$0xff pattern:$0x75316420]
        %v2596 = vld.sshfl [vmem:[#allocation1 + $0x30] sm:$0xff pattern:$0x75316420]
        %v2597 = vld.sshfl [vmem:[#allocation1 + $0x38] sm:$0xff pattern:$0x75316420]
        %2598 = vst [vmem:[#allocation1] ss:$2 sm:$0xff] %v2291
        %2599 = vst [vmem:[%s2524] ss:$2 sm:$0xff] %v2292
        %2600 = vst [vmem:[%s2526] ss:$2 sm:$0xff] %v2293
        %2601 = vst [vmem:[%s2528] ss:$2 sm:$0xff] %v2294
        %v2602 = vld.sshfl [vmem:[#allocation1] sm:$0xff pattern:$0x75316420]
        %v2603 = vld.sshfl [vmem:[#allocation1 + $0x8] sm:$0xff pattern:$0x75316420]
        %v2604 = vld.sshfl [vmem:[#allocation1 + $0x10] sm:$0xff pattern:$0x75316420]
        %v2605 = vld.sshfl [vmem:[#allocation1 + $0x18] sm:$0xff pattern:$0x75316420]
        %v2606 = vld.sshfl [vmem:[#allocation1 + $0x20] sm:$0xff pattern:$0x75316420]
        %v2607 = vld.sshfl [vmem:[#allocation1 + $0x28] sm:$0xff pattern:$0x75316420]
        %v2608 = vld.sshfl [vmem:[#allocation1 + $0x30] sm:$0xff pattern:$0x75316420]
        %v2609 = vld.sshfl [vmem:[#allocation1 + $0x38] sm:$0xff pattern:$0x75316420]
        %2610 = vst [vmem:[#allocation1] ss:$2 sm:$0xff] %v2295
        %2611 = vst [vmem:[%s2524] ss:$2 sm:$0xff] %v2296
        %2612 = vst [vmem:[%s2526] ss:$2 sm:$0xff] %v2297
        %2613 = vst [vmem:[%s2528] ss:$2 sm:$0xff] %v2298
        %v2614 = vld.sshfl [vmem:[#allocation1] sm:$0xff pattern:$0x75316420]
        %v2615 = vld.sshfl [vmem:[#allocation1 + $0x8] sm:$0xff pattern:$0x75316420]
        %v2616 = vld.sshfl [vmem:[#allocation1 + $0x10] sm:$0xff pattern:$0x75316420]
        %v2617 = vld.sshfl [vmem:[#allocation1 + $0x18] sm:$0xff pattern:$0x75316420]
        %v2618 = vld.sshfl [vmem:[#allocation1 + $0x20] sm:$0xff pattern:$0x75316420]
        %v2619 = vld.sshfl [vmem:[#allocation1 + $0x28] sm:$0xff pattern:$0x75316420]
        %v2620 = vld.sshfl [vmem:[#allocation1 + $0x30] sm:$0xff pattern:$0x75316420]
        %v2621 = vld.sshfl [vmem:[#allocation1 + $0x38] sm:$0xff pattern:$0x75316420]
        %2622 = vst [vmem:[#allocation1] ss:$2 sm:$0xff] %v2299
        %2623 = vst [vmem:[%s2524] ss:$2 sm:$0xff] %v2300
        %2624 = vst [vmem:[%s2526] ss:$2 sm:$0xff] %v2301
        %2625 = vst [vmem:[%s2528] ss:$2 sm:$0xff] %v2302
        %v2626 = vld.sshfl [vmem:[#allocation1] sm:$0xff pattern:$0x75316420]
        %v2627 = vld.sshfl [vmem:[#allocation1 + $0x8] sm:$0xff pattern:$0x75316420]
        %v2628 = vld.sshfl [vmem:[#allocation1 + $0x10] sm:$0xff pattern:$0x75316420]
        %v2629 = vld.sshfl [vmem:[#allocation1 + $0x18] sm:$0xff pattern:$0x75316420]
        %v2630 = vld.sshfl [vmem:[#allocation1 + $0x20] sm:$0xff pattern:$0x75316420]
        %v2631 = vld.sshfl [vmem:[#allocation1 + $0x28] sm:$0xff pattern:$0x75316420]
        %v2632 = vld.sshfl [vmem:[#allocation1 + $0x30] sm:$0xff pattern:$0x75316420]
        %v2633 = vld.sshfl [vmem:[#allocation1 + $0x38] sm:$0xff pattern:$0x75316420]
        %2634 = vst [vmem:[#allocation1] ss:$2 sm:$0xff] %v2303
        %2635 = vst [vmem:[%s2524] ss:$2 sm:$0xff] %v2304
        %2636 = vst [vmem:[%s2526] ss:$2 sm:$0xff] %v2305
        %2637 = vst [vmem:[%s2528] ss:$2 sm:$0xff] %v2306
        %v2638 = vld.sshfl [vmem:[#allocation1] sm:$0xff pattern:$0x75316420]
        %v2639 = vld.sshfl [vmem:[#allocation1 + $0x8] sm:$0xff pattern:$0x75316420]
        %v2640 = vld.sshfl [vmem:[#allocation1 + $0x10] sm:$0xff pattern:$0x75316420]
        %v2641 = vld.sshfl [vmem:[#allocation1 + $0x18] sm:$0xff pattern:$0x75316420]
        %v2642 = vld.sshfl [vmem:[#allocation1 + $0x20] sm:$0xff pattern:$0x75316420]
        %v2643 = vld.sshfl [vmem:[#allocation1 + $0x28] sm:$0xff pattern:$0x75316420]
        %v2644 = vld.sshfl [vmem:[#allocation1 + $0x30] sm:$0xff pattern:$0x75316420]
        %v2645 = vld.sshfl [vmem:[#allocation1 + $0x38] sm:$0xff pattern:$0x75316420]
        %2646 = vst [vmem:[#allocation1] ss:$2 sm:$0xff] %v2307
        %2647 = vst [vmem:[%s2524] ss:$2 sm:$0xff] %v2308
        %2648 = vst [vmem:[%s2526] ss:$2 sm:$0xff] %v2309
        %2649 = vst [vmem:[%s2528] ss:$2 sm:$0xff] %v2310
        %v2650 = vld.sshfl [vmem:[#allocation1] sm:$0xff pattern:$0x75316420]
        %v2651 = vld.sshfl [vmem:[#allocation1 + $0x8] sm:$0xff pattern:$0x75316420]
        %v2652 = vld.sshfl [vmem:[#allocation1 + $0x10] sm:$0xff pattern:$0x75316420]
        %v2653 = vld.sshfl [vmem:[#allocation1 + $0x18] sm:$0xff pattern:$0x75316420]
        %v2654 = vld.sshfl [vmem:[#allocation1 + $0x20] sm:$0xff pattern:$0x75316420]
        %v2655 = vld.sshfl [vmem:[#allocation1 + $0x28] sm:$0xff pattern:$0x75316420]
        %v2656 = vld.sshfl [vmem:[#allocation1 + $0x30] sm:$0xff pattern:$0x75316420]
        %v2657 = vld.sshfl [vmem:[#allocation1 + $0x38] sm:$0xff pattern:$0x75316420]
        %2658 = vst [vmem:[#allocation1] ss:$2 sm:$0xff] %v2311
        %2659 = vst [vmem:[%s2524] ss:$2 sm:$0xff] %v2312
        %2660 = vst [vmem:[%s2526] ss:$2 sm:$0xff] %v2313
        %2661 = vst [vmem:[%s2528] ss:$2 sm:$0xff] %v2314
        %v2662 = vld.sshfl [vmem:[#allocation1] sm:$0xff pattern:$0x75316420]
        %v2663 = vld.sshfl [vmem:[#allocation1 + $0x8] sm:$0xff pattern:$0x75316420]
        %v2664 = vld.sshfl [vmem:[#allocation1 + $0x10] sm:$0xff pattern:$0x75316420]
        %v2665 = vld.sshfl [vmem:[#allocation1 + $0x18] sm:$0xff pattern:$0x75316420]
        %v2666 = vld.sshfl [vmem:[#allocation1 + $0x20] sm:$0xff pattern:$0x75316420]
        %v2667 = vld.sshfl [vmem:[#allocation1 + $0x28] sm:$0xff pattern:$0x75316420]
        %v2668 = vld.sshfl [vmem:[#allocation1 + $0x30] sm:$0xff pattern:$0x75316420]
        %v2669 = vld.sshfl [vmem:[#allocation1 + $0x38] sm:$0xff pattern:$0x75316420]
        %2670 = vst [vmem:[#allocation1] ss:$2 sm:$0xff] %v2315
        %2671 = vst [vmem:[%s2524] ss:$2 sm:$0xff] %v2316
        %2672 = vst [vmem:[%s2526] ss:$2 sm:$0xff] %v2317
        %2673 = vst [vmem:[%s2528] ss:$2 sm:$0xff] %v2318
        %v2674 = vld.sshfl [vmem:[#allocation1] sm:$0xff pattern:$0x75316420]
        %v2675 = vld.sshfl [vmem:[#allocation1 + $0x8] sm:$0xff pattern:$0x75316420]
        %v2676 = vld.sshfl [vmem:[#allocation1 + $0x10] sm:$0xff pattern:$0x75316420]
        %v2677 = vld.sshfl [vmem:[#allocation1 + $0x18] sm:$0xff pattern:$0x75316420]
        %v2678 = vld.sshfl [vmem:[#allocation1 + $0x20] sm:$0xff pattern:$0x75316420]
        %v2679 = vld.sshfl [vmem:[#allocation1 + $0x28] sm:$0xff pattern:$0x75316420]
        %v2680 = vld.sshfl [vmem:[#allocation1 + $0x30] sm:$0xff pattern:$0x75316420]
        %v2681 = vld.sshfl [vmem:[#allocation1 + $0x38] sm:$0xff pattern:$0x75316420]
        %2682 = vst [vmem:[#allocation1] ss:$2 sm:$0xff] %v2319
        %2683 = vst [vmem:[%s2524] ss:$2 sm:$0xff] %v2320
        %2684 = vst [vmem:[%s2526] ss:$2 sm:$0xff] %v2321
        %2685 = vst [vmem:[%s2528] ss:$2 sm:$0xff] %v2322
        %v2686 = vld.sshfl [vmem:[#allocation1] sm:$0xff pattern:$0x75316420]
        %v2687 = vld.sshfl [vmem:[#allocation1 + $0x8] sm:$0xff pattern:$0x75316420]
        %v2688 = vld.sshfl [vmem:[#allocation1 + $0x10] sm:$0xff pattern:$0x75316420]
        %v2689 = vld.sshfl [vmem:[#allocation1 + $0x18] sm:$0xff pattern:$0x75316420]
        %v2690 = vld.sshfl [vmem:[#allocation1 + $0x20] sm:$0xff pattern:$0x75316420]
        %v2691 = vld.sshfl [vmem:[#allocation1 + $0x28] sm:$0xff pattern:$0x75316420]
        %v2692 = vld.sshfl [vmem:[#allocation1 + $0x30] sm:$0xff pattern:$0x75316420]
        %v2693 = vld.sshfl [vmem:[#allocation1 + $0x38] sm:$0xff pattern:$0x75316420]
        %2694 = vst [vmem:[#allocation1] ss:$2 sm:$0xff] %v2323
        %2695 = vst [vmem:[%s2524] ss:$2 sm:$0xff] %v2324
        %2696 = vst [vmem:[%s2526] ss:$2 sm:$0xff] %v2325
        %2697 = vst [vmem:[%s2528] ss:$2 sm:$0xff] %v2326
        %v2698 = vld.sshfl [vmem:[#allocation1] sm:$0xff pattern:$0x75316420]
        %v2699 = vld.sshfl [vmem:[#allocation1 + $0x8] sm:$0xff pattern:$0x75316420]
        %v2700 = vld.sshfl [vmem:[#allocation1 + $0x10] sm:$0xff pattern:$0x75316420]
        %v2701 = vld.sshfl [vmem:[#allocation1 + $0x18] sm:$0xff pattern:$0x75316420]
        %v2702 = vld.sshfl [vmem:[#allocation1 + $0x20] sm:$0xff pattern:$0x75316420]
        %v2703 = vld.sshfl [vmem:[#allocation1 + $0x28] sm:$0xff pattern:$0x75316420]
        %v2704 = vld.sshfl [vmem:[#allocation1 + $0x30] sm:$0xff pattern:$0x75316420]
        %v2705 = vld.sshfl [vmem:[#allocation1 + $0x38] sm:$0xff pattern:$0x75316420]
        %2706 = vst [vmem:[#allocation1] ss:$2 sm:$0xff] %v2327
        %2707 = vst [vmem:[%s2524] ss:$2 sm:$0xff] %v2328
        %2708 = vst [vmem:[%s2526] ss:$2 sm:$0xff] %v2329
        %2709 = vst [vmem:[%s2528] ss:$2 sm:$0xff] %v2330
        %v2710 = vld.sshfl [vmem:[#allocation1] sm:$0xff pattern:$0x75316420]
        %v2711 = vld.sshfl [vmem:[#allocation1 + $0x8] sm:$0xff pattern:$0x75316420]
        %v2712 = vld.sshfl [vmem:[#allocation1 + $0x10] sm:$0xff pattern:$0x75316420]
        %v2713 = vld.sshfl [vmem:[#allocation1 + $0x18] sm:$0xff pattern:$0x75316420]
        %v2714 = vld.sshfl [vmem:[#allocation1 + $0x20] sm:$0xff pattern:$0x75316420]
        %v2715 = vld.sshfl [vmem:[#allocation1 + $0x28] sm:$0xff pattern:$0x75316420]
        %v2716 = vld.sshfl [vmem:[#allocation1 + $0x30] sm:$0xff pattern:$0x75316420]
        %v2717 = vld.sshfl [vmem:[#allocation1 + $0x38] sm:$0xff pattern:$0x75316420]
        %2718 = vst [vmem:[#allocation1] ss:$2 sm:$0xff] %v2331
        %2719 = vst [vmem:[%s2524] ss:$2 sm:$0xff] %v2332
        %2720 = vst [vmem:[%s2526] ss:$2 sm:$0xff] %v2333
        %2721 = vst [vmem:[%s2528] ss:$2 sm:$0xff] %v2334
        %v2722 = vld.sshfl [vmem:[#allocation1] sm:$0xff pattern:$0x75316420]
        %v2723 = vld.sshfl [vmem:[#allocation1 + $0x8] sm:$0xff pattern:$0x75316420]
        %v2724 = vld.sshfl [vmem:[#allocation1 + $0x10] sm:$0xff pattern:$0x75316420]
        %v2725 = vld.sshfl [vmem:[#allocation1 + $0x18] sm:$0xff pattern:$0x75316420]
        %v2726 = vld.sshfl [vmem:[#allocation1 + $0x20] sm:$0xff pattern:$0x75316420]
        %v2727 = vld.sshfl [vmem:[#allocation1 + $0x28] sm:$0xff pattern:$0x75316420]
        %v2728 = vld.sshfl [vmem:[#allocation1 + $0x30] sm:$0xff pattern:$0x75316420]
        %v2729 = vld.sshfl [vmem:[#allocation1 + $0x38] sm:$0xff pattern:$0x75316420]
        %2730 = vst [vmem:[#allocation1] ss:$2 sm:$0xff] %v2335
        %2731 = vst [vmem:[%s2524] ss:$2 sm:$0xff] %v2336
        %2732 = vst [vmem:[%s2526] ss:$2 sm:$0xff] %v2337
        %2733 = vst [vmem:[%s2528] ss:$2 sm:$0xff] %v2338
        %v2734 = vld.sshfl [vmem:[#allocation1] sm:$0xff pattern:$0x75316420]
        %v2735 = vld.sshfl [vmem:[#allocation1 + $0x8] sm:$0xff pattern:$0x75316420]
        %v2736 = vld.sshfl [vmem:[#allocation1 + $0x10] sm:$0xff pattern:$0x75316420]
        %v2737 = vld.sshfl [vmem:[#allocation1 + $0x18] sm:$0xff pattern:$0x75316420]
        %v2738 = vld.sshfl [vmem:[#allocation1 + $0x20] sm:$0xff pattern:$0x75316420]
        %v2739 = vld.sshfl [vmem:[#allocation1 + $0x28] sm:$0xff pattern:$0x75316420]
        %v2740 = vld.sshfl [vmem:[#allocation1 + $0x30] sm:$0xff pattern:$0x75316420]
        %v2741 = vld.sshfl [vmem:[#allocation1 + $0x38] sm:$0xff pattern:$0x75316420]
        %2742 = vst [vmem:[#allocation1] ss:$2 sm:$0xff] %v2339
        %2743 = vst [vmem:[%s2524] ss:$2 sm:$0xff] %v2340
        %2744 = vst [vmem:[%s2526] ss:$2 sm:$0xff] %v2341
        %2745 = vst [vmem:[%s2528] ss:$2 sm:$0xff] %v2342
        %v2746 = vld.sshfl [vmem:[#allocation1] sm:$0xff pattern:$0x75316420]
        %v2747 = vld.sshfl [vmem:[#allocation1 + $0x8] sm:$0xff pattern:$0x75316420]
        %v2748 = vld.sshfl [vmem:[#allocation1 + $0x10] sm:$0xff pattern:$0x75316420]
        %v2749 = vld.sshfl [vmem:[#allocation1 + $0x18] sm:$0xff pattern:$0x75316420]
        %v2750 = vld.sshfl [vmem:[#allocation1 + $0x20] sm:$0xff pattern:$0x75316420]
        %v2751 = vld.sshfl [vmem:[#allocation1 + $0x28] sm:$0xff pattern:$0x75316420]
        %v2752 = vld.sshfl [vmem:[#allocation1 + $0x30] sm:$0xff pattern:$0x75316420]
        %v2753 = vld.sshfl [vmem:[#allocation1 + $0x38] sm:$0xff pattern:$0x75316420]
        %2754 = vst [vmem:[#allocation1] ss:$2 sm:$0xff] %v2343
        %2755 = vst [vmem:[%s2524] ss:$2 sm:$0xff] %v2344
        %2756 = vst [vmem:[%s2526] ss:$2 sm:$0xff] %v2345
        %2757 = vst [vmem:[%s2528] ss:$2 sm:$0xff] %v2346
        %v2758 = vld.sshfl [vmem:[#allocation1] sm:$0xff pattern:$0x75316420]
        %v2759 = vld.sshfl [vmem:[#allocation1 + $0x8] sm:$0xff pattern:$0x75316420]
        %v2760 = vld.sshfl [vmem:[#allocation1 + $0x10] sm:$0xff pattern:$0x75316420]
        %v2761 = vld.sshfl [vmem:[#allocation1 + $0x18] sm:$0xff pattern:$0x75316420]
        %v2762 = vld.sshfl [vmem:[#allocation1 + $0x20] sm:$0xff pattern:$0x75316420]
        %v2763 = vld.sshfl [vmem:[#allocation1 + $0x28] sm:$0xff pattern:$0x75316420]
        %v2764 = vld.sshfl [vmem:[#allocation1 + $0x30] sm:$0xff pattern:$0x75316420]
        %v2765 = vld.sshfl [vmem:[#allocation1 + $0x38] sm:$0xff pattern:$0x75316420]
        %2766 = vst [vmem:[#allocation1] ss:$2 sm:$0xff] %v2347
        %2767 = vst [vmem:[%s2524] ss:$2 sm:$0xff] %v2348
        %2768 = vst [vmem:[%s2526] ss:$2 sm:$0xff] %v2349
        %2769 = vst [vmem:[%s2528] ss:$2 sm:$0xff] %v2350
        %v2770 = vld.sshfl [vmem:[#allocation1] sm:$0xff pattern:$0x75316420]
        %v2771 = vld.sshfl [vmem:[#allocation1 + $0x8] sm:$0xff pattern:$0x75316420]
        %v2772 = vld.sshfl [vmem:[#allocation1 + $0x10] sm:$0xff pattern:$0x75316420]
        %v2773 = vld.sshfl [vmem:[#allocation1 + $0x18] sm:$0xff pattern:$0x75316420]
        %v2774 = vld.sshfl [vmem:[#allocation1 + $0x20] sm:$0xff pattern:$0x75316420]
        %v2775 = vld.sshfl [vmem:[#allocation1 + $0x28] sm:$0xff pattern:$0x75316420]
        %v2776 = vld.sshfl [vmem:[#allocation1 + $0x30] sm:$0xff pattern:$0x75316420]
        %v2777 = vld.sshfl [vmem:[#allocation1 + $0x38] sm:$0xff pattern:$0x75316420]
        %2778 = vst [vmem:[#allocation1] ss:$2 sm:$0xff] %v2351
        %2779 = vst [vmem:[%s2524] ss:$2 sm:$0xff] %v2352
        %2780 = vst [vmem:[%s2526] ss:$2 sm:$0xff] %v2353
        %2781 = vst [vmem:[%s2528] ss:$2 sm:$0xff] %v2354
        %v2782 = vld.sshfl [vmem:[#allocation1] sm:$0xff pattern:$0x75316420]
        %v2783 = vld.sshfl [vmem:[#allocation1 + $0x8] sm:$0xff pattern:$0x75316420]
        %v2784 = vld.sshfl [vmem:[#allocation1 + $0x10] sm:$0xff pattern:$0x75316420]
        %v2785 = vld.sshfl [vmem:[#allocation1 + $0x18] sm:$0xff pattern:$0x75316420]
        %v2786 = vld.sshfl [vmem:[#allocation1 + $0x20] sm:$0xff pattern:$0x75316420]
        %v2787 = vld.sshfl [vmem:[#allocation1 + $0x28] sm:$0xff pattern:$0x75316420]
        %v2788 = vld.sshfl [vmem:[#allocation1 + $0x30] sm:$0xff pattern:$0x75316420]
        %v2789 = vld.sshfl [vmem:[#allocation1 + $0x38] sm:$0xff pattern:$0x75316420]
        %2790 = vst [vmem:[#allocation1] ss:$2 sm:$0xff] %v2355
        %2791 = vst [vmem:[%s2524] ss:$2 sm:$0xff] %v2356
        %2792 = vst [vmem:[%s2526] ss:$2 sm:$0xff] %v2357
        %2793 = vst [vmem:[%s2528] ss:$2 sm:$0xff] %v2358
        %v2794 = vld.sshfl [vmem:[#allocation1] sm:$0xff pattern:$0x75316420]
        %v2795 = vld.sshfl [vmem:[#allocation1 + $0x8] sm:$0xff pattern:$0x75316420]
        %v2796 = vld.sshfl [vmem:[#allocation1 + $0x10] sm:$0xff pattern:$0x75316420]
        %v2797 = vld.sshfl [vmem:[#allocation1 + $0x18] sm:$0xff pattern:$0x75316420]
        %v2798 = vld.sshfl [vmem:[#allocation1 + $0x20] sm:$0xff pattern:$0x75316420]
        %v2799 = vld.sshfl [vmem:[#allocation1 + $0x28] sm:$0xff pattern:$0x75316420]
        %v2800 = vld.sshfl [vmem:[#allocation1 + $0x30] sm:$0xff pattern:$0x75316420]
        %v2801 = vld.sshfl [vmem:[#allocation1 + $0x38] sm:$0xff pattern:$0x75316420]
        %2802 = vst [vmem:[#allocation1] ss:$2 sm:$0xff] %v2359
        %2803 = vst [vmem:[%s2524] ss:$2 sm:$0xff] %v2360
        %2804 = vst [vmem:[%s2526] ss:$2 sm:$0xff] %v2361
        %2805 = vst [vmem:[%s2528] ss:$2 sm:$0xff] %v2362
        %v2806 = vld.sshfl [vmem:[#allocation1] sm:$0xff pattern:$0x75316420]
        %v2807 = vld.sshfl [vmem:[#allocation1 + $0x8] sm:$0xff pattern:$0x75316420]
        %v2808 = vld.sshfl [vmem:[#allocation1 + $0x10] sm:$0xff pattern:$0x75316420]
        %v2809 = vld.sshfl [vmem:[#allocation1 + $0x18] sm:$0xff pattern:$0x75316420]
        %v2810 = vld.sshfl [vmem:[#allocation1 + $0x20] sm:$0xff pattern:$0x75316420]
        %v2811 = vld.sshfl [vmem:[#allocation1 + $0x28] sm:$0xff pattern:$0x75316420]
        %v2812 = vld.sshfl [vmem:[#allocation1 + $0x30] sm:$0xff pattern:$0x75316420]
        %v2813 = vld.sshfl [vmem:[#allocation1 + $0x38] sm:$0xff pattern:$0x75316420]
        %2814 = vst [vmem:[#allocation1] ss:$2 sm:$0xff] %v2363
        %2815 = vst [vmem:[%s2524] ss:$2 sm:$0xff] %v2364
        %2816 = vst [vmem:[%s2526] ss:$2 sm:$0xff] %v2365
        %2817 = vst [vmem:[%s2528] ss:$2 sm:$0xff] %v2366
        %v2818 = vld.sshfl [vmem:[#allocation1] sm:$0xff pattern:$0x75316420]
        %v2819 = vld.sshfl [vmem:[#allocation1 + $0x8] sm:$0xff pattern:$0x75316420]
        %v2820 = vld.sshfl [vmem:[#allocation1 + $0x10] sm:$0xff pattern:$0x75316420]
        %v2821 = vld.sshfl [vmem:[#allocation1 + $0x18] sm:$0xff pattern:$0x75316420]
        %v2822 = vld.sshfl [vmem:[#allocation1 + $0x20] sm:$0xff pattern:$0x75316420]
        %v2823 = vld.sshfl [vmem:[#allocation1 + $0x28] sm:$0xff pattern:$0x75316420]
        %v2824 = vld.sshfl [vmem:[#allocation1 + $0x30] sm:$0xff pattern:$0x75316420]
        %v2825 = vld.sshfl [vmem:[#allocation1 + $0x38] sm:$0xff pattern:$0x75316420]
        %2826 = vst [vmem:[#allocation1] ss:$2 sm:$0xff] %v2367
        %2827 = vst [vmem:[%s2524] ss:$2 sm:$0xff] %v2368
        %2828 = vst [vmem:[%s2526] ss:$2 sm:$0xff] %v2369
        %2829 = vst [vmem:[%s2528] ss:$2 sm:$0xff] %v2370
        %v2830 = vld.sshfl [vmem:[#allocation1] sm:$0xff pattern:$0x75316420]
        %v2831 = vld.sshfl [vmem:[#allocation1 + $0x8] sm:$0xff pattern:$0x75316420]
        %v2832 = vld.sshfl [vmem:[#allocation1 + $0x10] sm:$0xff pattern:$0x75316420]
        %v2833 = vld.sshfl [vmem:[#allocation1 + $0x18] sm:$0xff pattern:$0x75316420]
        %v2834 = vld.sshfl [vmem:[#allocation1 + $0x20] sm:$0xff pattern:$0x75316420]
        %v2835 = vld.sshfl [vmem:[#allocation1 + $0x28] sm:$0xff pattern:$0x75316420]
        %v2836 = vld.sshfl [vmem:[#allocation1 + $0x30] sm:$0xff pattern:$0x75316420]
        %v2837 = vld.sshfl [vmem:[#allocation1 + $0x38] sm:$0xff pattern:$0x75316420]
        %2838 = vst [vmem:[#allocation1] ss:$2 sm:$0xff] %v2371
        %2839 = vst [vmem:[%s2524] ss:$2 sm:$0xff] %v2372
        %2840 = vst [vmem:[%s2526] ss:$2 sm:$0xff] %v2373
        %2841 = vst [vmem:[%s2528] ss:$2 sm:$0xff] %v2374
        %v2842 = vld.sshfl [vmem:[#allocation1] sm:$0xff pattern:$0x75316420]
        %v2843 = vld.sshfl [vmem:[#allocation1 + $0x8] sm:$0xff pattern:$0x75316420]
        %v2844 = vld.sshfl [vmem:[#allocation1 + $0x10] sm:$0xff pattern:$0x75316420]
        %v2845 = vld.sshfl [vmem:[#allocation1 + $0x18] sm:$0xff pattern:$0x75316420]
        %v2846 = vld.sshfl [vmem:[#allocation1 + $0x20] sm:$0xff pattern:$0x75316420]
        %v2847 = vld.sshfl [vmem:[#allocation1 + $0x28] sm:$0xff pattern:$0x75316420]
        %v2848 = vld.sshfl [vmem:[#allocation1 + $0x30] sm:$0xff pattern:$0x75316420]
        %v2849 = vld.sshfl [vmem:[#allocation1 + $0x38] sm:$0xff pattern:$0x75316420]
        %2850 = vst [vmem:[#allocation1] ss:$2 sm:$0xff] %v2375
        %2851 = vst [vmem:[%s2524] ss:$2 sm:$0xff] %v2376
        %2852 = vst [vmem:[%s2526] ss:$2 sm:$0xff] %v2377
        %2853 = vst [vmem:[%s2528] ss:$2 sm:$0xff] %v2378
        %v2854 = vld.sshfl [vmem:[#allocation1] sm:$0xff pattern:$0x75316420]
        %v2855 = vld.sshfl [vmem:[#allocation1 + $0x8] sm:$0xff pattern:$0x75316420]
        %v2856 = vld.sshfl [vmem:[#allocation1 + $0x10] sm:$0xff pattern:$0x75316420]
        %v2857 = vld.sshfl [vmem:[#allocation1 + $0x18] sm:$0xff pattern:$0x75316420]
        %v2858 = vld.sshfl [vmem:[#allocation1 + $0x20] sm:$0xff pattern:$0x75316420]
        %v2859 = vld.sshfl [vmem:[#allocation1 + $0x28] sm:$0xff pattern:$0x75316420]
        %v2860 = vld.sshfl [vmem:[#allocation1 + $0x30] sm:$0xff pattern:$0x75316420]
        %v2861 = vld.sshfl [vmem:[#allocation1 + $0x38] sm:$0xff pattern:$0x75316420]
        %2862 = vst [vmem:[#allocation1] ss:$2 sm:$0xff] %v2379
        %2863 = vst [vmem:[%s2524] ss:$2 sm:$0xff] %v2380
        %2864 = vst [vmem:[%s2526] ss:$2 sm:$0xff] %v2381
        %2865 = vst [vmem:[%s2528] ss:$2 sm:$0xff] %v2382
        %v2866 = vld.sshfl [vmem:[#allocation1] sm:$0xff pattern:$0x75316420]
        %v2867 = vld.sshfl [vmem:[#allocation1 + $0x8] sm:$0xff pattern:$0x75316420]
        %v2868 = vld.sshfl [vmem:[#allocation1 + $0x10] sm:$0xff pattern:$0x75316420]
        %v2869 = vld.sshfl [vmem:[#allocation1 + $0x18] sm:$0xff pattern:$0x75316420]
        %v2870 = vld.sshfl [vmem:[#allocation1 + $0x20] sm:$0xff pattern:$0x75316420]
        %v2871 = vld.sshfl [vmem:[#allocation1 + $0x28] sm:$0xff pattern:$0x75316420]
        %v2872 = vld.sshfl [vmem:[#allocation1 + $0x30] sm:$0xff pattern:$0x75316420]
        %v2873 = vld.sshfl [vmem:[#allocation1 + $0x38] sm:$0xff pattern:$0x75316420]
        %2874 = vst [vmem:[#allocation1] ss:$2 sm:$0xff] %v2383
        %2875 = vst [vmem:[%s2524] ss:$2 sm:$0xff] %v2384
        %2876 = vst [vmem:[%s2526] ss:$2 sm:$0xff] %v2385
        %2877 = vst [vmem:[%s2528] ss:$2 sm:$0xff] %v2386
        %v2878 = vld.sshfl [vmem:[#allocation1] sm:$0xff pattern:$0x75316420]
        %v2879 = vld.sshfl [vmem:[#allocation1 + $0x8] sm:$0xff pattern:$0x75316420]
        %v2880 = vld.sshfl [vmem:[#allocation1 + $0x10] sm:$0xff pattern:$0x75316420]
        %v2881 = vld.sshfl [vmem:[#allocation1 + $0x18] sm:$0xff pattern:$0x75316420]
        %v2882 = vld.sshfl [vmem:[#allocation1 + $0x20] sm:$0xff pattern:$0x75316420]
        %v2883 = vld.sshfl [vmem:[#allocation1 + $0x28] sm:$0xff pattern:$0x75316420]
        %v2884 = vld.sshfl [vmem:[#allocation1 + $0x30] sm:$0xff pattern:$0x75316420]
        %v2885 = vld.sshfl [vmem:[#allocation1 + $0x38] sm:$0xff pattern:$0x75316420]
        %2886 = vst [vmem:[#allocation1] ss:$2 sm:$0xff] %v2387
        %2887 = vst [vmem:[%s2524] ss:$2 sm:$0xff] %v2388
        %2888 = vst [vmem:[%s2526] ss:$2 sm:$0xff] %v2389
        %2889 = vst [vmem:[%s2528] ss:$2 sm:$0xff] %v2390
        %v2890 = vld.sshfl [vmem:[#allocation1] sm:$0xff pattern:$0x75316420]
        %v2891 = vld.sshfl [vmem:[#allocation1 + $0x8] sm:$0xff pattern:$0x75316420]
        %v2892 = vld.sshfl [vmem:[#allocation1 + $0x10] sm:$0xff pattern:$0x75316420]
        %v2893 = vld.sshfl [vmem:[#allocation1 + $0x18] sm:$0xff pattern:$0x75316420]
        %v2894 = vld.sshfl [vmem:[#allocation1 + $0x20] sm:$0xff pattern:$0x75316420]
        %v2895 = vld.sshfl [vmem:[#allocation1 + $0x28] sm:$0xff pattern:$0x75316420]
        %v2896 = vld.sshfl [vmem:[#allocation1 + $0x30] sm:$0xff pattern:$0x75316420]
        %v2897 = vld.sshfl [vmem:[#allocation1 + $0x38] sm:$0xff pattern:$0x75316420]
        %2898 = vst [vmem:[#allocation1] ss:$2 sm:$0xff] %v2391
        %2899 = vst [vmem:[%s2524] ss:$2 sm:$0xff] %v2392
        %2900 = vst [vmem:[%s2526] ss:$2 sm:$0xff] %v2393
        %2901 = vst [vmem:[%s2528] ss:$2 sm:$0xff] %v2394
        %v2902 = vld.sshfl [vmem:[#allocation1] sm:$0xff pattern:$0x75316420]
        %v2903 = vld.sshfl [vmem:[#allocation1 + $0x8] sm:$0xff pattern:$0x75316420]
        %v2904 = vld.sshfl [vmem:[#allocation1 + $0x10] sm:$0xff pattern:$0x75316420]
        %v2905 = vld.sshfl [vmem:[#allocation1 + $0x18] sm:$0xff pattern:$0x75316420]
        %v2906 = vld.sshfl [vmem:[#allocation1 + $0x20] sm:$0xff pattern:$0x75316420]
        %v2907 = vld.sshfl [vmem:[#allocation1 + $0x28] sm:$0xff pattern:$0x75316420]
        %v2908 = vld.sshfl [vmem:[#allocation1 + $0x30] sm:$0xff pattern:$0x75316420]
        %v2909 = vld.sshfl [vmem:[#allocation1 + $0x38] sm:$0xff pattern:$0x75316420]
        %v3166 = vsel %vm1114, %v2530, 0.0
        %v3167 = vsel %vm1115, %v2531, 0.0
        %v3168 = vsel %vm1116, %v2532, 0.0
        %v3169 = vsel %vm1117, %v2533, 0.0
        %v3170 = vsel %vm1118, %v2534, 0.0
        %v3171 = vsel %vm1119, %v2535, 0.0
        %v3172 = vsel %vm1120, %v2536, 0.0
        %v3173 = vsel %vm1121, %v2537, 0.0
        %v3174 = vsel %vm1122, %v2542, 0.0
        %v3175 = vsel %vm1123, %v2543, 0.0
        %v3176 = vsel %vm1124, %v2544, 0.0
        %v3177 = vsel %vm1125, %v2545, 0.0
        %v3178 = vsel %vm1126, %v2546, 0.0
        %v3179 = vsel %vm1127, %v2547, 0.0
        %v3180 = vsel %vm1128, %v2548, 0.0
        %v3181 = vsel %vm1129, %v2549, 0.0
        %v3182 = vsel %vm1130, %v2554, 0.0
        %v3183 = vsel %vm1131, %v2555, 0.0
        %v3184 = vsel %vm1132, %v2556, 0.0
        %v3185 = vsel %vm1133, %v2557, 0.0
        %v3186 = vsel %vm1134, %v2558, 0.0
        %v3187 = vsel %vm1135, %v2559, 0.0
        %v3188 = vsel %vm1136, %v2560, 0.0
        %v3189 = vsel %vm1137, %v2561, 0.0
        %v3190 = vsel %vm1138, %v2566, 0.0
        %v3191 = vsel %vm1139, %v2567, 0.0
        %v3192 = vsel %vm1140, %v2568, 0.0
        %v3193 = vsel %vm1141, %v2569, 0.0
        %v3194 = vsel %vm1142, %v2570, 0.0
        %v3195 = vsel %vm1143, %v2571, 0.0
        %v3196 = vsel %vm1144, %v2572, 0.0
        %v3197 = vsel %vm1145, %v2573, 0.0
        %v3198 = vsel %vm1146, %v2578, 0.0
        %v3199 = vsel %vm1147, %v2579, 0.0
        %v3200 = vsel %vm1148, %v2580, 0.0
        %v3201 = vsel %vm1149, %v2581, 0.0
        %v3202 = vsel %vm1150, %v2582, 0.0
        %v3203 = vsel %vm1151, %v2583, 0.0
        %v3204 = vsel %vm1152, %v2584, 0.0
        %v3205 = vsel %vm1153, %v2585, 0.0
        %v3206 = vsel %vm1154, %v2590, 0.0
        %v3207 = vsel %vm1155, %v2591, 0.0
        %v3208 = vsel %vm1156, %v2592, 0.0
        %v3209 = vsel %vm1157, %v2593, 0.0
        %v3210 = vsel %vm1158, %v2594, 0.0
        %v3211 = vsel %vm1159, %v2595, 0.0
        %v3212 = vsel %vm1160, %v2596, 0.0
        %v3213 = vsel %vm1161, %v2597, 0.0
        %v3214 = vsel %vm1162, %v2602, 0.0
        %v3215 = vsel %vm1163, %v2603, 0.0
        %v3216 = vsel %vm1164, %v2604, 0.0
        %v3217 = vsel %vm1165, %v2605, 0.0
        %v3218 = vsel %vm1166, %v2606, 0.0
        %v3219 = vsel %vm1167, %v2607, 0.0
        %v3220 = vsel %vm1168, %v2608, 0.0
        %v3221 = vsel %vm1169, %v2609, 0.0
        %v3222 = vsel %vm1170, %v2614, 0.0
        %v3223 = vsel %vm1171, %v2615, 0.0
        %v3224 = vsel %vm1172, %v2616, 0.0
        %v3225 = vsel %vm1173, %v2617, 0.0
        %v3226 = vsel %vm1174, %v2618, 0.0
        %v3227 = vsel %vm1175, %v2619, 0.0
        %v3228 = vsel %vm1176, %v2620, 0.0
        %v3229 = vsel %vm1177, %v2621, 0.0
        %v3230 = vsel %vm1178, %v2626, 0.0
        %v3231 = vsel %vm1179, %v2627, 0.0
        %v3232 = vsel %vm1180, %v2628, 0.0
        %v3233 = vsel %vm1181, %v2629, 0.0
        %v3234 = vsel %vm1182, %v2630, 0.0
        %v3235 = vsel %vm1183, %v2631, 0.0
        %v3236 = vsel %vm1184, %v2632, 0.0
        %v3237 = vsel %vm1185, %v2633, 0.0
        %v3238 = vsel %vm1186, %v2638, 0.0
        %v3239 = vsel %vm1187, %v2639, 0.0
        %v3240 = vsel %vm1188, %v2640, 0.0
        %v3241 = vsel %vm1189, %v2641, 0.0
        %v3242 = vsel %vm1190, %v2642, 0.0
        %v3243 = vsel %vm1191, %v2643, 0.0
        %v3244 = vsel %vm1192, %v2644, 0.0
        %v3245 = vsel %vm1193, %v2645, 0.0
        %v3246 = vsel %vm1194, %v2650, 0.0
        %v3247 = vsel %vm1195, %v2651, 0.0
        %v3248 = vsel %vm1196, %v2652, 0.0
        %v3249 = vsel %vm1197, %v2653, 0.0
        %v3250 = vsel %vm1198, %v2654, 0.0
        %v3251 = vsel %vm1199, %v2655, 0.0
        %v3252 = vsel %vm1200, %v2656, 0.0
        %v3253 = vsel %vm1201, %v2657, 0.0
        %v3254 = vsel %vm1202, %v2662, 0.0
        %v3255 = vsel %vm1203, %v2663, 0.0
        %v3256 = vsel %vm1204, %v2664, 0.0
        %v3257 = vsel %vm1205, %v2665, 0.0
        %v3258 = vsel %vm1206, %v2666, 0.0
        %v3259 = vsel %vm1207, %v2667, 0.0
        %v3260 = vsel %vm1208, %v2668, 0.0
        %v3261 = vsel %vm1209, %v2669, 0.0
        %v3262 = vsel %vm1210, %v2674, 0.0
        %v3263 = vsel %vm1211, %v2675, 0.0
        %v3264 = vsel %vm1212, %v2676, 0.0
        %v3265 = vsel %vm1213, %v2677, 0.0
        %v3266 = vsel %vm1214, %v2678, 0.0
        %v3267 = vsel %vm1215, %v2679, 0.0
        %v3268 = vsel %vm1216, %v2680, 0.0
        %v3269 = vsel %vm1217, %v2681, 0.0
        %v3270 = vsel %vm1218, %v2686, 0.0
        %v3271 = vsel %vm1219, %v2687, 0.0
        %v3272 = vsel %vm1220, %v2688, 0.0
        %v3273 = vsel %vm1221, %v2689, 0.0
        %v3274 = vsel %vm1222, %v2690, 0.0
        %v3275 = vsel %vm1223, %v2691, 0.0
        %v3276 = vsel %vm1224, %v2692, 0.0
        %v3277 = vsel %vm1225, %v2693, 0.0
        %v3278 = vsel %vm1226, %v2698, 0.0
        %v3279 = vsel %vm1227, %v2699, 0.0
        %v3280 = vsel %vm1228, %v2700, 0.0
        %v3281 = vsel %vm1229, %v2701, 0.0
        %v3282 = vsel %vm1230, %v2702, 0.0
        %v3283 = vsel %vm1231, %v2703, 0.0
        %v3284 = vsel %vm1232, %v2704, 0.0
        %v3285 = vsel %vm1233, %v2705, 0.0
        %v3286 = vsel %vm1234, %v2710, 0.0
        %v3287 = vsel %vm1235, %v2711, 0.0
        %v3288 = vsel %vm1236, %v2712, 0.0
        %v3289 = vsel %vm1237, %v2713, 0.0
        %v3290 = vsel %vm1238, %v2714, 0.0
        %v3291 = vsel %vm1239, %v2715, 0.0
        %v3292 = vsel %vm1240, %v2716, 0.0
        %v3293 = vsel %vm1241, %v2717, 0.0
        %v3294 = vsel %vm1242, %v2722, 0.0
        %v3295 = vsel %vm1243, %v2723, 0.0
        %v3296 = vsel %vm1244, %v2724, 0.0
        %v3297 = vsel %vm1245, %v2725, 0.0
        %v3298 = vsel %vm1246, %v2726, 0.0
        %v3299 = vsel %vm1247, %v2727, 0.0
        %v3300 = vsel %vm1248, %v2728, 0.0
        %v3301 = vsel %vm1249, %v2729, 0.0
        %v3302 = vsel %vm1250, %v2734, 0.0
        %v3303 = vsel %vm1251, %v2735, 0.0
        %v3304 = vsel %vm1252, %v2736, 0.0
        %v3305 = vsel %vm1253, %v2737, 0.0
        %v3306 = vsel %vm1254, %v2738, 0.0
        %v3307 = vsel %vm1255, %v2739, 0.0
        %v3308 = vsel %vm1256, %v2740, 0.0
        %v3309 = vsel %vm1257, %v2741, 0.0
        %v3310 = vsel %vm1258, %v2746, 0.0
        %v3311 = vsel %vm1259, %v2747, 0.0
        %v3312 = vsel %vm1260, %v2748, 0.0
        %v3313 = vsel %vm1261, %v2749, 0.0
        %v3314 = vsel %vm1262, %v2750, 0.0
        %v3315 = vsel %vm1263, %v2751, 0.0
        %v3316 = vsel %vm1264, %v2752, 0.0
        %v3317 = vsel %vm1265, %v2753, 0.0
        %v3318 = vsel %vm1266, %v2758, 0.0
        %v3319 = vsel %vm1267, %v2759, 0.0
        %v3320 = vsel %vm1268, %v2760, 0.0
        %v3321 = vsel %vm1269, %v2761, 0.0
        %v3322 = vsel %vm1270, %v2762, 0.0
        %v3323 = vsel %vm1271, %v2763, 0.0
        %v3324 = vsel %vm1272, %v2764, 0.0
        %v3325 = vsel %vm1273, %v2765, 0.0
        %v3326 = vsel %vm1274, %v2770, 0.0
        %v3327 = vsel %vm1275, %v2771, 0.0
        %v3328 = vsel %vm1276, %v2772, 0.0
        %v3329 = vsel %vm1277, %v2773, 0.0
        %v3330 = vsel %vm1278, %v2774, 0.0
        %v3331 = vsel %vm1279, %v2775, 0.0
        %v3332 = vsel %vm1280, %v2776, 0.0
        %v3333 = vsel %vm1281, %v2777, 0.0
        %v3334 = vsel %vm1282, %v2782, 0.0
        %v3335 = vsel %vm1283, %v2783, 0.0
        %v3336 = vsel %vm1284, %v2784, 0.0
        %v3337 = vsel %vm1285, %v2785, 0.0
        %v3338 = vsel %vm1286, %v2786, 0.0
        %v3339 = vsel %vm1287, %v2787, 0.0
        %v3340 = vsel %vm1288, %v2788, 0.0
        %v3341 = vsel %vm1289, %v2789, 0.0
        %v3342 = vsel %vm1290, %v2794, 0.0
        %v3343 = vsel %vm1291, %v2795, 0.0
        %v3344 = vsel %vm1292, %v2796, 0.0
        %v3345 = vsel %vm1293, %v2797, 0.0
        %v3346 = vsel %vm1294, %v2798, 0.0
        %v3347 = vsel %vm1295, %v2799, 0.0
        %v3348 = vsel %vm1296, %v2800, 0.0
        %v3349 = vsel %vm1297, %v2801, 0.0
        %v3350 = vsel %vm1298, %v2806, 0.0
        %v3351 = vsel %vm1299, %v2807, 0.0
        %v3352 = vsel %vm1300, %v2808, 0.0
        %v3353 = vsel %vm1301, %v2809, 0.0
        %v3354 = vsel %vm1302, %v2810, 0.0
        %v3355 = vsel %vm1303, %v2811, 0.0
        %v3356 = vsel %vm1304, %v2812, 0.0
        %v3357 = vsel %vm1305, %v2813, 0.0
        %v3358 = vsel %vm1306, %v2818, 0.0
        %v3359 = vsel %vm1307, %v2819, 0.0
        %v3360 = vsel %vm1308, %v2820, 0.0
        %v3361 = vsel %vm1309, %v2821, 0.0
        %v3362 = vsel %vm1310, %v2822, 0.0
        %v3363 = vsel %vm1311, %v2823, 0.0
        %v3364 = vsel %vm1312, %v2824, 0.0
        %v3365 = vsel %vm1313, %v2825, 0.0
        %v3366 = vsel %vm1314, %v2830, 0.0
        %v3367 = vsel %vm1315, %v2831, 0.0
        %v3368 = vsel %vm1316, %v2832, 0.0
        %v3369 = vsel %vm1317, %v2833, 0.0
        %v3370 = vsel %vm1318, %v2834, 0.0
        %v3371 = vsel %vm1319, %v2835, 0.0
        %v3372 = vsel %vm1320, %v2836, 0.0
        %v3373 = vsel %vm1321, %v2837, 0.0
        %v3374 = vsel %vm1322, %v2842, 0.0
        %v3375 = vsel %vm1323, %v2843, 0.0
        %v3376 = vsel %vm1324, %v2844, 0.0
        %v3377 = vsel %vm1325, %v2845, 0.0
        %v3378 = vsel %vm1326, %v2846, 0.0
        %v3379 = vsel %vm1327, %v2847, 0.0
        %v3380 = vsel %vm1328, %v2848, 0.0
        %v3381 = vsel %vm1329, %v2849, 0.0
        %v3382 = vsel %vm1330, %v2854, 0.0
        %v3383 = vsel %vm1331, %v2855, 0.0
        %v3384 = vsel %vm1332, %v2856, 0.0
        %v3385 = vsel %vm1333, %v2857, 0.0
        %v3386 = vsel %vm1334, %v2858, 0.0
        %v3387 = vsel %vm1335, %v2859, 0.0
        %v3388 = vsel %vm1336, %v2860, 0.0
        %v3389 = vsel %vm1337, %v2861, 0.0
        %v3390 = vsel %vm1338, %v2866, 0.0
        %v3391 = vsel %vm1339, %v2867, 0.0
        %v3392 = vsel %vm1340, %v2868, 0.0
        %v3393 = vsel %vm1341, %v2869, 0.0
        %v3394 = vsel %vm1342, %v2870, 0.0
        %v3395 = vsel %vm1343, %v2871, 0.0
        %v3396 = vsel %vm1344, %v2872, 0.0
        %v3397 = vsel %vm1345, %v2873, 0.0
        %v3398 = vsel %vm1346, %v2878, 0.0
        %v3399 = vsel %vm1347, %v2879, 0.0
        %v3400 = vsel %vm1348, %v2880, 0.0
        %v3401 = vsel %vm1349, %v2881, 0.0
        %v3402 = vsel %vm1350, %v2882, 0.0
        %v3403 = vsel %vm1351, %v2883, 0.0
        %v3404 = vsel %vm1352, %v2884, 0.0
        %v3405 = vsel %vm1353, %v2885, 0.0
        %v3406 = vsel %vm1354, %v2890, 0.0
        %v3407 = vsel %vm1355, %v2891, 0.0
        %v3408 = vsel %vm1356, %v2892, 0.0
        %v3409 = vsel %vm1357, %v2893, 0.0
        %v3410 = vsel %vm1358, %v2894, 0.0
        %v3411 = vsel %vm1359, %v2895, 0.0
        %v3412 = vsel %vm1360, %v2896, 0.0
        %v3413 = vsel %vm1361, %v2897, 0.0
        %v3414 = vsel %vm1362, %v2902, 0.0
        %v3415 = vsel %vm1363, %v2903, 0.0
        %v3416 = vsel %vm1364, %v2904, 0.0
        %v3417 = vsel %vm1365, %v2905, 0.0
        %v3418 = vsel %vm1366, %v2906, 0.0
        %v3419 = vsel %vm1367, %v2907, 0.0
        %v3420 = vsel %vm1368, %v2908, 0.0
        %v3421 = vsel %vm1369, %v2909, 0.0
        %v3422 = vperm.slane %v3166, 0
        %v3423 = vperm.slane %v3167, 0
        %v3424 = vperm.slane %v3168, 0
        %v3425 = vperm.slane %v3169, 0
        %v3426 = vperm.slane %v3170, 0
        %v3427 = vperm.slane %v3171, 0
        %v3428 = vperm.slane %v3172, 0
        %v3429 = vperm.slane %v3173, 0
        %v3430 = vperm.slane %v3174, 0
        %v3431 = vperm.slane %v3175, 0
        %v3432 = vperm.slane %v3176, 0
        %v3433 = vperm.slane %v3177, 0
        %v3434 = vperm.slane %v3178, 0
        %v3435 = vperm.slane %v3179, 0
        %v3436 = vperm.slane %v3180, 0
        %v3437 = vperm.slane %v3181, 0
        %v3438 = vperm.slane %v3182, 0
        %v3439 = vperm.slane %v3183, 0
        %v3440 = vperm.slane %v3184, 0
        %v3441 = vperm.slane %v3185, 0
        %v3442 = vperm.slane %v3186, 0
        %v3443 = vperm.slane %v3187, 0
        %v3444 = vperm.slane %v3188, 0
        %v3445 = vperm.slane %v3189, 0
        %v3446 = vperm.slane %v3190, 0
        %v3447 = vperm.slane %v3191, 0
        %v3448 = vperm.slane %v3192, 0
        %v3449 = vperm.slane %v3193, 0
        %v3450 = vperm.slane %v3194, 0
        %v3451 = vperm.slane %v3195, 0
        %v3452 = vperm.slane %v3196, 0
        %v3453 = vperm.slane %v3197, 0
        %v3454 = vperm.slane %v3198, 0
        %v3455 = vperm.slane %v3199, 0
        %v3456 = vperm.slane %v3200, 0
        %v3457 = vperm.slane %v3201, 0
        %v3458 = vperm.slane %v3202, 0
        %v3459 = vperm.slane %v3203, 0
        %v3460 = vperm.slane %v3204, 0
        %v3461 = vperm.slane %v3205, 0
        %v3462 = vperm.slane %v3206, 0
        %v3463 = vperm.slane %v3207, 0
        %v3464 = vperm.slane %v3208, 0
        %v3465 = vperm.slane %v3209, 0
        %v3466 = vperm.slane %v3210, 0
        %v3467 = vperm.slane %v3211, 0
        %v3468 = vperm.slane %v3212, 0
        %v3469 = vperm.slane %v3213, 0
        %v3470 = vperm.slane %v3214, 0
        %v3471 = vperm.slane %v3215, 0
        %v3472 = vperm.slane %v3216, 0
        %v3473 = vperm.slane %v3217, 0
        %v3474 = vperm.slane %v3218, 0
        %v3475 = vperm.slane %v3219, 0
        %v3476 = vperm.slane %v3220, 0
        %v3477 = vperm.slane %v3221, 0
        %v3478 = vperm.slane %v3222, 0
        %v3479 = vperm.slane %v3223, 0
        %v3480 = vperm.slane %v3224, 0
        %v3481 = vperm.slane %v3225, 0
        %v3482 = vperm.slane %v3226, 0
        %v3483 = vperm.slane %v3227, 0
        %v3484 = vperm.slane %v3228, 0
        %v3485 = vperm.slane %v3229, 0
        %v3486 = vperm.slane %v3230, 0
        %v3487 = vperm.slane %v3231, 0
        %v3488 = vperm.slane %v3232, 0
        %v3489 = vperm.slane %v3233, 0
        %v3490 = vperm.slane %v3234, 0
        %v3491 = vperm.slane %v3235, 0
        %v3492 = vperm.slane %v3236, 0
        %v3493 = vperm.slane %v3237, 0
        %v3494 = vperm.slane %v3238, 0
        %v3495 = vperm.slane %v3239, 0
        %v3496 = vperm.slane %v3240, 0
        %v3497 = vperm.slane %v3241, 0
        %v3498 = vperm.slane %v3242, 0
        %v3499 = vperm.slane %v3243, 0
        %v3500 = vperm.slane %v3244, 0
        %v3501 = vperm.slane %v3245, 0
        %v3502 = vperm.slane %v3246, 0
        %v3503 = vperm.slane %v3247, 0
        %v3504 = vperm.slane %v3248, 0
        %v3505 = vperm.slane %v3249, 0
        %v3506 = vperm.slane %v3250, 0
        %v3507 = vperm.slane %v3251, 0
        %v3508 = vperm.slane %v3252, 0
        %v3509 = vperm.slane %v3253, 0
        %v3510 = vperm.slane %v3254, 0
        %v3511 = vperm.slane %v3255, 0
        %v3512 = vperm.slane %v3256, 0
        %v3513 = vperm.slane %v3257, 0
        %v3514 = vperm.slane %v3258, 0
        %v3515 = vperm.slane %v3259, 0
        %v3516 = vperm.slane %v3260, 0
        %v3517 = vperm.slane %v3261, 0
        %v3518 = vperm.slane %v3262, 0
        %v3519 = vperm.slane %v3263, 0
        %v3520 = vperm.slane %v3264, 0
        %v3521 = vperm.slane %v3265, 0
        %v3522 = vperm.slane %v3266, 0
        %v3523 = vperm.slane %v3267, 0
        %v3524 = vperm.slane %v3268, 0
        %v3525 = vperm.slane %v3269, 0
        %v3526 = vperm.slane %v3270, 0
        %v3527 = vperm.slane %v3271, 0
        %v3528 = vperm.slane %v3272, 0
        %v3529 = vperm.slane %v3273, 0
        %v3530 = vperm.slane %v3274, 0
        %v3531 = vperm.slane %v3275, 0
        %v3532 = vperm.slane %v3276, 0
        %v3533 = vperm.slane %v3277, 0
        %v3534 = vperm.slane %v3278, 0
        %v3535 = vperm.slane %v3279, 0
        %v3536 = vperm.slane %v3280, 0
        %v3537 = vperm.slane %v3281, 0
        %v3538 = vperm.slane %v3282, 0
        %v3539 = vperm.slane %v3283, 0
        %v3540 = vperm.slane %v3284, 0
        %v3541 = vperm.slane %v3285, 0
        %v3542 = vperm.slane %v3286, 0
        %v3543 = vperm.slane %v3287, 0
        %v3544 = vperm.slane %v3288, 0
        %v3545 = vperm.slane %v3289, 0
        %v3546 = vperm.slane %v3290, 0
        %v3547 = vperm.slane %v3291, 0
        %v3548 = vperm.slane %v3292, 0
        %v3549 = vperm.slane %v3293, 0
        %v3550 = vperm.slane %v3294, 0
        %v3551 = vperm.slane %v3295, 0
        %v3552 = vperm.slane %v3296, 0
        %v3553 = vperm.slane %v3297, 0
        %v3554 = vperm.slane %v3298, 0
        %v3555 = vperm.slane %v3299, 0
        %v3556 = vperm.slane %v3300, 0
        %v3557 = vperm.slane %v3301, 0
        %v3558 = vperm.slane %v3302, 0
        %v3559 = vperm.slane %v3303, 0
        %v3560 = vperm.slane %v3304, 0
        %v3561 = vperm.slane %v3305, 0
        %v3562 = vperm.slane %v3306, 0
        %v3563 = vperm.slane %v3307, 0
        %v3564 = vperm.slane %v3308, 0
        %v3565 = vperm.slane %v3309, 0
        %v3566 = vperm.slane %v3310, 0
        %v3567 = vperm.slane %v3311, 0
        %v3568 = vperm.slane %v3312, 0
        %v3569 = vperm.slane %v3313, 0
        %v3570 = vperm.slane %v3314, 0
        %v3571 = vperm.slane %v3315, 0
        %v3572 = vperm.slane %v3316, 0
        %v3573 = vperm.slane %v3317, 0
        %v3574 = vperm.slane %v3318, 0
        %v3575 = vperm.slane %v3319, 0
        %v3576 = vperm.slane %v3320, 0
        %v3577 = vperm.slane %v3321, 0
        %v3578 = vperm.slane %v3322, 0
        %v3579 = vperm.slane %v3323, 0
        %v3580 = vperm.slane %v3324, 0
        %v3581 = vperm.slane %v3325, 0
        %v3582 = vperm.slane %v3326, 0
        %v3583 = vperm.slane %v3327, 0
        %v3584 = vperm.slane %v3328, 0
        %v3585 = vperm.slane %v3329, 0
        %v3586 = vperm.slane %v3330, 0
        %v3587 = vperm.slane %v3331, 0
        %v3588 = vperm.slane %v3332, 0
        %v3589 = vperm.slane %v3333, 0
        %v3590 = vperm.slane %v3334, 0
        %v3591 = vperm.slane %v3335, 0
        %v3592 = vperm.slane %v3336, 0
        %v3593 = vperm.slane %v3337, 0
        %v3594 = vperm.slane %v3338, 0
        %v3595 = vperm.slane %v3339, 0
        %v3596 = vperm.slane %v3340, 0
        %v3597 = vperm.slane %v3341, 0
        %v3598 = vperm.slane %v3342, 0
        %v3599 = vperm.slane %v3343, 0
        %v3600 = vperm.slane %v3344, 0
        %v3601 = vperm.slane %v3345, 0
        %v3602 = vperm.slane %v3346, 0
        %v3603 = vperm.slane %v3347, 0
        %v3604 = vperm.slane %v3348, 0
        %v3605 = vperm.slane %v3349, 0
        %v3606 = vperm.slane %v3350, 0
        %v3607 = vperm.slane %v3351, 0
        %v3608 = vperm.slane %v3352, 0
        %v3609 = vperm.slane %v3353, 0
        %v3610 = vperm.slane %v3354, 0
        %v3611 = vperm.slane %v3355, 0
        %v3612 = vperm.slane %v3356, 0
        %v3613 = vperm.slane %v3357, 0
        %v3614 = vperm.slane %v3358, 0
        %v3615 = vperm.slane %v3359, 0
        %v3616 = vperm.slane %v3360, 0
        %v3617 = vperm.slane %v3361, 0
        %v3618 = vperm.slane %v3362, 0
        %v3619 = vperm.slane %v3363, 0
        %v3620 = vperm.slane %v3364, 0
        %v3621 = vperm.slane %v3365, 0
        %v3622 = vperm.slane %v3366, 0
        %v3623 = vperm.slane %v3367, 0
        %v3624 = vperm.slane %v3368, 0
        %v3625 = vperm.slane %v3369, 0
        %v3626 = vperm.slane %v3370, 0
        %v3627 = vperm.slane %v3371, 0
        %v3628 = vperm.slane %v3372, 0
        %v3629 = vperm.slane %v3373, 0
        %v3630 = vperm.slane %v3374, 0
        %v3631 = vperm.slane %v3375, 0
        %v3632 = vperm.slane %v3376, 0
        %v3633 = vperm.slane %v3377, 0
        %v3634 = vperm.slane %v3378, 0
        %v3635 = vperm.slane %v3379, 0
        %v3636 = vperm.slane %v3380, 0
        %v3637 = vperm.slane %v3381, 0
        %v3638 = vperm.slane %v3382, 0
        %v3639 = vperm.slane %v3383, 0
        %v3640 = vperm.slane %v3384, 0
        %v3641 = vperm.slane %v3385, 0
        %v3642 = vperm.slane %v3386, 0
        %v3643 = vperm.slane %v3387, 0
        %v3644 = vperm.slane %v3388, 0
        %v3645 = vperm.slane %v3389, 0
        %v3646 = vperm.slane %v3390, 0
        %v3647 = vperm.slane %v3391, 0
        %v3648 = vperm.slane %v3392, 0
        %v3649 = vperm.slane %v3393, 0
        %v3650 = vperm.slane %v3394, 0
        %v3651 = vperm.slane %v3395, 0
        %v3652 = vperm.slane %v3396, 0
        %v3653 = vperm.slane %v3397, 0
        %v3654 = vperm.slane %v3398, 0
        %v3655 = vperm.slane %v3399, 0
        %v3656 = vperm.slane %v3400, 0
        %v3657 = vperm.slane %v3401, 0
        %v3658 = vperm.slane %v3402, 0
        %v3659 = vperm.slane %v3403, 0
        %v3660 = vperm.slane %v3404, 0
        %v3661 = vperm.slane %v3405, 0
        %v3662 = vperm.slane %v3406, 0
        %v3663 = vperm.slane %v3407, 0
        %v3664 = vperm.slane %v3408, 0
        %v3665 = vperm.slane %v3409, 0
        %v3666 = vperm.slane %v3410, 0
        %v3667 = vperm.slane %v3411, 0
        %v3668 = vperm.slane %v3412, 0
        %v3669 = vperm.slane %v3413, 0
        %v3670 = vperm.slane %v3414, 0
        %v3671 = vperm.slane %v3415, 0
        %v3672 = vperm.slane %v3416, 0
        %v3673 = vperm.slane %v3417, 0
        %v3674 = vperm.slane %v3418, 0
        %v3675 = vperm.slane %v3419, 0
        %v3676 = vperm.slane %v3420, 0
        %v3677 = vperm.slane %v3421, 0
        %v3678 = vmul.f32 %v2011, %v3422
        %v3679 = vmul.f32 %v2012, %v3423
        %v3680 = vmul.f32 %v2013, %v3424
        %v3681 = vmul.f32 %v2014, %v3425
        %v3682 = vmul.f32 %v2015, %v3426
        %v3683 = vmul.f32 %v2016, %v3427
        %v3684 = vmul.f32 %v2017, %v3428
        %v3685 = vmul.f32 %v2018, %v3429
        %v3686 = vmul.f32 %v2019, %v3430
        %v3687 = vmul.f32 %v2020, %v3431
        %v3688 = vmul.f32 %v2021, %v3432
        %v3689 = vmul.f32 %v2022, %v3433
        %v3690 = vmul.f32 %v2023, %v3434
        %v3691 = vmul.f32 %v2024, %v3435
        %v3692 = vmul.f32 %v2025, %v3436
        %v3693 = vmul.f32 %v2026, %v3437
        %v3694 = vmul.f32 %v2027, %v3438
        %v3695 = vmul.f32 %v2028, %v3439
        %v3696 = vmul.f32 %v2029, %v3440
        %v3697 = vmul.f32 %v2030, %v3441
        %v3698 = vmul.f32 %v2031, %v3442
        %v3699 = vmul.f32 %v2032, %v3443
        %v3700 = vmul.f32 %v2033, %v3444
        %v3701 = vmul.f32 %v2034, %v3445
        %v3702 = vmul.f32 %v2035, %v3446
        %v3703 = vmul.f32 %v2036, %v3447
        %v3704 = vmul.f32 %v2037, %v3448
        %v3705 = vmul.f32 %v2038, %v3449
        %v3706 = vmul.f32 %v2039, %v3450
        %v3707 = vmul.f32 %v2040, %v3451
        %v3708 = vmul.f32 %v2041, %v3452
        %v3709 = vmul.f32 %v2042, %v3453
        %v3710 = vmul.f32 %v2043, %v3454
        %v3711 = vmul.f32 %v2044, %v3455
        %v3712 = vmul.f32 %v2045, %v3456
        %v3713 = vmul.f32 %v2046, %v3457
        %v3714 = vmul.f32 %v2047, %v3458
        %v3715 = vmul.f32 %v2048, %v3459
        %v3716 = vmul.f32 %v2049, %v3460
        %v3717 = vmul.f32 %v2050, %v3461
        %v3718 = vmul.f32 %v2051, %v3462
        %v3719 = vmul.f32 %v2052, %v3463
        %v3720 = vmul.f32 %v2053, %v3464
        %v3721 = vmul.f32 %v2054, %v3465
        %v3722 = vmul.f32 %v2055, %v3466
        %v3723 = vmul.f32 %v2056, %v3467
        %v3724 = vmul.f32 %v2057, %v3468
        %v3725 = vmul.f32 %v2058, %v3469
        %v3726 = vmul.f32 %v2059, %v3470
        %v3727 = vmul.f32 %v2060, %v3471
        %v3728 = vmul.f32 %v2061, %v3472
        %v3729 = vmul.f32 %v2062, %v3473
        %v3730 = vmul.f32 %v2063, %v3474
        %v3731 = vmul.f32 %v2064, %v3475
        %v3732 = vmul.f32 %v2065, %v3476
        %v3733 = vmul.f32 %v2066, %v3477
        %v3734 = vmul.f32 %v2067, %v3478
        %v3735 = vmul.f32 %v2068, %v3479
        %v3736 = vmul.f32 %v2069, %v3480
        %v3737 = vmul.f32 %v2070, %v3481
        %v3738 = vmul.f32 %v2071, %v3482
        %v3739 = vmul.f32 %v2072, %v3483
        %v3740 = vmul.f32 %v2073, %v3484
        %v3741 = vmul.f32 %v2074, %v3485
        %v3742 = vmul.f32 %v2075, %v3486
        %v3743 = vmul.f32 %v2076, %v3487
        %v3744 = vmul.f32 %v2077, %v3488
        %v3745 = vmul.f32 %v2078, %v3489
        %v3746 = vmul.f32 %v2079, %v3490
        %v3747 = vmul.f32 %v2080, %v3491
        %v3748 = vmul.f32 %v2081, %v3492
        %v3749 = vmul.f32 %v2082, %v3493
        %v3750 = vmul.f32 %v2083, %v3494
        %v3751 = vmul.f32 %v2084, %v3495
        %v3752 = vmul.f32 %v2085, %v3496
        %v3753 = vmul.f32 %v2086, %v3497
        %v3754 = vmul.f32 %v2087, %v3498
        %v3755 = vmul.f32 %v2088, %v3499
        %v3756 = vmul.f32 %v2089, %v3500
        %v3757 = vmul.f32 %v2090, %v3501
        %v3758 = vmul.f32 %v2091, %v3502
        %v3759 = vmul.f32 %v2092, %v3503
        %v3760 = vmul.f32 %v2093, %v3504
        %v3761 = vmul.f32 %v2094, %v3505
        %v3762 = vmul.f32 %v2095, %v3506
        %v3763 = vmul.f32 %v2096, %v3507
        %v3764 = vmul.f32 %v2097, %v3508
        %v3765 = vmul.f32 %v2098, %v3509
        %v3766 = vmul.f32 %v2099, %v3510
        %v3767 = vmul.f32 %v2100, %v3511
        %v3768 = vmul.f32 %v2101, %v3512
        %v3769 = vmul.f32 %v2102, %v3513
        %v3770 = vmul.f32 %v2103, %v3514
        %v3771 = vmul.f32 %v2104, %v3515
        %v3772 = vmul.f32 %v2105, %v3516
        %v3773 = vmul.f32 %v2106, %v3517
        %v3774 = vmul.f32 %v2107, %v3518
        %v3775 = vmul.f32 %v2108, %v3519
        %v3776 = vmul.f32 %v2109, %v3520
        %v3777 = vmul.f32 %v2110, %v3521
        %v3778 = vmul.f32 %v2111, %v3522
        %v3779 = vmul.f32 %v2112, %v3523
        %v3780 = vmul.f32 %v2113, %v3524
        %v3781 = vmul.f32 %v2114, %v3525
        %v3782 = vmul.f32 %v2115, %v3526
        %v3783 = vmul.f32 %v2116, %v3527
        %v3784 = vmul.f32 %v2117, %v3528
        %v3785 = vmul.f32 %v2118, %v3529
        %v3786 = vmul.f32 %v2119, %v3530
        %v3787 = vmul.f32 %v2120, %v3531
        %v3788 = vmul.f32 %v2121, %v3532
        %v3789 = vmul.f32 %v2122, %v3533
        %v3790 = vmul.f32 %v2123, %v3534
        %v3791 = vmul.f32 %v2124, %v3535
        %v3792 = vmul.f32 %v2125, %v3536
        %v3793 = vmul.f32 %v2126, %v3537
        %v3794 = vmul.f32 %v2127, %v3538
        %v3795 = vmul.f32 %v2128, %v3539
        %v3796 = vmul.f32 %v2129, %v3540
        %v3797 = vmul.f32 %v2130, %v3541
        %v3798 = vmul.f32 %v2131, %v3542
        %v3799 = vmul.f32 %v2132, %v3543
        %v3800 = vmul.f32 %v2133, %v3544
        %v3801 = vmul.f32 %v2134, %v3545
        %v3802 = vmul.f32 %v2135, %v3546
        %v3803 = vmul.f32 %v2136, %v3547
        %v3804 = vmul.f32 %v2137, %v3548
        %v3805 = vmul.f32 %v2138, %v3549
        %v3806 = vmul.f32 %v2139, %v3550
        %v3807 = vmul.f32 %v2140, %v3551
        %v3808 = vmul.f32 %v2141, %v3552
        %v3809 = vmul.f32 %v2142, %v3553
        %v3810 = vmul.f32 %v2143, %v3554
        %v3811 = vmul.f32 %v2144, %v3555
        %v3812 = vmul.f32 %v2145, %v3556
        %v3813 = vmul.f32 %v2146, %v3557
        %v3814 = vmul.f32 %v2147, %v3558
        %v3815 = vmul.f32 %v2148, %v3559
        %v3816 = vmul.f32 %v2149, %v3560
        %v3817 = vmul.f32 %v2150, %v3561
        %v3818 = vmul.f32 %v2151, %v3562
        %v3819 = vmul.f32 %v2152, %v3563
        %v3820 = vmul.f32 %v2153, %v3564
        %v3821 = vmul.f32 %v2154, %v3565
        %v3822 = vmul.f32 %v2155, %v3566
        %v3823 = vmul.f32 %v2156, %v3567
        %v3824 = vmul.f32 %v2157, %v3568
        %v3825 = vmul.f32 %v2158, %v3569
        %v3826 = vmul.f32 %v2159, %v3570
        %v3827 = vmul.f32 %v2160, %v3571
        %v3828 = vmul.f32 %v2161, %v3572
        %v3829 = vmul.f32 %v2162, %v3573
        %v3830 = vmul.f32 %v2163, %v3574
        %v3831 = vmul.f32 %v2164, %v3575
        %v3832 = vmul.f32 %v2165, %v3576
        %v3833 = vmul.f32 %v2166, %v3577
        %v3834 = vmul.f32 %v2167, %v3578
        %v3835 = vmul.f32 %v2168, %v3579
        %v3836 = vmul.f32 %v2169, %v3580
        %v3837 = vmul.f32 %v2170, %v3581
        %v3838 = vmul.f32 %v2171, %v3582
        %v3839 = vmul.f32 %v2172, %v3583
        %v3840 = vmul.f32 %v2173, %v3584
        %v3841 = vmul.f32 %v2174, %v3585
        %v3842 = vmul.f32 %v2175, %v3586
        %v3843 = vmul.f32 %v2176, %v3587
        %v3844 = vmul.f32 %v2177, %v3588
        %v3845 = vmul.f32 %v2178, %v3589
        %v3846 = vmul.f32 %v2179, %v3590
        %v3847 = vmul.f32 %v2180, %v3591
        %v3848 = vmul.f32 %v2181, %v3592
        %v3849 = vmul.f32 %v2182, %v3593
        %v3850 = vmul.f32 %v2183, %v3594
        %v3851 = vmul.f32 %v2184, %v3595
        %v3852 = vmul.f32 %v2185, %v3596
        %v3853 = vmul.f32 %v2186, %v3597
        %v3854 = vmul.f32 %v2187, %v3598
        %v3855 = vmul.f32 %v2188, %v3599
        %v3856 = vmul.f32 %v2189, %v3600
        %v3857 = vmul.f32 %v2190, %v3601
        %v3858 = vmul.f32 %v2191, %v3602
        %v3859 = vmul.f32 %v2192, %v3603
        %v3860 = vmul.f32 %v2193, %v3604
        %v3861 = vmul.f32 %v2194, %v3605
        %v3862 = vmul.f32 %v2195, %v3606
        %v3863 = vmul.f32 %v2196, %v3607
        %v3864 = vmul.f32 %v2197, %v3608
        %v3865 = vmul.f32 %v2198, %v3609
        %v3866 = vmul.f32 %v2199, %v3610
        %v3867 = vmul.f32 %v2200, %v3611
        %v3868 = vmul.f32 %v2201, %v3612
        %v3869 = vmul.f32 %v2202, %v3613
        %v3870 = vmul.f32 %v2203, %v3614
        %v3871 = vmul.f32 %v2204, %v3615
        %v3872 = vmul.f32 %v2205, %v3616
        %v3873 = vmul.f32 %v2206, %v3617
        %v3874 = vmul.f32 %v2207, %v3618
        %v3875 = vmul.f32 %v2208, %v3619
        %v3876 = vmul.f32 %v2209, %v3620
        %v3877 = vmul.f32 %v2210, %v3621
        %v3878 = vmul.f32 %v2211, %v3622
        %v3879 = vmul.f32 %v2212, %v3623
        %v3880 = vmul.f32 %v2213, %v3624
        %v3881 = vmul.f32 %v2214, %v3625
        %v3882 = vmul.f32 %v2215, %v3626
        %v3883 = vmul.f32 %v2216, %v3627
        %v3884 = vmul.f32 %v2217, %v3628
        %v3885 = vmul.f32 %v2218, %v3629
        %v3886 = vmul.f32 %v2219, %v3630
        %v3887 = vmul.f32 %v2220, %v3631
        %v3888 = vmul.f32 %v2221, %v3632
        %v3889 = vmul.f32 %v2222, %v3633
        %v3890 = vmul.f32 %v2223, %v3634
        %v3891 = vmul.f32 %v2224, %v3635
        %v3892 = vmul.f32 %v2225, %v3636
        %v3893 = vmul.f32 %v2226, %v3637
        %v3894 = vmul.f32 %v2227, %v3638
        %v3895 = vmul.f32 %v2228, %v3639
        %v3896 = vmul.f32 %v2229, %v3640
        %v3897 = vmul.f32 %v2230, %v3641
        %v3898 = vmul.f32 %v2231, %v3642
        %v3899 = vmul.f32 %v2232, %v3643
        %v3900 = vmul.f32 %v2233, %v3644
        %v3901 = vmul.f32 %v2234, %v3645
        %v3902 = vmul.f32 %v2235, %v3646
        %v3903 = vmul.f32 %v2236, %v3647
        %v3904 = vmul.f32 %v2237, %v3648
        %v3905 = vmul.f32 %v2238, %v3649
        %v3906 = vmul.f32 %v2239, %v3650
        %v3907 = vmul.f32 %v2240, %v3651
        %v3908 = vmul.f32 %v2241, %v3652
        %v3909 = vmul.f32 %v2242, %v3653
        %v3910 = vmul.f32 %v2243, %v3654
        %v3911 = vmul.f32 %v2244, %v3655
        %v3912 = vmul.f32 %v2245, %v3656
        %v3913 = vmul.f32 %v2246, %v3657
        %v3914 = vmul.f32 %v2247, %v3658
        %v3915 = vmul.f32 %v2248, %v3659
        %v3916 = vmul.f32 %v2249, %v3660
        %v3917 = vmul.f32 %v2250, %v3661
        %v3918 = vmul.f32 %v2251, %v3662
        %v3919 = vmul.f32 %v2252, %v3663
        %v3920 = vmul.f32 %v2253, %v3664
        %v3921 = vmul.f32 %v2254, %v3665
        %v3922 = vmul.f32 %v2255, %v3666
        %v3923 = vmul.f32 %v2256, %v3667
        %v3924 = vmul.f32 %v2257, %v3668
        %v3925 = vmul.f32 %v2258, %v3669
        %v3926 = vmul.f32 %v2259, %v3670
        %v3927 = vmul.f32 %v2260, %v3671
        %v3928 = vmul.f32 %v2261, %v3672
        %v3929 = vmul.f32 %v2262, %v3673
        %v3930 = vmul.f32 %v2263, %v3674
        %v3931 = vmul.f32 %v2264, %v3675
        %v3932 = vmul.f32 %v2265, %v3676
        %v3933 = vmul.f32 %v2266, %v3677
        %vm3934 = vcmask 1041408
        %v3935 = vsel %vm3934, %v3678, 0.0
        %v3936 = vsel %vm3934, %v3679, 0.0
        %v3937 = vadd.f32 %v3935, %v3936
        %v3938 = vsel %vm3934, %v3680, 0.0
        %v3939 = vadd.f32 %v3937, %v3938
        %v3940 = vsel %vm3934, %v3681, 0.0
        %v3941 = vadd.f32 %v3939, %v3940
        %v3942 = vsel %vm3934, %v3682, 0.0
        %v3943 = vadd.f32 %v3941, %v3942
        %v3944 = vsel %vm3934, %v3683, 0.0
        %v3945 = vadd.f32 %v3943, %v3944
        %v3946 = vsel %vm3934, %v3684, 0.0
        %v3947 = vadd.f32 %v3945, %v3946
        %v3948 = vsel %vm3934, %v3685, 0.0
        %v3949 = vadd.f32 %v3947, %v3948
        %v3950 = vsel %vm3934, %v3686, 0.0
        %v3951 = vadd.f32 %v3949, %v3950
        %v3952 = vsel %vm3934, %v3687, 0.0
        %v3953 = vadd.f32 %v3951, %v3952
        %v3954 = vsel %vm3934, %v3688, 0.0
        %v3955 = vadd.f32 %v3953, %v3954
        %v3956 = vsel %vm3934, %v3689, 0.0
        %v3957 = vadd.f32 %v3955, %v3956
        %v3958 = vsel %vm3934, %v3690, 0.0
        %v3959 = vadd.f32 %v3957, %v3958
        %v3960 = vsel %vm3934, %v3691, 0.0
        %v3961 = vadd.f32 %v3959, %v3960
        %v3962 = vsel %vm3934, %v3692, 0.0
        %v3963 = vadd.f32 %v3961, %v3962
        %v3964 = vsel %vm3934, %v3693, 0.0
        %v3965 = vadd.f32 %v3963, %v3964
        %v3966 = vsel %vm3934, %v3694, 0.0
        %v3967 = vadd.f32 %v3965, %v3966
        %v3968 = vsel %vm3934, %v3695, 0.0
        %v3969 = vadd.f32 %v3967, %v3968
        %v3970 = vsel %vm3934, %v3696, 0.0
        %v3971 = vadd.f32 %v3969, %v3970
        %v3972 = vsel %vm3934, %v3697, 0.0
        %v3973 = vadd.f32 %v3971, %v3972
        %v3974 = vsel %vm3934, %v3698, 0.0
        %v3975 = vadd.f32 %v3973, %v3974
        %v3976 = vsel %vm3934, %v3699, 0.0
        %v3977 = vadd.f32 %v3975, %v3976
        %v3978 = vsel %vm3934, %v3700, 0.0
        %v3979 = vadd.f32 %v3977, %v3978
        %v3980 = vsel %vm3934, %v3701, 0.0
        %v3981 = vadd.f32 %v3979, %v3980
        %v3982 = vsel %vm3934, %v3702, 0.0
        %v3983 = vadd.f32 %v3981, %v3982
        %v3984 = vsel %vm3934, %v3703, 0.0
        %v3985 = vadd.f32 %v3983, %v3984
        %v3986 = vsel %vm3934, %v3704, 0.0
        %v3987 = vadd.f32 %v3985, %v3986
        %v3988 = vsel %vm3934, %v3705, 0.0
        %v3989 = vadd.f32 %v3987, %v3988
        %v3990 = vsel %vm3934, %v3706, 0.0
        %v3991 = vadd.f32 %v3989, %v3990
        %v3992 = vsel %vm3934, %v3707, 0.0
        %v3993 = vadd.f32 %v3991, %v3992
        %v3994 = vsel %vm3934, %v3708, 0.0
        %v3995 = vadd.f32 %v3993, %v3994
        %v3996 = vsel %vm3934, %v3709, 0.0
        %v3997 = vadd.f32 %v3995, %v3996
        %v3998 = vsel %vm3934, %v3710, 0.0
        %v3999 = vadd.f32 %v3997, %v3998
        %v4000 = vsel %vm3934, %v3711, 0.0
        %v4001 = vadd.f32 %v3999, %v4000
        %v4002 = vsel %vm3934, %v3712, 0.0
        %v4003 = vadd.f32 %v4001, %v4002
        %v4004 = vsel %vm3934, %v3713, 0.0
        %v4005 = vadd.f32 %v4003, %v4004
        %v4006 = vsel %vm3934, %v3714, 0.0
        %v4007 = vadd.f32 %v4005, %v4006
        %v4008 = vsel %vm3934, %v3715, 0.0
        %v4009 = vadd.f32 %v4007, %v4008
        %v4010 = vsel %vm3934, %v3716, 0.0
        %v4011 = vadd.f32 %v4009, %v4010
        %v4012 = vsel %vm3934, %v3717, 0.0
        %v4013 = vadd.f32 %v4011, %v4012
        %v4014 = vsel %vm3934, %v3718, 0.0
        %v4015 = vadd.f32 %v4013, %v4014
        %v4016 = vsel %vm3934, %v3719, 0.0
        %v4017 = vadd.f32 %v4015, %v4016
        %v4018 = vsel %vm3934, %v3720, 0.0
        %v4019 = vadd.f32 %v4017, %v4018
        %v4020 = vsel %vm3934, %v3721, 0.0
        %v4021 = vadd.f32 %v4019, %v4020
        %v4022 = vsel %vm3934, %v3722, 0.0
        %v4023 = vadd.f32 %v4021, %v4022
        %v4024 = vsel %vm3934, %v3723, 0.0
        %v4025 = vadd.f32 %v4023, %v4024
        %v4026 = vsel %vm3934, %v3724, 0.0
        %v4027 = vadd.f32 %v4025, %v4026
        %v4028 = vsel %vm3934, %v3725, 0.0
        %v4029 = vadd.f32 %v4027, %v4028
        %v4030 = vsel %vm3934, %v3726, 0.0
        %v4031 = vadd.f32 %v4029, %v4030
        %v4032 = vsel %vm3934, %v3727, 0.0
        %v4033 = vadd.f32 %v4031, %v4032
        %v4034 = vsel %vm3934, %v3728, 0.0
        %v4035 = vadd.f32 %v4033, %v4034
        %v4036 = vsel %vm3934, %v3729, 0.0
        %v4037 = vadd.f32 %v4035, %v4036
        %v4038 = vsel %vm3934, %v3730, 0.0
        %v4039 = vadd.f32 %v4037, %v4038
        %v4040 = vsel %vm3934, %v3731, 0.0
        %v4041 = vadd.f32 %v4039, %v4040
        %v4042 = vsel %vm3934, %v3732, 0.0
        %v4043 = vadd.f32 %v4041, %v4042
        %v4044 = vsel %vm3934, %v3733, 0.0
        %v4045 = vadd.f32 %v4043, %v4044
        %v4046 = vsel %vm3934, %v3734, 0.0
        %v4047 = vadd.f32 %v4045, %v4046
        %v4048 = vsel %vm3934, %v3735, 0.0
        %v4049 = vadd.f32 %v4047, %v4048
        %v4050 = vsel %vm3934, %v3736, 0.0
        %v4051 = vadd.f32 %v4049, %v4050
        %v4052 = vsel %vm3934, %v3737, 0.0
        %v4053 = vadd.f32 %v4051, %v4052
        %v4054 = vsel %vm3934, %v3738, 0.0
        %v4055 = vadd.f32 %v4053, %v4054
        %v4056 = vsel %vm3934, %v3739, 0.0
        %v4057 = vadd.f32 %v4055, %v4056
        %v4058 = vsel %vm3934, %v3740, 0.0
        %v4059 = vadd.f32 %v4057, %v4058
        %v4060 = vsel %vm3934, %v3741, 0.0
        %v4061 = vadd.f32 %v4059, %v4060
        %v4062 = vsel %vm3934, %v3742, 0.0
        %v4063 = vadd.f32 %v4061, %v4062
        %v4064 = vsel %vm3934, %v3743, 0.0
        %v4065 = vadd.f32 %v4063, %v4064
        %v4066 = vsel %vm3934, %v3744, 0.0
        %v4067 = vadd.f32 %v4065, %v4066
        %v4068 = vsel %vm3934, %v3745, 0.0
        %v4069 = vadd.f32 %v4067, %v4068
        %v4070 = vsel %vm3934, %v3746, 0.0
        %v4071 = vadd.f32 %v4069, %v4070
        %v4072 = vsel %vm3934, %v3747, 0.0
        %v4073 = vadd.f32 %v4071, %v4072
        %v4074 = vsel %vm3934, %v3748, 0.0
        %v4075 = vadd.f32 %v4073, %v4074
        %v4076 = vsel %vm3934, %v3749, 0.0
        %v4077 = vadd.f32 %v4075, %v4076
        %v4078 = vsel %vm3934, %v3750, 0.0
        %v4079 = vadd.f32 %v4077, %v4078
        %v4080 = vsel %vm3934, %v3751, 0.0
        %v4081 = vadd.f32 %v4079, %v4080
        %v4082 = vsel %vm3934, %v3752, 0.0
        %v4083 = vadd.f32 %v4081, %v4082
        %v4084 = vsel %vm3934, %v3753, 0.0
        %v4085 = vadd.f32 %v4083, %v4084
        %v4086 = vsel %vm3934, %v3754, 0.0
        %v4087 = vadd.f32 %v4085, %v4086
        %v4088 = vsel %vm3934, %v3755, 0.0
        %v4089 = vadd.f32 %v4087, %v4088
        %v4090 = vsel %vm3934, %v3756, 0.0
        %v4091 = vadd.f32 %v4089, %v4090
        %v4092 = vsel %vm3934, %v3757, 0.0
        %v4093 = vadd.f32 %v4091, %v4092
        %v4094 = vsel %vm3934, %v3758, 0.0
        %v4095 = vadd.f32 %v4093, %v4094
        %v4096 = vsel %vm3934, %v3759, 0.0
        %v4097 = vadd.f32 %v4095, %v4096
        %v4098 = vsel %vm3934, %v3760, 0.0
        %v4099 = vadd.f32 %v4097, %v4098
        %v4100 = vsel %vm3934, %v3761, 0.0
        %v4101 = vadd.f32 %v4099, %v4100
        %v4102 = vsel %vm3934, %v3762, 0.0
        %v4103 = vadd.f32 %v4101, %v4102
        %v4104 = vsel %vm3934, %v3763, 0.0
        %v4105 = vadd.f32 %v4103, %v4104
        %v4106 = vsel %vm3934, %v3764, 0.0
        %v4107 = vadd.f32 %v4105, %v4106
        %v4108 = vsel %vm3934, %v3765, 0.0
        %v4109 = vadd.f32 %v4107, %v4108
        %v4110 = vsel %vm3934, %v3766, 0.0
        %v4111 = vadd.f32 %v4109, %v4110
        %v4112 = vsel %vm3934, %v3767, 0.0
        %v4113 = vadd.f32 %v4111, %v4112
        %v4114 = vsel %vm3934, %v3768, 0.0
        %v4115 = vadd.f32 %v4113, %v4114
        %v4116 = vsel %vm3934, %v3769, 0.0
        %v4117 = vadd.f32 %v4115, %v4116
        %v4118 = vsel %vm3934, %v3770, 0.0
        %v4119 = vadd.f32 %v4117, %v4118
        %v4120 = vsel %vm3934, %v3771, 0.0
        %v4121 = vadd.f32 %v4119, %v4120
        %v4122 = vsel %vm3934, %v3772, 0.0
        %v4123 = vadd.f32 %v4121, %v4122
        %v4124 = vsel %vm3934, %v3773, 0.0
        %v4125 = vadd.f32 %v4123, %v4124
        %v4126 = vsel %vm3934, %v3774, 0.0
        %v4127 = vadd.f32 %v4125, %v4126
        %v4128 = vsel %vm3934, %v3775, 0.0
        %v4129 = vadd.f32 %v4127, %v4128
        %v4130 = vsel %vm3934, %v3776, 0.0
        %v4131 = vadd.f32 %v4129, %v4130
        %v4132 = vsel %vm3934, %v3777, 0.0
        %v4133 = vadd.f32 %v4131, %v4132
        %v4134 = vsel %vm3934, %v3778, 0.0
        %v4135 = vadd.f32 %v4133, %v4134
        %v4136 = vsel %vm3934, %v3779, 0.0
        %v4137 = vadd.f32 %v4135, %v4136
        %v4138 = vsel %vm3934, %v3780, 0.0
        %v4139 = vadd.f32 %v4137, %v4138
        %v4140 = vsel %vm3934, %v3781, 0.0
        %v4141 = vadd.f32 %v4139, %v4140
        %v4142 = vsel %vm3934, %v3782, 0.0
        %v4143 = vadd.f32 %v4141, %v4142
        %v4144 = vsel %vm3934, %v3783, 0.0
        %v4145 = vadd.f32 %v4143, %v4144
        %v4146 = vsel %vm3934, %v3784, 0.0
        %v4147 = vadd.f32 %v4145, %v4146
        %v4148 = vsel %vm3934, %v3785, 0.0
        %v4149 = vadd.f32 %v4147, %v4148
        %v4150 = vsel %vm3934, %v3786, 0.0
        %v4151 = vadd.f32 %v4149, %v4150
        %v4152 = vsel %vm3934, %v3787, 0.0
        %v4153 = vadd.f32 %v4151, %v4152
        %v4154 = vsel %vm3934, %v3788, 0.0
        %v4155 = vadd.f32 %v4153, %v4154
        %v4156 = vsel %vm3934, %v3789, 0.0
        %v4157 = vadd.f32 %v4155, %v4156
        %v4158 = vsel %vm3934, %v3790, 0.0
        %v4159 = vadd.f32 %v4157, %v4158
        %v4160 = vsel %vm3934, %v3791, 0.0
        %v4161 = vadd.f32 %v4159, %v4160
        %v4162 = vsel %vm3934, %v3792, 0.0
        %v4163 = vadd.f32 %v4161, %v4162
        %v4164 = vsel %vm3934, %v3793, 0.0
        %v4165 = vadd.f32 %v4163, %v4164
        %v4166 = vsel %vm3934, %v3794, 0.0
        %v4167 = vadd.f32 %v4165, %v4166
        %v4168 = vsel %vm3934, %v3795, 0.0
        %v4169 = vadd.f32 %v4167, %v4168
        %v4170 = vsel %vm3934, %v3796, 0.0
        %v4171 = vadd.f32 %v4169, %v4170
        %v4172 = vsel %vm3934, %v3797, 0.0
        %v4173 = vadd.f32 %v4171, %v4172
        %v4174 = vsel %vm3934, %v3798, 0.0
        %v4175 = vadd.f32 %v4173, %v4174
        %v4176 = vsel %vm3934, %v3799, 0.0
        %v4177 = vadd.f32 %v4175, %v4176
        %v4178 = vsel %vm3934, %v3800, 0.0
        %v4179 = vadd.f32 %v4177, %v4178
        %v4180 = vsel %vm3934, %v3801, 0.0
        %v4181 = vadd.f32 %v4179, %v4180
        %v4182 = vsel %vm3934, %v3802, 0.0
        %v4183 = vadd.f32 %v4181, %v4182
        %v4184 = vsel %vm3934, %v3803, 0.0
        %v4185 = vadd.f32 %v4183, %v4184
        %v4186 = vsel %vm3934, %v3804, 0.0
        %v4187 = vadd.f32 %v4185, %v4186
        %v4188 = vsel %vm3934, %v3805, 0.0
        %v4189 = vadd.f32 %v4187, %v4188
        %v4190 = vsel %vm3934, %v3806, 0.0
        %v4191 = vadd.f32 %v4189, %v4190
        %v4192 = vsel %vm3934, %v3807, 0.0
        %v4193 = vadd.f32 %v4191, %v4192
        %v4194 = vsel %vm3934, %v3808, 0.0
        %v4195 = vadd.f32 %v4193, %v4194
        %v4196 = vsel %vm3934, %v3809, 0.0
        %v4197 = vadd.f32 %v4195, %v4196
        %v4198 = vsel %vm3934, %v3810, 0.0
        %v4199 = vadd.f32 %v4197, %v4198
        %v4200 = vsel %vm3934, %v3811, 0.0
        %v4201 = vadd.f32 %v4199, %v4200
        %v4202 = vsel %vm3934, %v3812, 0.0
        %v4203 = vadd.f32 %v4201, %v4202
        %v4204 = vsel %vm3934, %v3813, 0.0
        %v4205 = vadd.f32 %v4203, %v4204
        %v4206 = vsel %vm3934, %v3814, 0.0
        %v4207 = vadd.f32 %v4205, %v4206
        %v4208 = vsel %vm3934, %v3815, 0.0
        %v4209 = vadd.f32 %v4207, %v4208
        %v4210 = vsel %vm3934, %v3816, 0.0
        %v4211 = vadd.f32 %v4209, %v4210
        %v4212 = vsel %vm3934, %v3817, 0.0
        %v4213 = vadd.f32 %v4211, %v4212
        %v4214 = vsel %vm3934, %v3818, 0.0
        %v4215 = vadd.f32 %v4213, %v4214
        %v4216 = vsel %vm3934, %v3819, 0.0
        %v4217 = vadd.f32 %v4215, %v4216
        %v4218 = vsel %vm3934, %v3820, 0.0
        %v4219 = vadd.f32 %v4217, %v4218
        %v4220 = vsel %vm3934, %v3821, 0.0
        %v4221 = vadd.f32 %v4219, %v4220
        %v4222 = vsel %vm3934, %v3822, 0.0
        %v4223 = vadd.f32 %v4221, %v4222
        %v4224 = vsel %vm3934, %v3823, 0.0
        %v4225 = vadd.f32 %v4223, %v4224
        %v4226 = vsel %vm3934, %v3824, 0.0
        %v4227 = vadd.f32 %v4225, %v4226
        %v4228 = vsel %vm3934, %v3825, 0.0
        %v4229 = vadd.f32 %v4227, %v4228
        %v4230 = vsel %vm3934, %v3826, 0.0
        %v4231 = vadd.f32 %v4229, %v4230
        %v4232 = vsel %vm3934, %v3827, 0.0
        %v4233 = vadd.f32 %v4231, %v4232
        %v4234 = vsel %vm3934, %v3828, 0.0
        %v4235 = vadd.f32 %v4233, %v4234
        %v4236 = vsel %vm3934, %v3829, 0.0
        %v4237 = vadd.f32 %v4235, %v4236
        %v4238 = vsel %vm3934, %v3830, 0.0
        %v4239 = vadd.f32 %v4237, %v4238
        %v4240 = vsel %vm3934, %v3831, 0.0
        %v4241 = vadd.f32 %v4239, %v4240
        %v4242 = vsel %vm3934, %v3832, 0.0
        %v4243 = vadd.f32 %v4241, %v4242
        %v4244 = vsel %vm3934, %v3833, 0.0
        %v4245 = vadd.f32 %v4243, %v4244
        %v4246 = vsel %vm3934, %v3834, 0.0
        %v4247 = vadd.f32 %v4245, %v4246
        %v4248 = vsel %vm3934, %v3835, 0.0
        %v4249 = vadd.f32 %v4247, %v4248
        %v4250 = vsel %vm3934, %v3836, 0.0
        %v4251 = vadd.f32 %v4249, %v4250
        %v4252 = vsel %vm3934, %v3837, 0.0
        %v4253 = vadd.f32 %v4251, %v4252
        %v4254 = vsel %vm3934, %v3838, 0.0
        %v4255 = vadd.f32 %v4253, %v4254
        %v4256 = vsel %vm3934, %v3839, 0.0
        %v4257 = vadd.f32 %v4255, %v4256
        %v4258 = vsel %vm3934, %v3840, 0.0
        %v4259 = vadd.f32 %v4257, %v4258
        %v4260 = vsel %vm3934, %v3841, 0.0
        %v4261 = vadd.f32 %v4259, %v4260
        %v4262 = vsel %vm3934, %v3842, 0.0
        %v4263 = vadd.f32 %v4261, %v4262
        %v4264 = vsel %vm3934, %v3843, 0.0
        %v4265 = vadd.f32 %v4263, %v4264
        %v4266 = vsel %vm3934, %v3844, 0.0
        %v4267 = vadd.f32 %v4265, %v4266
        %v4268 = vsel %vm3934, %v3845, 0.0
        %v4269 = vadd.f32 %v4267, %v4268
        %v4270 = vsel %vm3934, %v3846, 0.0
        %v4271 = vadd.f32 %v4269, %v4270
        %v4272 = vsel %vm3934, %v3847, 0.0
        %v4273 = vadd.f32 %v4271, %v4272
        %v4274 = vsel %vm3934, %v3848, 0.0
        %v4275 = vadd.f32 %v4273, %v4274
        %v4276 = vsel %vm3934, %v3849, 0.0
        %v4277 = vadd.f32 %v4275, %v4276
        %v4278 = vsel %vm3934, %v3850, 0.0
        %v4279 = vadd.f32 %v4277, %v4278
        %v4280 = vsel %vm3934, %v3851, 0.0
        %v4281 = vadd.f32 %v4279, %v4280
        %v4282 = vsel %vm3934, %v3852, 0.0
        %v4283 = vadd.f32 %v4281, %v4282
        %v4284 = vsel %vm3934, %v3853, 0.0
        %v4285 = vadd.f32 %v4283, %v4284
        %v4286 = vsel %vm3934, %v3854, 0.0
        %v4287 = vadd.f32 %v4285, %v4286
        %v4288 = vsel %vm3934, %v3855, 0.0
        %v4289 = vadd.f32 %v4287, %v4288
        %v4290 = vsel %vm3934, %v3856, 0.0
        %v4291 = vadd.f32 %v4289, %v4290
        %v4292 = vsel %vm3934, %v3857, 0.0
        %v4293 = vadd.f32 %v4291, %v4292
        %v4294 = vsel %vm3934, %v3858, 0.0
        %v4295 = vadd.f32 %v4293, %v4294
        %v4296 = vsel %vm3934, %v3859, 0.0
        %v4297 = vadd.f32 %v4295, %v4296
        %v4298 = vsel %vm3934, %v3860, 0.0
        %v4299 = vadd.f32 %v4297, %v4298
        %v4300 = vsel %vm3934, %v3861, 0.0
        %v4301 = vadd.f32 %v4299, %v4300
        %v4302 = vsel %vm3934, %v3862, 0.0
        %v4303 = vadd.f32 %v4301, %v4302
        %v4304 = vsel %vm3934, %v3863, 0.0
        %v4305 = vadd.f32 %v4303, %v4304
        %v4306 = vsel %vm3934, %v3864, 0.0
        %v4307 = vadd.f32 %v4305, %v4306
        %v4308 = vsel %vm3934, %v3865, 0.0
        %v4309 = vadd.f32 %v4307, %v4308
        %v4310 = vsel %vm3934, %v3866, 0.0
        %v4311 = vadd.f32 %v4309, %v4310
        %v4312 = vsel %vm3934, %v3867, 0.0
        %v4313 = vadd.f32 %v4311, %v4312
        %v4314 = vsel %vm3934, %v3868, 0.0
        %v4315 = vadd.f32 %v4313, %v4314
        %v4316 = vsel %vm3934, %v3869, 0.0
        %v4317 = vadd.f32 %v4315, %v4316
        %v4318 = vsel %vm3934, %v3870, 0.0
        %v4319 = vadd.f32 %v4317, %v4318
        %v4320 = vsel %vm3934, %v3871, 0.0
        %v4321 = vadd.f32 %v4319, %v4320
        %v4322 = vsel %vm3934, %v3872, 0.0
        %v4323 = vadd.f32 %v4321, %v4322
        %v4324 = vsel %vm3934, %v3873, 0.0
        %v4325 = vadd.f32 %v4323, %v4324
        %v4326 = vsel %vm3934, %v3874, 0.0
        %v4327 = vadd.f32 %v4325, %v4326
        %v4328 = vsel %vm3934, %v3875, 0.0
        %v4329 = vadd.f32 %v4327, %v4328
        %v4330 = vsel %vm3934, %v3876, 0.0
        %v4331 = vadd.f32 %v4329, %v4330
        %v4332 = vsel %vm3934, %v3877, 0.0
        %v4333 = vadd.f32 %v4331, %v4332
        %v4334 = vsel %vm3934, %v3878, 0.0
        %v4335 = vadd.f32 %v4333, %v4334
        %v4336 = vsel %vm3934, %v3879, 0.0
        %v4337 = vadd.f32 %v4335, %v4336
        %v4338 = vsel %vm3934, %v3880, 0.0
        %v4339 = vadd.f32 %v4337, %v4338
        %v4340 = vsel %vm3934, %v3881, 0.0
        %v4341 = vadd.f32 %v4339, %v4340
        %v4342 = vsel %vm3934, %v3882, 0.0
        %v4343 = vadd.f32 %v4341, %v4342
        %v4344 = vsel %vm3934, %v3883, 0.0
        %v4345 = vadd.f32 %v4343, %v4344
        %v4346 = vsel %vm3934, %v3884, 0.0
        %v4347 = vadd.f32 %v4345, %v4346
        %v4348 = vsel %vm3934, %v3885, 0.0
        %v4349 = vadd.f32 %v4347, %v4348
        %v4350 = vsel %vm3934, %v3886, 0.0
        %v4351 = vadd.f32 %v4349, %v4350
        %v4352 = vsel %vm3934, %v3887, 0.0
        %v4353 = vadd.f32 %v4351, %v4352
        %v4354 = vsel %vm3934, %v3888, 0.0
        %v4355 = vadd.f32 %v4353, %v4354
        %v4356 = vsel %vm3934, %v3889, 0.0
        %v4357 = vadd.f32 %v4355, %v4356
        %v4358 = vsel %vm3934, %v3890, 0.0
        %v4359 = vadd.f32 %v4357, %v4358
        %v4360 = vsel %vm3934, %v3891, 0.0
        %v4361 = vadd.f32 %v4359, %v4360
        %v4362 = vsel %vm3934, %v3892, 0.0
        %v4363 = vadd.f32 %v4361, %v4362
        %v4364 = vsel %vm3934, %v3893, 0.0
        %v4365 = vadd.f32 %v4363, %v4364
        %v4366 = vsel %vm3934, %v3894, 0.0
        %v4367 = vadd.f32 %v4365, %v4366
        %v4368 = vsel %vm3934, %v3895, 0.0
        %v4369 = vadd.f32 %v4367, %v4368
        %v4370 = vsel %vm3934, %v3896, 0.0
        %v4371 = vadd.f32 %v4369, %v4370
        %v4372 = vsel %vm3934, %v3897, 0.0
        %v4373 = vadd.f32 %v4371, %v4372
        %v4374 = vsel %vm3934, %v3898, 0.0
        %v4375 = vadd.f32 %v4373, %v4374
        %v4376 = vsel %vm3934, %v3899, 0.0
        %v4377 = vadd.f32 %v4375, %v4376
        %v4378 = vsel %vm3934, %v3900, 0.0
        %v4379 = vadd.f32 %v4377, %v4378
        %v4380 = vsel %vm3934, %v3901, 0.0
        %v4381 = vadd.f32 %v4379, %v4380
        %v4382 = vsel %vm3934, %v3902, 0.0
        %v4383 = vadd.f32 %v4381, %v4382
        %v4384 = vsel %vm3934, %v3903, 0.0
        %v4385 = vadd.f32 %v4383, %v4384
        %v4386 = vsel %vm3934, %v3904, 0.0
        %v4387 = vadd.f32 %v4385, %v4386
        %v4388 = vsel %vm3934, %v3905, 0.0
        %v4389 = vadd.f32 %v4387, %v4388
        %v4390 = vsel %vm3934, %v3906, 0.0
        %v4391 = vadd.f32 %v4389, %v4390
        %v4392 = vsel %vm3934, %v3907, 0.0
        %v4393 = vadd.f32 %v4391, %v4392
        %v4394 = vsel %vm3934, %v3908, 0.0
        %v4395 = vadd.f32 %v4393, %v4394
        %v4396 = vsel %vm3934, %v3909, 0.0
        %v4397 = vadd.f32 %v4395, %v4396
        %v4398 = vsel %vm3934, %v3910, 0.0
        %v4399 = vadd.f32 %v4397, %v4398
        %v4400 = vsel %vm3934, %v3911, 0.0
        %v4401 = vadd.f32 %v4399, %v4400
        %v4402 = vsel %vm3934, %v3912, 0.0
        %v4403 = vadd.f32 %v4401, %v4402
        %v4404 = vsel %vm3934, %v3913, 0.0
        %v4405 = vadd.f32 %v4403, %v4404
        %v4406 = vsel %vm3934, %v3914, 0.0
        %v4407 = vadd.f32 %v4405, %v4406
        %v4408 = vsel %vm3934, %v3915, 0.0
        %v4409 = vadd.f32 %v4407, %v4408
        %v4410 = vsel %vm3934, %v3916, 0.0
        %v4411 = vadd.f32 %v4409, %v4410
        %v4412 = vsel %vm3934, %v3917, 0.0
        %v4413 = vadd.f32 %v4411, %v4412
        %v4414 = vsel %vm3934, %v3918, 0.0
        %v4415 = vadd.f32 %v4413, %v4414
        %v4416 = vsel %vm3934, %v3919, 0.0
        %v4417 = vadd.f32 %v4415, %v4416
        %v4418 = vsel %vm3934, %v3920, 0.0
        %v4419 = vadd.f32 %v4417, %v4418
        %v4420 = vsel %vm3934, %v3921, 0.0
        %v4421 = vadd.f32 %v4419, %v4420
        %v4422 = vsel %vm3934, %v3922, 0.0
        %v4423 = vadd.f32 %v4421, %v4422
        %v4424 = vsel %vm3934, %v3923, 0.0
        %v4425 = vadd.f32 %v4423, %v4424
        %v4426 = vsel %vm3934, %v3924, 0.0
        %v4427 = vadd.f32 %v4425, %v4426
        %v4428 = vsel %vm3934, %v3925, 0.0
        %v4429 = vadd.f32 %v4427, %v4428
        %v4430 = vsel %vm3934, %v3926, 0.0
        %v4431 = vadd.f32 %v4429, %v4430
        %v4432 = vsel %vm3934, %v3927, 0.0
        %v4433 = vadd.f32 %v4431, %v4432
        %v4434 = vsel %vm3934, %v3928, 0.0
        %v4435 = vadd.f32 %v4433, %v4434
        %v4436 = vsel %vm3934, %v3929, 0.0
        %v4437 = vadd.f32 %v4435, %v4436
        %v4438 = vsel %vm3934, %v3930, 0.0
        %v4439 = vadd.f32 %v4437, %v4438
        %v4440 = vsel %vm3934, %v3931, 0.0
        %v4441 = vadd.f32 %v4439, %v4440
        %v4442 = vsel %vm3934, %v3932, 0.0
        %v4443 = vadd.f32 %v4441, %v4442
        %v4444 = vsel %vm3934, %v3933, 0.0
        %v4445 = vadd.f32 %v4443, %v4444
        %4446 = vadd.xlane.f32.xlu0 %v4445
        %v4447 = vpop.xlane.xlu0 %4446
        %v4448 = vperm.slane %v3166, 1
        %v4449 = vperm.slane %v3167, 1
        %v4450 = vperm.slane %v3168, 1
        %v4451 = vperm.slane %v3169, 1
        %v4452 = vperm.slane %v3170, 1
        %v4453 = vperm.slane %v3171, 1
        %v4454 = vperm.slane %v3172, 1
        %v4455 = vperm.slane %v3173, 1
        %v4456 = vperm.slane %v3174, 1
        %v4457 = vperm.slane %v3175, 1
        %v4458 = vperm.slane %v3176, 1
        %v4459 = vperm.slane %v3177, 1
        %v4460 = vperm.slane %v3178, 1
        %v4461 = vperm.slane %v3179, 1
        %v4462 = vperm.slane %v3180, 1
        %v4463 = vperm.slane %v3181, 1
        %v4464 = vperm.slane %v3182, 1
        %v4465 = vperm.slane %v3183, 1
        %v4466 = vperm.slane %v3184, 1
        %v4467 = vperm.slane %v3185, 1
        %v4468 = vperm.slane %v3186, 1
        %v4469 = vperm.slane %v3187, 1
        %v4470 = vperm.slane %v3188, 1
        %v4471 = vperm.slane %v3189, 1
        %v4472 = vperm.slane %v3190, 1
        %v4473 = vperm.slane %v3191, 1
        %v4474 = vperm.slane %v3192, 1
        %v4475 = vperm.slane %v3193, 1
        %v4476 = vperm.slane %v3194, 1
        %v4477 = vperm.slane %v3195, 1
        %v4478 = vperm.slane %v3196, 1
        %v4479 = vperm.slane %v3197, 1
        %v4480 = vperm.slane %v3198, 1
        %v4481 = vperm.slane %v3199, 1
        %v4482 = vperm.slane %v3200, 1
        %v4483 = vperm.slane %v3201, 1
        %v4484 = vperm.slane %v3202, 1
        %v4485 = vperm.slane %v3203, 1
        %v4486 = vperm.slane %v3204, 1
        %v4487 = vperm.slane %v3205, 1
        %v4488 = vperm.slane %v3206, 1
        %v4489 = vperm.slane %v3207, 1
        %v4490 = vperm.slane %v3208, 1
        %v4491 = vperm.slane %v3209, 1
        %v4492 = vperm.slane %v3210, 1
        %v4493 = vperm.slane %v3211, 1
        %v4494 = vperm.slane %v3212, 1
        %v4495 = vperm.slane %v3213, 1
        %v4496 = vperm.slane %v3214, 1
        %v4497 = vperm.slane %v3215, 1
        %v4498 = vperm.slane %v3216, 1
        %v4499 = vperm.slane %v3217, 1
        %v4500 = vperm.slane %v3218, 1
        %v4501 = vperm.slane %v3219, 1
        %v4502 = vperm.slane %v3220, 1
        %v4503 = vperm.slane %v3221, 1
        %v4504 = vperm.slane %v3222, 1
        %v4505 = vperm.slane %v3223, 1
        %v4506 = vperm.slane %v3224, 1
        %v4507 = vperm.slane %v3225, 1
        %v4508 = vperm.slane %v3226, 1
        %v4509 = vperm.slane %v3227, 1
        %v4510 = vperm.slane %v3228, 1
        %v4511 = vperm.slane %v3229, 1
        %v4512 = vperm.slane %v3230, 1
        %v4513 = vperm.slane %v3231, 1
        %v4514 = vperm.slane %v3232, 1
        %v4515 = vperm.slane %v3233, 1
        %v4516 = vperm.slane %v3234, 1
        %v4517 = vperm.slane %v3235, 1
        %v4518 = vperm.slane %v3236, 1
        %v4519 = vperm.slane %v3237, 1
        %v4520 = vperm.slane %v3238, 1
        %v4521 = vperm.slane %v3239, 1
        %v4522 = vperm.slane %v3240, 1
        %v4523 = vperm.slane %v3241, 1
        %v4524 = vperm.slane %v3242, 1
        %v4525 = vperm.slane %v3243, 1
        %v4526 = vperm.slane %v3244, 1
        %v4527 = vperm.slane %v3245, 1
        %v4528 = vperm.slane %v3246, 1
        %v4529 = vperm.slane %v3247, 1
        %v4530 = vperm.slane %v3248, 1
        %v4531 = vperm.slane %v3249, 1
        %v4532 = vperm.slane %v3250, 1
        %v4533 = vperm.slane %v3251, 1
        %v4534 = vperm.slane %v3252, 1
        %v4535 = vperm.slane %v3253, 1
        %v4536 = vperm.slane %v3254, 1
        %v4537 = vperm.slane %v3255, 1
        %v4538 = vperm.slane %v3256, 1
        %v4539 = vperm.slane %v3257, 1
        %v4540 = vperm.slane %v3258, 1
        %v4541 = vperm.slane %v3259, 1
        %v4542 = vperm.slane %v3260, 1
        %v4543 = vperm.slane %v3261, 1
        %v4544 = vperm.slane %v3262, 1
        %v4545 = vperm.slane %v3263, 1
        %v4546 = vperm.slane %v3264, 1
        %v4547 = vperm.slane %v3265, 1
        %v4548 = vperm.slane %v3266, 1
        %v4549 = vperm.slane %v3267, 1
        %v4550 = vperm.slane %v3268, 1
        %v4551 = vperm.slane %v3269, 1
        %v4552 = vperm.slane %v3270, 1
        %v4553 = vperm.slane %v3271, 1
        %v4554 = vperm.slane %v3272, 1
        %v4555 = vperm.slane %v3273, 1
        %v4556 = vperm.slane %v3274, 1
        %v4557 = vperm.slane %v3275, 1
        %v4558 = vperm.slane %v3276, 1
        %v4559 = vperm.slane %v3277, 1
        %v4560 = vperm.slane %v3278, 1
        %v4561 = vperm.slane %v3279, 1
        %v4562 = vperm.slane %v3280, 1
        %v4563 = vperm.slane %v3281, 1
        %v4564 = vperm.slane %v3282, 1
        %v4565 = vperm.slane %v3283, 1
        %v4566 = vperm.slane %v3284, 1
        %v4567 = vperm.slane %v3285, 1
        %v4568 = vperm.slane %v3286, 1
        %v4569 = vperm.slane %v3287, 1
        %v4570 = vperm.slane %v3288, 1
        %v4571 = vperm.slane %v3289, 1
        %v4572 = vperm.slane %v3290, 1
        %v4573 = vperm.slane %v3291, 1
        %v4574 = vperm.slane %v3292, 1
        %v4575 = vperm.slane %v3293, 1
        %v4576 = vperm.slane %v3294, 1
        %v4577 = vperm.slane %v3295, 1
        %v4578 = vperm.slane %v3296, 1
        %v4579 = vperm.slane %v3297, 1
        %v4580 = vperm.slane %v3298, 1
        %v4581 = vperm.slane %v3299, 1
        %v4582 = vperm.slane %v3300, 1
        %v4583 = vperm.slane %v3301, 1
        %v4584 = vperm.slane %v3302, 1
        %v4585 = vperm.slane %v3303, 1
        %v4586 = vperm.slane %v3304, 1
        %v4587 = vperm.slane %v3305, 1
        %v4588 = vperm.slane %v3306, 1
        %v4589 = vperm.slane %v3307, 1
        %v4590 = vperm.slane %v3308, 1
        %v4591 = vperm.slane %v3309, 1
        %v4592 = vperm.slane %v3310, 1
        %v4593 = vperm.slane %v3311, 1
        %v4594 = vperm.slane %v3312, 1
        %v4595 = vperm.slane %v3313, 1
        %v4596 = vperm.slane %v3314, 1
        %v4597 = vperm.slane %v3315, 1
        %v4598 = vperm.slane %v3316, 1
        %v4599 = vperm.slane %v3317, 1
        %v4600 = vperm.slane %v3318, 1
        %v4601 = vperm.slane %v3319, 1
        %v4602 = vperm.slane %v3320, 1
        %v4603 = vperm.slane %v3321, 1
        %v4604 = vperm.slane %v3322, 1
        %v4605 = vperm.slane %v3323, 1
        %v4606 = vperm.slane %v3324, 1
        %v4607 = vperm.slane %v3325, 1
        %v4608 = vperm.slane %v3326, 1
        %v4609 = vperm.slane %v3327, 1
        %v4610 = vperm.slane %v3328, 1
        %v4611 = vperm.slane %v3329, 1
        %v4612 = vperm.slane %v3330, 1
        %v4613 = vperm.slane %v3331, 1
        %v4614 = vperm.slane %v3332, 1
        %v4615 = vperm.slane %v3333, 1
        %v4616 = vperm.slane %v3334, 1
        %v4617 = vperm.slane %v3335, 1
        %v4618 = vperm.slane %v3336, 1
        %v4619 = vperm.slane %v3337, 1
        %v4620 = vperm.slane %v3338, 1
        %v4621 = vperm.slane %v3339, 1
        %v4622 = vperm.slane %v3340, 1
        %v4623 = vperm.slane %v3341, 1
        %v4624 = vperm.slane %v3342, 1
        %v4625 = vperm.slane %v3343, 1
        %v4626 = vperm.slane %v3344, 1
        %v4627 = vperm.slane %v3345, 1
        %v4628 = vperm.slane %v3346, 1
        %v4629 = vperm.slane %v3347, 1
        %v4630 = vperm.slane %v3348, 1
        %v4631 = vperm.slane %v3349, 1
        %v4632 = vperm.slane %v3350, 1
        %v4633 = vperm.slane %v3351, 1
        %v4634 = vperm.slane %v3352, 1
        %v4635 = vperm.slane %v3353, 1
        %v4636 = vperm.slane %v3354, 1
        %v4637 = vperm.slane %v3355, 1
        %v4638 = vperm.slane %v3356, 1
        %v4639 = vperm.slane %v3357, 1
        %v4640 = vperm.slane %v3358, 1
        %v4641 = vperm.slane %v3359, 1
        %v4642 = vperm.slane %v3360, 1
        %v4643 = vperm.slane %v3361, 1
        %v4644 = vperm.slane %v3362, 1
        %v4645 = vperm.slane %v3363, 1
        %v4646 = vperm.slane %v3364, 1
        %v4647 = vperm.slane %v3365, 1
        %v4648 = vperm.slane %v3366, 1
        %v4649 = vperm.slane %v3367, 1
        %v4650 = vperm.slane %v3368, 1
        %v4651 = vperm.slane %v3369, 1
        %v4652 = vperm.slane %v3370, 1
        %v4653 = vperm.slane %v3371, 1
        %v4654 = vperm.slane %v3372, 1
        %v4655 = vperm.slane %v3373, 1
        %v4656 = vperm.slane %v3374, 1
        %v4657 = vperm.slane %v3375, 1
        %v4658 = vperm.slane %v3376, 1
        %v4659 = vperm.slane %v3377, 1
        %v4660 = vperm.slane %v3378, 1
        %v4661 = vperm.slane %v3379, 1
        %v4662 = vperm.slane %v3380, 1
        %v4663 = vperm.slane %v3381, 1
        %v4664 = vperm.slane %v3382, 1
        %v4665 = vperm.slane %v3383, 1
        %v4666 = vperm.slane %v3384, 1
        %v4667 = vperm.slane %v3385, 1
        %v4668 = vperm.slane %v3386, 1
        %v4669 = vperm.slane %v3387, 1
        %v4670 = vperm.slane %v3388, 1
        %v4671 = vperm.slane %v3389, 1
        %v4672 = vperm.slane %v3390, 1
        %v4673 = vperm.slane %v3391, 1
        %v4674 = vperm.slane %v3392, 1
        %v4675 = vperm.slane %v3393, 1
        %v4676 = vperm.slane %v3394, 1
        %v4677 = vperm.slane %v3395, 1
        %v4678 = vperm.slane %v3396, 1
        %v4679 = vperm.slane %v3397, 1
        %v4680 = vperm.slane %v3398, 1
        %v4681 = vperm.slane %v3399, 1
        %v4682 = vperm.slane %v3400, 1
        %v4683 = vperm.slane %v3401, 1
        %v4684 = vperm.slane %v3402, 1
        %v4685 = vperm.slane %v3403, 1
        %v4686 = vperm.slane %v3404, 1
        %v4687 = vperm.slane %v3405, 1
        %v4688 = vperm.slane %v3406, 1
        %v4689 = vperm.slane %v3407, 1
        %v4690 = vperm.slane %v3408, 1
        %v4691 = vperm.slane %v3409, 1
        %v4692 = vperm.slane %v3410, 1
        %v4693 = vperm.slane %v3411, 1
        %v4694 = vperm.slane %v3412, 1
        %v4695 = vperm.slane %v3413, 1
        %v4696 = vperm.slane %v3414, 1
        %v4697 = vperm.slane %v3415, 1
        %v4698 = vperm.slane %v3416, 1
        %v4699 = vperm.slane %v3417, 1
        %v4700 = vperm.slane %v3418, 1
        %v4701 = vperm.slane %v3419, 1
        %v4702 = vperm.slane %v3420, 1
        %v4703 = vperm.slane %v3421, 1
        %v4704 = vmul.f32 %v2011, %v4448
        %v4705 = vmul.f32 %v2012, %v4449
        %v4706 = vmul.f32 %v2013, %v4450
        %v4707 = vmul.f32 %v2014, %v4451
        %v4708 = vmul.f32 %v2015, %v4452
        %v4709 = vmul.f32 %v2016, %v4453
        %v4710 = vmul.f32 %v2017, %v4454
        %v4711 = vmul.f32 %v2018, %v4455
        %v4712 = vmul.f32 %v2019, %v4456
        %v4713 = vmul.f32 %v2020, %v4457
        %v4714 = vmul.f32 %v2021, %v4458
        %v4715 = vmul.f32 %v2022, %v4459
        %v4716 = vmul.f32 %v2023, %v4460
        %v4717 = vmul.f32 %v2024, %v4461
        %v4718 = vmul.f32 %v2025, %v4462
        %v4719 = vmul.f32 %v2026, %v4463
        %v4720 = vmul.f32 %v2027, %v4464
        %v4721 = vmul.f32 %v2028, %v4465
        %v4722 = vmul.f32 %v2029, %v4466
        %v4723 = vmul.f32 %v2030, %v4467
        %v4724 = vmul.f32 %v2031, %v4468
        %v4725 = vmul.f32 %v2032, %v4469
        %v4726 = vmul.f32 %v2033, %v4470
        %v4727 = vmul.f32 %v2034, %v4471
        %v4728 = vmul.f32 %v2035, %v4472
        %v4729 = vmul.f32 %v2036, %v4473
        %v4730 = vmul.f32 %v2037, %v4474
        %v4731 = vmul.f32 %v2038, %v4475
        %v4732 = vmul.f32 %v2039, %v4476
        %v4733 = vmul.f32 %v2040, %v4477
        %v4734 = vmul.f32 %v2041, %v4478
        %v4735 = vmul.f32 %v2042, %v4479
        %v4736 = vmul.f32 %v2043, %v4480
        %v4737 = vmul.f32 %v2044, %v4481
        %v4738 = vmul.f32 %v2045, %v4482
        %v4739 = vmul.f32 %v2046, %v4483
        %v4740 = vmul.f32 %v2047, %v4484
        %v4741 = vmul.f32 %v2048, %v4485
        %v4742 = vmul.f32 %v2049, %v4486
        %v4743 = vmul.f32 %v2050, %v4487
        %v4744 = vmul.f32 %v2051, %v4488
        %v4745 = vmul.f32 %v2052, %v4489
        %v4746 = vmul.f32 %v2053, %v4490
        %v4747 = vmul.f32 %v2054, %v4491
        %v4748 = vmul.f32 %v2055, %v4492
        %v4749 = vmul.f32 %v2056, %v4493
        %v4750 = vmul.f32 %v2057, %v4494
        %v4751 = vmul.f32 %v2058, %v4495
        %v4752 = vmul.f32 %v2059, %v4496
        %v4753 = vmul.f32 %v2060, %v4497
        %v4754 = vmul.f32 %v2061, %v4498
        %v4755 = vmul.f32 %v2062, %v4499
        %v4756 = vmul.f32 %v2063, %v4500
        %v4757 = vmul.f32 %v2064, %v4501
        %v4758 = vmul.f32 %v2065, %v4502
        %v4759 = vmul.f32 %v2066, %v4503
        %v4760 = vmul.f32 %v2067, %v4504
        %v4761 = vmul.f32 %v2068, %v4505
        %v4762 = vmul.f32 %v2069, %v4506
        %v4763 = vmul.f32 %v2070, %v4507
        %v4764 = vmul.f32 %v2071, %v4508
        %v4765 = vmul.f32 %v2072, %v4509
        %v4766 = vmul.f32 %v2073, %v4510
        %v4767 = vmul.f32 %v2074, %v4511
        %v4768 = vmul.f32 %v2075, %v4512
        %v4769 = vmul.f32 %v2076, %v4513
        %v4770 = vmul.f32 %v2077, %v4514
        %v4771 = vmul.f32 %v2078, %v4515
        %v4772 = vmul.f32 %v2079, %v4516
        %v4773 = vmul.f32 %v2080, %v4517
        %v4774 = vmul.f32 %v2081, %v4518
        %v4775 = vmul.f32 %v2082, %v4519
        %v4776 = vmul.f32 %v2083, %v4520
        %v4777 = vmul.f32 %v2084, %v4521
        %v4778 = vmul.f32 %v2085, %v4522
        %v4779 = vmul.f32 %v2086, %v4523
        %v4780 = vmul.f32 %v2087, %v4524
        %v4781 = vmul.f32 %v2088, %v4525
        %v4782 = vmul.f32 %v2089, %v4526
        %v4783 = vmul.f32 %v2090, %v4527
        %v4784 = vmul.f32 %v2091, %v4528
        %v4785 = vmul.f32 %v2092, %v4529
        %v4786 = vmul.f32 %v2093, %v4530
        %v4787 = vmul.f32 %v2094, %v4531
        %v4788 = vmul.f32 %v2095, %v4532
        %v4789 = vmul.f32 %v2096, %v4533
        %v4790 = vmul.f32 %v2097, %v4534
        %v4791 = vmul.f32 %v2098, %v4535
        %v4792 = vmul.f32 %v2099, %v4536
        %v4793 = vmul.f32 %v2100, %v4537
        %v4794 = vmul.f32 %v2101, %v4538
        %v4795 = vmul.f32 %v2102, %v4539
        %v4796 = vmul.f32 %v2103, %v4540
        %v4797 = vmul.f32 %v2104, %v4541
        %v4798 = vmul.f32 %v2105, %v4542
        %v4799 = vmul.f32 %v2106, %v4543
        %v4800 = vmul.f32 %v2107, %v4544
        %v4801 = vmul.f32 %v2108, %v4545
        %v4802 = vmul.f32 %v2109, %v4546
        %v4803 = vmul.f32 %v2110, %v4547
        %v4804 = vmul.f32 %v2111, %v4548
        %v4805 = vmul.f32 %v2112, %v4549
        %v4806 = vmul.f32 %v2113, %v4550
        %v4807 = vmul.f32 %v2114, %v4551
        %v4808 = vmul.f32 %v2115, %v4552
        %v4809 = vmul.f32 %v2116, %v4553
        %v4810 = vmul.f32 %v2117, %v4554
        %v4811 = vmul.f32 %v2118, %v4555
        %v4812 = vmul.f32 %v2119, %v4556
        %v4813 = vmul.f32 %v2120, %v4557
        %v4814 = vmul.f32 %v2121, %v4558
        %v4815 = vmul.f32 %v2122, %v4559
        %v4816 = vmul.f32 %v2123, %v4560
        %v4817 = vmul.f32 %v2124, %v4561
        %v4818 = vmul.f32 %v2125, %v4562
        %v4819 = vmul.f32 %v2126, %v4563
        %v4820 = vmul.f32 %v2127, %v4564
        %v4821 = vmul.f32 %v2128, %v4565
        %v4822 = vmul.f32 %v2129, %v4566
        %v4823 = vmul.f32 %v2130, %v4567
        %v4824 = vmul.f32 %v2131, %v4568
        %v4825 = vmul.f32 %v2132, %v4569
        %v4826 = vmul.f32 %v2133, %v4570
        %v4827 = vmul.f32 %v2134, %v4571
        %v4828 = vmul.f32 %v2135, %v4572
        %v4829 = vmul.f32 %v2136, %v4573
        %v4830 = vmul.f32 %v2137, %v4574
        %v4831 = vmul.f32 %v2138, %v4575
        %v4832 = vmul.f32 %v2139, %v4576
        %v4833 = vmul.f32 %v2140, %v4577
        %v4834 = vmul.f32 %v2141, %v4578
        %v4835 = vmul.f32 %v2142, %v4579
        %v4836 = vmul.f32 %v2143, %v4580
        %v4837 = vmul.f32 %v2144, %v4581
        %v4838 = vmul.f32 %v2145, %v4582
        %v4839 = vmul.f32 %v2146, %v4583
        %v4840 = vmul.f32 %v2147, %v4584
        %v4841 = vmul.f32 %v2148, %v4585
        %v4842 = vmul.f32 %v2149, %v4586
        %v4843 = vmul.f32 %v2150, %v4587
        %v4844 = vmul.f32 %v2151, %v4588
        %v4845 = vmul.f32 %v2152, %v4589
        %v4846 = vmul.f32 %v2153, %v4590
        %v4847 = vmul.f32 %v2154, %v4591
        %v4848 = vmul.f32 %v2155, %v4592
        %v4849 = vmul.f32 %v2156, %v4593
        %v4850 = vmul.f32 %v2157, %v4594
        %v4851 = vmul.f32 %v2158, %v4595
        %v4852 = vmul.f32 %v2159, %v4596
        %v4853 = vmul.f32 %v2160, %v4597
        %v4854 = vmul.f32 %v2161, %v4598
        %v4855 = vmul.f32 %v2162, %v4599
        %v4856 = vmul.f32 %v2163, %v4600
        %v4857 = vmul.f32 %v2164, %v4601
        %v4858 = vmul.f32 %v2165, %v4602
        %v4859 = vmul.f32 %v2166, %v4603
        %v4860 = vmul.f32 %v2167, %v4604
        %v4861 = vmul.f32 %v2168, %v4605
        %v4862 = vmul.f32 %v2169, %v4606
        %v4863 = vmul.f32 %v2170, %v4607
        %v4864 = vmul.f32 %v2171, %v4608
        %v4865 = vmul.f32 %v2172, %v4609
        %v4866 = vmul.f32 %v2173, %v4610
        %v4867 = vmul.f32 %v2174, %v4611
        %v4868 = vmul.f32 %v2175, %v4612
        %v4869 = vmul.f32 %v2176, %v4613
        %v4870 = vmul.f32 %v2177, %v4614
        %v4871 = vmul.f32 %v2178, %v4615
        %v4872 = vmul.f32 %v2179, %v4616
        %v4873 = vmul.f32 %v2180, %v4617
        %v4874 = vmul.f32 %v2181, %v4618
        %v4875 = vmul.f32 %v2182, %v4619
        %v4876 = vmul.f32 %v2183, %v4620
        %v4877 = vmul.f32 %v2184, %v4621
        %v4878 = vmul.f32 %v2185, %v4622
        %v4879 = vmul.f32 %v2186, %v4623
        %v4880 = vmul.f32 %v2187, %v4624
        %v4881 = vmul.f32 %v2188, %v4625
        %v4882 = vmul.f32 %v2189, %v4626
        %v4883 = vmul.f32 %v2190, %v4627
        %v4884 = vmul.f32 %v2191, %v4628
        %v4885 = vmul.f32 %v2192, %v4629
        %v4886 = vmul.f32 %v2193, %v4630
        %v4887 = vmul.f32 %v2194, %v4631
        %v4888 = vmul.f32 %v2195, %v4632
        %v4889 = vmul.f32 %v2196, %v4633
        %v4890 = vmul.f32 %v2197, %v4634
        %v4891 = vmul.f32 %v2198, %v4635
        %v4892 = vmul.f32 %v2199, %v4636
        %v4893 = vmul.f32 %v2200, %v4637
        %v4894 = vmul.f32 %v2201, %v4638
        %v4895 = vmul.f32 %v2202, %v4639
        %v4896 = vmul.f32 %v2203, %v4640
        %v4897 = vmul.f32 %v2204, %v4641
        %v4898 = vmul.f32 %v2205, %v4642
        %v4899 = vmul.f32 %v2206, %v4643
        %v4900 = vmul.f32 %v2207, %v4644
        %v4901 = vmul.f32 %v2208, %v4645
        %v4902 = vmul.f32 %v2209, %v4646
        %v4903 = vmul.f32 %v2210, %v4647
        %v4904 = vmul.f32 %v2211, %v4648
        %v4905 = vmul.f32 %v2212, %v4649
        %v4906 = vmul.f32 %v2213, %v4650
        %v4907 = vmul.f32 %v2214, %v4651
        %v4908 = vmul.f32 %v2215, %v4652
        %v4909 = vmul.f32 %v2216, %v4653
        %v4910 = vmul.f32 %v2217, %v4654
        %v4911 = vmul.f32 %v2218, %v4655
        %v4912 = vmul.f32 %v2219, %v4656
        %v4913 = vmul.f32 %v2220, %v4657
        %v4914 = vmul.f32 %v2221, %v4658
        %v4915 = vmul.f32 %v2222, %v4659
        %v4916 = vmul.f32 %v2223, %v4660
        %v4917 = vmul.f32 %v2224, %v4661
        %v4918 = vmul.f32 %v2225, %v4662
        %v4919 = vmul.f32 %v2226, %v4663
        %v4920 = vmul.f32 %v2227, %v4664
        %v4921 = vmul.f32 %v2228, %v4665
        %v4922 = vmul.f32 %v2229, %v4666
        %v4923 = vmul.f32 %v2230, %v4667
        %v4924 = vmul.f32 %v2231, %v4668
        %v4925 = vmul.f32 %v2232, %v4669
        %v4926 = vmul.f32 %v2233, %v4670
        %v4927 = vmul.f32 %v2234, %v4671
        %v4928 = vmul.f32 %v2235, %v4672
        %v4929 = vmul.f32 %v2236, %v4673
        %v4930 = vmul.f32 %v2237, %v4674
        %v4931 = vmul.f32 %v2238, %v4675
        %v4932 = vmul.f32 %v2239, %v4676
        %v4933 = vmul.f32 %v2240, %v4677
        %v4934 = vmul.f32 %v2241, %v4678
        %v4935 = vmul.f32 %v2242, %v4679
        %v4936 = vmul.f32 %v2243, %v4680
        %v4937 = vmul.f32 %v2244, %v4681
        %v4938 = vmul.f32 %v2245, %v4682
        %v4939 = vmul.f32 %v2246, %v4683
        %v4940 = vmul.f32 %v2247, %v4684
        %v4941 = vmul.f32 %v2248, %v4685
        %v4942 = vmul.f32 %v2249, %v4686
        %v4943 = vmul.f32 %v2250, %v4687
        %v4944 = vmul.f32 %v2251, %v4688
        %v4945 = vmul.f32 %v2252, %v4689
        %v4946 = vmul.f32 %v2253, %v4690
        %v4947 = vmul.f32 %v2254, %v4691
        %v4948 = vmul.f32 %v2255, %v4692
        %v4949 = vmul.f32 %v2256, %v4693
        %v4950 = vmul.f32 %v2257, %v4694
        %v4951 = vmul.f32 %v2258, %v4695
        %v4952 = vmul.f32 %v2259, %v4696
        %v4953 = vmul.f32 %v2260, %v4697
        %v4954 = vmul.f32 %v2261, %v4698
        %v4955 = vmul.f32 %v2262, %v4699
        %v4956 = vmul.f32 %v2263, %v4700
        %v4957 = vmul.f32 %v2264, %v4701
        %v4958 = vmul.f32 %v2265, %v4702
        %v4959 = vmul.f32 %v2266, %v4703
        %v4960 = vsel %vm3934, %v4704, 0.0
        %v4961 = vsel %vm3934, %v4705, 0.0
        %v4962 = vadd.f32 %v4960, %v4961
        %v4963 = vsel %vm3934, %v4706, 0.0
        %v4964 = vadd.f32 %v4962, %v4963
        %v4965 = vsel %vm3934, %v4707, 0.0
        %v4966 = vadd.f32 %v4964, %v4965
        %v4967 = vsel %vm3934, %v4708, 0.0
        %v4968 = vadd.f32 %v4966, %v4967
        %v4969 = vsel %vm3934, %v4709, 0.0
        %v4970 = vadd.f32 %v4968, %v4969
        %v4971 = vsel %vm3934, %v4710, 0.0
        %v4972 = vadd.f32 %v4970, %v4971
        %v4973 = vsel %vm3934, %v4711, 0.0
        %v4974 = vadd.f32 %v4972, %v4973
        %v4975 = vsel %vm3934, %v4712, 0.0
        %v4976 = vadd.f32 %v4974, %v4975
        %v4977 = vsel %vm3934, %v4713, 0.0
        %v4978 = vadd.f32 %v4976, %v4977
        %v4979 = vsel %vm3934, %v4714, 0.0
        %v4980 = vadd.f32 %v4978, %v4979
        %v4981 = vsel %vm3934, %v4715, 0.0
        %v4982 = vadd.f32 %v4980, %v4981
        %v4983 = vsel %vm3934, %v4716, 0.0
        %v4984 = vadd.f32 %v4982, %v4983
        %v4985 = vsel %vm3934, %v4717, 0.0
        %v4986 = vadd.f32 %v4984, %v4985
        %v4987 = vsel %vm3934, %v4718, 0.0
        %v4988 = vadd.f32 %v4986, %v4987
        %v4989 = vsel %vm3934, %v4719, 0.0
        %v4990 = vadd.f32 %v4988, %v4989
        %v4991 = vsel %vm3934, %v4720, 0.0
        %v4992 = vadd.f32 %v4990, %v4991
        %v4993 = vsel %vm3934, %v4721, 0.0
        %v4994 = vadd.f32 %v4992, %v4993
        %v4995 = vsel %vm3934, %v4722, 0.0
        %v4996 = vadd.f32 %v4994, %v4995
        %v4997 = vsel %vm3934, %v4723, 0.0
        %v4998 = vadd.f32 %v4996, %v4997
        %v4999 = vsel %vm3934, %v4724, 0.0
        %v5000 = vadd.f32 %v4998, %v4999
        %v5001 = vsel %vm3934, %v4725, 0.0
        %v5002 = vadd.f32 %v5000, %v5001
        %v5003 = vsel %vm3934, %v4726, 0.0
        %v5004 = vadd.f32 %v5002, %v5003
        %v5005 = vsel %vm3934, %v4727, 0.0
        %v5006 = vadd.f32 %v5004, %v5005
        %v5007 = vsel %vm3934, %v4728, 0.0
        %v5008 = vadd.f32 %v5006, %v5007
        %v5009 = vsel %vm3934, %v4729, 0.0
        %v5010 = vadd.f32 %v5008, %v5009
        %v5011 = vsel %vm3934, %v4730, 0.0
        %v5012 = vadd.f32 %v5010, %v5011
        %v5013 = vsel %vm3934, %v4731, 0.0
        %v5014 = vadd.f32 %v5012, %v5013
        %v5015 = vsel %vm3934, %v4732, 0.0
        %v5016 = vadd.f32 %v5014, %v5015
        %v5017 = vsel %vm3934, %v4733, 0.0
        %v5018 = vadd.f32 %v5016, %v5017
        %v5019 = vsel %vm3934, %v4734, 0.0
        %v5020 = vadd.f32 %v5018, %v5019
        %v5021 = vsel %vm3934, %v4735, 0.0
        %v5022 = vadd.f32 %v5020, %v5021
        %v5023 = vsel %vm3934, %v4736, 0.0
        %v5024 = vadd.f32 %v5022, %v5023
        %v5025 = vsel %vm3934, %v4737, 0.0
        %v5026 = vadd.f32 %v5024, %v5025
        %v5027 = vsel %vm3934, %v4738, 0.0
        %v5028 = vadd.f32 %v5026, %v5027
        %v5029 = vsel %vm3934, %v4739, 0.0
        %v5030 = vadd.f32 %v5028, %v5029
        %v5031 = vsel %vm3934, %v4740, 0.0
        %v5032 = vadd.f32 %v5030, %v5031
        %v5033 = vsel %vm3934, %v4741, 0.0
        %v5034 = vadd.f32 %v5032, %v5033
        %v5035 = vsel %vm3934, %v4742, 0.0
        %v5036 = vadd.f32 %v5034, %v5035
        %v5037 = vsel %vm3934, %v4743, 0.0
        %v5038 = vadd.f32 %v5036, %v5037
        %v5039 = vsel %vm3934, %v4744, 0.0
        %v5040 = vadd.f32 %v5038, %v5039
        %v5041 = vsel %vm3934, %v4745, 0.0
        %v5042 = vadd.f32 %v5040, %v5041
        %v5043 = vsel %vm3934, %v4746, 0.0
        %v5044 = vadd.f32 %v5042, %v5043
        %v5045 = vsel %vm3934, %v4747, 0.0
        %v5046 = vadd.f32 %v5044, %v5045
        %v5047 = vsel %vm3934, %v4748, 0.0
        %v5048 = vadd.f32 %v5046, %v5047
        %v5049 = vsel %vm3934, %v4749, 0.0
        %v5050 = vadd.f32 %v5048, %v5049
        %v5051 = vsel %vm3934, %v4750, 0.0
        %v5052 = vadd.f32 %v5050, %v5051
        %v5053 = vsel %vm3934, %v4751, 0.0
        %v5054 = vadd.f32 %v5052, %v5053
        %v5055 = vsel %vm3934, %v4752, 0.0
        %v5056 = vadd.f32 %v5054, %v5055
        %v5057 = vsel %vm3934, %v4753, 0.0
        %v5058 = vadd.f32 %v5056, %v5057
        %v5059 = vsel %vm3934, %v4754, 0.0
        %v5060 = vadd.f32 %v5058, %v5059
        %v5061 = vsel %vm3934, %v4755, 0.0
        %v5062 = vadd.f32 %v5060, %v5061
        %v5063 = vsel %vm3934, %v4756, 0.0
        %v5064 = vadd.f32 %v5062, %v5063
        %v5065 = vsel %vm3934, %v4757, 0.0
        %v5066 = vadd.f32 %v5064, %v5065
        %v5067 = vsel %vm3934, %v4758, 0.0
        %v5068 = vadd.f32 %v5066, %v5067
        %v5069 = vsel %vm3934, %v4759, 0.0
        %v5070 = vadd.f32 %v5068, %v5069
        %v5071 = vsel %vm3934, %v4760, 0.0
        %v5072 = vadd.f32 %v5070, %v5071
        %v5073 = vsel %vm3934, %v4761, 0.0
        %v5074 = vadd.f32 %v5072, %v5073
        %v5075 = vsel %vm3934, %v4762, 0.0
        %v5076 = vadd.f32 %v5074, %v5075
        %v5077 = vsel %vm3934, %v4763, 0.0
        %v5078 = vadd.f32 %v5076, %v5077
        %v5079 = vsel %vm3934, %v4764, 0.0
        %v5080 = vadd.f32 %v5078, %v5079
        %v5081 = vsel %vm3934, %v4765, 0.0
        %v5082 = vadd.f32 %v5080, %v5081
        %v5083 = vsel %vm3934, %v4766, 0.0
        %v5084 = vadd.f32 %v5082, %v5083
        %v5085 = vsel %vm3934, %v4767, 0.0
        %v5086 = vadd.f32 %v5084, %v5085
        %v5087 = vsel %vm3934, %v4768, 0.0
        %v5088 = vadd.f32 %v5086, %v5087
        %v5089 = vsel %vm3934, %v4769, 0.0
        %v5090 = vadd.f32 %v5088, %v5089
        %v5091 = vsel %vm3934, %v4770, 0.0
        %v5092 = vadd.f32 %v5090, %v5091
        %v5093 = vsel %vm3934, %v4771, 0.0
        %v5094 = vadd.f32 %v5092, %v5093
        %v5095 = vsel %vm3934, %v4772, 0.0
        %v5096 = vadd.f32 %v5094, %v5095
        %v5097 = vsel %vm3934, %v4773, 0.0
        %v5098 = vadd.f32 %v5096, %v5097
        %v5099 = vsel %vm3934, %v4774, 0.0
        %v5100 = vadd.f32 %v5098, %v5099
        %v5101 = vsel %vm3934, %v4775, 0.0
        %v5102 = vadd.f32 %v5100, %v5101
        %v5103 = vsel %vm3934, %v4776, 0.0
        %v5104 = vadd.f32 %v5102, %v5103
        %v5105 = vsel %vm3934, %v4777, 0.0
        %v5106 = vadd.f32 %v5104, %v5105
        %v5107 = vsel %vm3934, %v4778, 0.0
        %v5108 = vadd.f32 %v5106, %v5107
        %v5109 = vsel %vm3934, %v4779, 0.0
        %v5110 = vadd.f32 %v5108, %v5109
        %v5111 = vsel %vm3934, %v4780, 0.0
        %v5112 = vadd.f32 %v5110, %v5111
        %v5113 = vsel %vm3934, %v4781, 0.0
        %v5114 = vadd.f32 %v5112, %v5113
        %v5115 = vsel %vm3934, %v4782, 0.0
        %v5116 = vadd.f32 %v5114, %v5115
        %v5117 = vsel %vm3934, %v4783, 0.0
        %v5118 = vadd.f32 %v5116, %v5117
        %v5119 = vsel %vm3934, %v4784, 0.0
        %v5120 = vadd.f32 %v5118, %v5119
        %v5121 = vsel %vm3934, %v4785, 0.0
        %v5122 = vadd.f32 %v5120, %v5121
        %v5123 = vsel %vm3934, %v4786, 0.0
        %v5124 = vadd.f32 %v5122, %v5123
        %v5125 = vsel %vm3934, %v4787, 0.0
        %v5126 = vadd.f32 %v5124, %v5125
        %v5127 = vsel %vm3934, %v4788, 0.0
        %v5128 = vadd.f32 %v5126, %v5127
        %v5129 = vsel %vm3934, %v4789, 0.0
        %v5130 = vadd.f32 %v5128, %v5129
        %v5131 = vsel %vm3934, %v4790, 0.0
        %v5132 = vadd.f32 %v5130, %v5131
        %v5133 = vsel %vm3934, %v4791, 0.0
        %v5134 = vadd.f32 %v5132, %v5133
        %v5135 = vsel %vm3934, %v4792, 0.0
        %v5136 = vadd.f32 %v5134, %v5135
        %v5137 = vsel %vm3934, %v4793, 0.0
        %v5138 = vadd.f32 %v5136, %v5137
        %v5139 = vsel %vm3934, %v4794, 0.0
        %v5140 = vadd.f32 %v5138, %v5139
        %v5141 = vsel %vm3934, %v4795, 0.0
        %v5142 = vadd.f32 %v5140, %v5141
        %v5143 = vsel %vm3934, %v4796, 0.0
        %v5144 = vadd.f32 %v5142, %v5143
        %v5145 = vsel %vm3934, %v4797, 0.0
        %v5146 = vadd.f32 %v5144, %v5145
        %v5147 = vsel %vm3934, %v4798, 0.0
        %v5148 = vadd.f32 %v5146, %v5147
        %v5149 = vsel %vm3934, %v4799, 0.0
        %v5150 = vadd.f32 %v5148, %v5149
        %v5151 = vsel %vm3934, %v4800, 0.0
        %v5152 = vadd.f32 %v5150, %v5151
        %v5153 = vsel %vm3934, %v4801, 0.0
        %v5154 = vadd.f32 %v5152, %v5153
        %v5155 = vsel %vm3934, %v4802, 0.0
        %v5156 = vadd.f32 %v5154, %v5155
        %v5157 = vsel %vm3934, %v4803, 0.0
        %v5158 = vadd.f32 %v5156, %v5157
        %v5159 = vsel %vm3934, %v4804, 0.0
        %v5160 = vadd.f32 %v5158, %v5159
        %v5161 = vsel %vm3934, %v4805, 0.0
        %v5162 = vadd.f32 %v5160, %v5161
        %v5163 = vsel %vm3934, %v4806, 0.0
        %v5164 = vadd.f32 %v5162, %v5163
        %v5165 = vsel %vm3934, %v4807, 0.0
        %v5166 = vadd.f32 %v5164, %v5165
        %v5167 = vsel %vm3934, %v4808, 0.0
        %v5168 = vadd.f32 %v5166, %v5167
        %v5169 = vsel %vm3934, %v4809, 0.0
        %v5170 = vadd.f32 %v5168, %v5169
        %v5171 = vsel %vm3934, %v4810, 0.0
        %v5172 = vadd.f32 %v5170, %v5171
        %v5173 = vsel %vm3934, %v4811, 0.0
        %v5174 = vadd.f32 %v5172, %v5173
        %v5175 = vsel %vm3934, %v4812, 0.0
        %v5176 = vadd.f32 %v5174, %v5175
        %v5177 = vsel %vm3934, %v4813, 0.0
        %v5178 = vadd.f32 %v5176, %v5177
        %v5179 = vsel %vm3934, %v4814, 0.0
        %v5180 = vadd.f32 %v5178, %v5179
        %v5181 = vsel %vm3934, %v4815, 0.0
        %v5182 = vadd.f32 %v5180, %v5181
        %v5183 = vsel %vm3934, %v4816, 0.0
        %v5184 = vadd.f32 %v5182, %v5183
        %v5185 = vsel %vm3934, %v4817, 0.0
        %v5186 = vadd.f32 %v5184, %v5185
        %v5187 = vsel %vm3934, %v4818, 0.0
        %v5188 = vadd.f32 %v5186, %v5187
        %v5189 = vsel %vm3934, %v4819, 0.0
        %v5190 = vadd.f32 %v5188, %v5189
        %v5191 = vsel %vm3934, %v4820, 0.0
        %v5192 = vadd.f32 %v5190, %v5191
        %v5193 = vsel %vm3934, %v4821, 0.0
        %v5194 = vadd.f32 %v5192, %v5193
        %v5195 = vsel %vm3934, %v4822, 0.0
        %v5196 = vadd.f32 %v5194, %v5195
        %v5197 = vsel %vm3934, %v4823, 0.0
        %v5198 = vadd.f32 %v5196, %v5197
        %v5199 = vsel %vm3934, %v4824, 0.0
        %v5200 = vadd.f32 %v5198, %v5199
        %v5201 = vsel %vm3934, %v4825, 0.0
        %v5202 = vadd.f32 %v5200, %v5201
        %v5203 = vsel %vm3934, %v4826, 0.0
        %v5204 = vadd.f32 %v5202, %v5203
        %v5205 = vsel %vm3934, %v4827, 0.0
        %v5206 = vadd.f32 %v5204, %v5205
        %v5207 = vsel %vm3934, %v4828, 0.0
        %v5208 = vadd.f32 %v5206, %v5207
        %v5209 = vsel %vm3934, %v4829, 0.0
        %v5210 = vadd.f32 %v5208, %v5209
        %v5211 = vsel %vm3934, %v4830, 0.0
        %v5212 = vadd.f32 %v5210, %v5211
        %v5213 = vsel %vm3934, %v4831, 0.0
        %v5214 = vadd.f32 %v5212, %v5213
        %v5215 = vsel %vm3934, %v4832, 0.0
        %v5216 = vadd.f32 %v5214, %v5215
        %v5217 = vsel %vm3934, %v4833, 0.0
        %v5218 = vadd.f32 %v5216, %v5217
        %v5219 = vsel %vm3934, %v4834, 0.0
        %v5220 = vadd.f32 %v5218, %v5219
        %v5221 = vsel %vm3934, %v4835, 0.0
        %v5222 = vadd.f32 %v5220, %v5221
        %v5223 = vsel %vm3934, %v4836, 0.0
        %v5224 = vadd.f32 %v5222, %v5223
        %v5225 = vsel %vm3934, %v4837, 0.0
        %v5226 = vadd.f32 %v5224, %v5225
        %v5227 = vsel %vm3934, %v4838, 0.0
        %v5228 = vadd.f32 %v5226, %v5227
        %v5229 = vsel %vm3934, %v4839, 0.0
        %v5230 = vadd.f32 %v5228, %v5229
        %v5231 = vsel %vm3934, %v4840, 0.0
        %v5232 = vadd.f32 %v5230, %v5231
        %v5233 = vsel %vm3934, %v4841, 0.0
        %v5234 = vadd.f32 %v5232, %v5233
        %v5235 = vsel %vm3934, %v4842, 0.0
        %v5236 = vadd.f32 %v5234, %v5235
        %v5237 = vsel %vm3934, %v4843, 0.0
        %v5238 = vadd.f32 %v5236, %v5237
        %v5239 = vsel %vm3934, %v4844, 0.0
        %v5240 = vadd.f32 %v5238, %v5239
        %v5241 = vsel %vm3934, %v4845, 0.0
        %v5242 = vadd.f32 %v5240, %v5241
        %v5243 = vsel %vm3934, %v4846, 0.0
        %v5244 = vadd.f32 %v5242, %v5243
        %v5245 = vsel %vm3934, %v4847, 0.0
        %v5246 = vadd.f32 %v5244, %v5245
        %v5247 = vsel %vm3934, %v4848, 0.0
        %v5248 = vadd.f32 %v5246, %v5247
        %v5249 = vsel %vm3934, %v4849, 0.0
        %v5250 = vadd.f32 %v5248, %v5249
        %v5251 = vsel %vm3934, %v4850, 0.0
        %v5252 = vadd.f32 %v5250, %v5251
        %v5253 = vsel %vm3934, %v4851, 0.0
        %v5254 = vadd.f32 %v5252, %v5253
        %v5255 = vsel %vm3934, %v4852, 0.0
        %v5256 = vadd.f32 %v5254, %v5255
        %v5257 = vsel %vm3934, %v4853, 0.0
        %v5258 = vadd.f32 %v5256, %v5257
        %v5259 = vsel %vm3934, %v4854, 0.0
        %v5260 = vadd.f32 %v5258, %v5259
        %v5261 = vsel %vm3934, %v4855, 0.0
        %v5262 = vadd.f32 %v5260, %v5261
        %v5263 = vsel %vm3934, %v4856, 0.0
        %v5264 = vadd.f32 %v5262, %v5263
        %v5265 = vsel %vm3934, %v4857, 0.0
        %v5266 = vadd.f32 %v5264, %v5265
        %v5267 = vsel %vm3934, %v4858, 0.0
        %v5268 = vadd.f32 %v5266, %v5267
        %v5269 = vsel %vm3934, %v4859, 0.0
        %v5270 = vadd.f32 %v5268, %v5269
        %v5271 = vsel %vm3934, %v4860, 0.0
        %v5272 = vadd.f32 %v5270, %v5271
        %v5273 = vsel %vm3934, %v4861, 0.0
        %v5274 = vadd.f32 %v5272, %v5273
        %v5275 = vsel %vm3934, %v4862, 0.0
        %v5276 = vadd.f32 %v5274, %v5275
        %v5277 = vsel %vm3934, %v4863, 0.0
        %v5278 = vadd.f32 %v5276, %v5277
        %v5279 = vsel %vm3934, %v4864, 0.0
        %v5280 = vadd.f32 %v5278, %v5279
        %v5281 = vsel %vm3934, %v4865, 0.0
        %v5282 = vadd.f32 %v5280, %v5281
        %v5283 = vsel %vm3934, %v4866, 0.0
        %v5284 = vadd.f32 %v5282, %v5283
        %v5285 = vsel %vm3934, %v4867, 0.0
        %v5286 = vadd.f32 %v5284, %v5285
        %v5287 = vsel %vm3934, %v4868, 0.0
        %v5288 = vadd.f32 %v5286, %v5287
        %v5289 = vsel %vm3934, %v4869, 0.0
        %v5290 = vadd.f32 %v5288, %v5289
        %v5291 = vsel %vm3934, %v4870, 0.0
        %v5292 = vadd.f32 %v5290, %v5291
        %v5293 = vsel %vm3934, %v4871, 0.0
        %v5294 = vadd.f32 %v5292, %v5293
        %v5295 = vsel %vm3934, %v4872, 0.0
        %v5296 = vadd.f32 %v5294, %v5295
        %v5297 = vsel %vm3934, %v4873, 0.0
        %v5298 = vadd.f32 %v5296, %v5297
        %v5299 = vsel %vm3934, %v4874, 0.0
        %v5300 = vadd.f32 %v5298, %v5299
        %v5301 = vsel %vm3934, %v4875, 0.0
        %v5302 = vadd.f32 %v5300, %v5301
        %v5303 = vsel %vm3934, %v4876, 0.0
        %v5304 = vadd.f32 %v5302, %v5303
        %v5305 = vsel %vm3934, %v4877, 0.0
        %v5306 = vadd.f32 %v5304, %v5305
        %v5307 = vsel %vm3934, %v4878, 0.0
        %v5308 = vadd.f32 %v5306, %v5307
        %v5309 = vsel %vm3934, %v4879, 0.0
        %v5310 = vadd.f32 %v5308, %v5309
        %v5311 = vsel %vm3934, %v4880, 0.0
        %v5312 = vadd.f32 %v5310, %v5311
        %v5313 = vsel %vm3934, %v4881, 0.0
        %v5314 = vadd.f32 %v5312, %v5313
        %v5315 = vsel %vm3934, %v4882, 0.0
        %v5316 = vadd.f32 %v5314, %v5315
        %v5317 = vsel %vm3934, %v4883, 0.0
        %v5318 = vadd.f32 %v5316, %v5317
        %v5319 = vsel %vm3934, %v4884, 0.0
        %v5320 = vadd.f32 %v5318, %v5319
        %v5321 = vsel %vm3934, %v4885, 0.0
        %v5322 = vadd.f32 %v5320, %v5321
        %v5323 = vsel %vm3934, %v4886, 0.0
        %v5324 = vadd.f32 %v5322, %v5323
        %v5325 = vsel %vm3934, %v4887, 0.0
        %v5326 = vadd.f32 %v5324, %v5325
        %v5327 = vsel %vm3934, %v4888, 0.0
        %v5328 = vadd.f32 %v5326, %v5327
        %v5329 = vsel %vm3934, %v4889, 0.0
        %v5330 = vadd.f32 %v5328, %v5329
        %v5331 = vsel %vm3934, %v4890, 0.0
        %v5332 = vadd.f32 %v5330, %v5331
        %v5333 = vsel %vm3934, %v4891, 0.0
        %v5334 = vadd.f32 %v5332, %v5333
        %v5335 = vsel %vm3934, %v4892, 0.0
        %v5336 = vadd.f32 %v5334, %v5335
        %v5337 = vsel %vm3934, %v4893, 0.0
        %v5338 = vadd.f32 %v5336, %v5337
        %v5339 = vsel %vm3934, %v4894, 0.0
        %v5340 = vadd.f32 %v5338, %v5339
        %v5341 = vsel %vm3934, %v4895, 0.0
        %v5342 = vadd.f32 %v5340, %v5341
        %v5343 = vsel %vm3934, %v4896, 0.0
        %v5344 = vadd.f32 %v5342, %v5343
        %v5345 = vsel %vm3934, %v4897, 0.0
        %v5346 = vadd.f32 %v5344, %v5345
        %v5347 = vsel %vm3934, %v4898, 0.0
        %v5348 = vadd.f32 %v5346, %v5347
        %v5349 = vsel %vm3934, %v4899, 0.0
        %v5350 = vadd.f32 %v5348, %v5349
        %v5351 = vsel %vm3934, %v4900, 0.0
        %v5352 = vadd.f32 %v5350, %v5351
        %v5353 = vsel %vm3934, %v4901, 0.0
        %v5354 = vadd.f32 %v5352, %v5353
        %v5355 = vsel %vm3934, %v4902, 0.0
        %v5356 = vadd.f32 %v5354, %v5355
        %v5357 = vsel %vm3934, %v4903, 0.0
        %v5358 = vadd.f32 %v5356, %v5357
        %v5359 = vsel %vm3934, %v4904, 0.0
        %v5360 = vadd.f32 %v5358, %v5359
        %v5361 = vsel %vm3934, %v4905, 0.0
        %v5362 = vadd.f32 %v5360, %v5361
        %v5363 = vsel %vm3934, %v4906, 0.0
        %v5364 = vadd.f32 %v5362, %v5363
        %v5365 = vsel %vm3934, %v4907, 0.0
        %v5366 = vadd.f32 %v5364, %v5365
        %v5367 = vsel %vm3934, %v4908, 0.0
        %v5368 = vadd.f32 %v5366, %v5367
        %v5369 = vsel %vm3934, %v4909, 0.0
        %v5370 = vadd.f32 %v5368, %v5369
        %v5371 = vsel %vm3934, %v4910, 0.0
        %v5372 = vadd.f32 %v5370, %v5371
        %v5373 = vsel %vm3934, %v4911, 0.0
        %v5374 = vadd.f32 %v5372, %v5373
        %v5375 = vsel %vm3934, %v4912, 0.0
        %v5376 = vadd.f32 %v5374, %v5375
        %v5377 = vsel %vm3934, %v4913, 0.0
        %v5378 = vadd.f32 %v5376, %v5377
        %v5379 = vsel %vm3934, %v4914, 0.0
        %v5380 = vadd.f32 %v5378, %v5379
        %v5381 = vsel %vm3934, %v4915, 0.0
        %v5382 = vadd.f32 %v5380, %v5381
        %v5383 = vsel %vm3934, %v4916, 0.0
        %v5384 = vadd.f32 %v5382, %v5383
        %v5385 = vsel %vm3934, %v4917, 0.0
        %v5386 = vadd.f32 %v5384, %v5385
        %v5387 = vsel %vm3934, %v4918, 0.0
        %v5388 = vadd.f32 %v5386, %v5387
        %v5389 = vsel %vm3934, %v4919, 0.0
        %v5390 = vadd.f32 %v5388, %v5389
        %v5391 = vsel %vm3934, %v4920, 0.0
        %v5392 = vadd.f32 %v5390, %v5391
        %v5393 = vsel %vm3934, %v4921, 0.0
        %v5394 = vadd.f32 %v5392, %v5393
        %v5395 = vsel %vm3934, %v4922, 0.0
        %v5396 = vadd.f32 %v5394, %v5395
        %v5397 = vsel %vm3934, %v4923, 0.0
        %v5398 = vadd.f32 %v5396, %v5397
        %v5399 = vsel %vm3934, %v4924, 0.0
        %v5400 = vadd.f32 %v5398, %v5399
        %v5401 = vsel %vm3934, %v4925, 0.0
        %v5402 = vadd.f32 %v5400, %v5401
        %v5403 = vsel %vm3934, %v4926, 0.0
        %v5404 = vadd.f32 %v5402, %v5403
        %v5405 = vsel %vm3934, %v4927, 0.0
        %v5406 = vadd.f32 %v5404, %v5405
        %v5407 = vsel %vm3934, %v4928, 0.0
        %v5408 = vadd.f32 %v5406, %v5407
        %v5409 = vsel %vm3934, %v4929, 0.0
        %v5410 = vadd.f32 %v5408, %v5409
        %v5411 = vsel %vm3934, %v4930, 0.0
        %v5412 = vadd.f32 %v5410, %v5411
        %v5413 = vsel %vm3934, %v4931, 0.0
        %v5414 = vadd.f32 %v5412, %v5413
        %v5415 = vsel %vm3934, %v4932, 0.0
        %v5416 = vadd.f32 %v5414, %v5415
        %v5417 = vsel %vm3934, %v4933, 0.0
        %v5418 = vadd.f32 %v5416, %v5417
        %v5419 = vsel %vm3934, %v4934, 0.0
        %v5420 = vadd.f32 %v5418, %v5419
        %v5421 = vsel %vm3934, %v4935, 0.0
        %v5422 = vadd.f32 %v5420, %v5421
        %v5423 = vsel %vm3934, %v4936, 0.0
        %v5424 = vadd.f32 %v5422, %v5423
        %v5425 = vsel %vm3934, %v4937, 0.0
        %v5426 = vadd.f32 %v5424, %v5425
        %v5427 = vsel %vm3934, %v4938, 0.0
        %v5428 = vadd.f32 %v5426, %v5427
        %v5429 = vsel %vm3934, %v4939, 0.0
        %v5430 = vadd.f32 %v5428, %v5429
        %v5431 = vsel %vm3934, %v4940, 0.0
        %v5432 = vadd.f32 %v5430, %v5431
        %v5433 = vsel %vm3934, %v4941, 0.0
        %v5434 = vadd.f32 %v5432, %v5433
        %v5435 = vsel %vm3934, %v4942, 0.0
        %v5436 = vadd.f32 %v5434, %v5435
        %v5437 = vsel %vm3934, %v4943, 0.0
        %v5438 = vadd.f32 %v5436, %v5437
        %v5439 = vsel %vm3934, %v4944, 0.0
        %v5440 = vadd.f32 %v5438, %v5439
        %v5441 = vsel %vm3934, %v4945, 0.0
        %v5442 = vadd.f32 %v5440, %v5441
        %v5443 = vsel %vm3934, %v4946, 0.0
        %v5444 = vadd.f32 %v5442, %v5443
        %v5445 = vsel %vm3934, %v4947, 0.0
        %v5446 = vadd.f32 %v5444, %v5445
        %v5447 = vsel %vm3934, %v4948, 0.0
        %v5448 = vadd.f32 %v5446, %v5447
        %v5449 = vsel %vm3934, %v4949, 0.0
        %v5450 = vadd.f32 %v5448, %v5449
        %v5451 = vsel %vm3934, %v4950, 0.0
        %v5452 = vadd.f32 %v5450, %v5451
        %v5453 = vsel %vm3934, %v4951, 0.0
        %v5454 = vadd.f32 %v5452, %v5453
        %v5455 = vsel %vm3934, %v4952, 0.0
        %v5456 = vadd.f32 %v5454, %v5455
        %v5457 = vsel %vm3934, %v4953, 0.0
        %v5458 = vadd.f32 %v5456, %v5457
        %v5459 = vsel %vm3934, %v4954, 0.0
        %v5460 = vadd.f32 %v5458, %v5459
        %v5461 = vsel %vm3934, %v4955, 0.0
        %v5462 = vadd.f32 %v5460, %v5461
        %v5463 = vsel %vm3934, %v4956, 0.0
        %v5464 = vadd.f32 %v5462, %v5463
        %v5465 = vsel %vm3934, %v4957, 0.0
        %v5466 = vadd.f32 %v5464, %v5465
        %v5467 = vsel %vm3934, %v4958, 0.0
        %v5468 = vadd.f32 %v5466, %v5467
        %v5469 = vsel %vm3934, %v4959, 0.0
        %v5470 = vadd.f32 %v5468, %v5469
        %5471 = vadd.xlane.f32.xlu0 %v5470
        %v5472 = vpop.xlane.xlu0 %5471
        %v5473 = vperm.slane %v3166, 2
        %v5474 = vperm.slane %v3167, 2
        %v5475 = vperm.slane %v3168, 2
        %v5476 = vperm.slane %v3169, 2
        %v5477 = vperm.slane %v3170, 2
        %v5478 = vperm.slane %v3171, 2
        %v5479 = vperm.slane %v3172, 2
        %v5480 = vperm.slane %v3173, 2
        %v5481 = vperm.slane %v3174, 2
        %v5482 = vperm.slane %v3175, 2
        %v5483 = vperm.slane %v3176, 2
        %v5484 = vperm.slane %v3177, 2
        %v5485 = vperm.slane %v3178, 2
        %v5486 = vperm.slane %v3179, 2
        %v5487 = vperm.slane %v3180, 2
        %v5488 = vperm.slane %v3181, 2
        %v5489 = vperm.slane %v3182, 2
        %v5490 = vperm.slane %v3183, 2
        %v5491 = vperm.slane %v3184, 2
        %v5492 = vperm.slane %v3185, 2
        %v5493 = vperm.slane %v3186, 2
        %v5494 = vperm.slane %v3187, 2
        %v5495 = vperm.slane %v3188, 2
        %v5496 = vperm.slane %v3189, 2
        %v5497 = vperm.slane %v3190, 2
        %v5498 = vperm.slane %v3191, 2
        %v5499 = vperm.slane %v3192, 2
        %v5500 = vperm.slane %v3193, 2
        %v5501 = vperm.slane %v3194, 2
        %v5502 = vperm.slane %v3195, 2
        %v5503 = vperm.slane %v3196, 2
        %v5504 = vperm.slane %v3197, 2
        %v5505 = vperm.slane %v3198, 2
        %v5506 = vperm.slane %v3199, 2
        %v5507 = vperm.slane %v3200, 2
        %v5508 = vperm.slane %v3201, 2
        %v5509 = vperm.slane %v3202, 2
        %v5510 = vperm.slane %v3203, 2
        %v5511 = vperm.slane %v3204, 2
        %v5512 = vperm.slane %v3205, 2
        %v5513 = vperm.slane %v3206, 2
        %v5514 = vperm.slane %v3207, 2
        %v5515 = vperm.slane %v3208, 2
        %v5516 = vperm.slane %v3209, 2
        %v5517 = vperm.slane %v3210, 2
        %v5518 = vperm.slane %v3211, 2
        %v5519 = vperm.slane %v3212, 2
        %v5520 = vperm.slane %v3213, 2
        %v5521 = vperm.slane %v3214, 2
        %v5522 = vperm.slane %v3215, 2
        %v5523 = vperm.slane %v3216, 2
        %v5524 = vperm.slane %v3217, 2
        %v5525 = vperm.slane %v3218, 2
        %v5526 = vperm.slane %v3219, 2
        %v5527 = vperm.slane %v3220, 2
        %v5528 = vperm.slane %v3221, 2
        %v5529 = vperm.slane %v3222, 2
        %v5530 = vperm.slane %v3223, 2
        %v5531 = vperm.slane %v3224, 2
        %v5532 = vperm.slane %v3225, 2
        %v5533 = vperm.slane %v3226, 2
        %v5534 = vperm.slane %v3227, 2
        %v5535 = vperm.slane %v3228, 2
        %v5536 = vperm.slane %v3229, 2
        %v5537 = vperm.slane %v3230, 2
        %v5538 = vperm.slane %v3231, 2
        %v5539 = vperm.slane %v3232, 2
        %v5540 = vperm.slane %v3233, 2
        %v5541 = vperm.slane %v3234, 2
        %v5542 = vperm.slane %v3235, 2
        %v5543 = vperm.slane %v3236, 2
        %v5544 = vperm.slane %v3237, 2
        %v5545 = vperm.slane %v3238, 2
        %v5546 = vperm.slane %v3239, 2
        %v5547 = vperm.slane %v3240, 2
        %v5548 = vperm.slane %v3241, 2
        %v5549 = vperm.slane %v3242, 2
        %v5550 = vperm.slane %v3243, 2
        %v5551 = vperm.slane %v3244, 2
        %v5552 = vperm.slane %v3245, 2
        %v5553 = vperm.slane %v3246, 2
        %v5554 = vperm.slane %v3247, 2
        %v5555 = vperm.slane %v3248, 2
        %v5556 = vperm.slane %v3249, 2
        %v5557 = vperm.slane %v3250, 2
        %v5558 = vperm.slane %v3251, 2
        %v5559 = vperm.slane %v3252, 2
        %v5560 = vperm.slane %v3253, 2
        %v5561 = vperm.slane %v3254, 2
        %v5562 = vperm.slane %v3255, 2
        %v5563 = vperm.slane %v3256, 2
        %v5564 = vperm.slane %v3257, 2
        %v5565 = vperm.slane %v3258, 2
        %v5566 = vperm.slane %v3259, 2
        %v5567 = vperm.slane %v3260, 2
        %v5568 = vperm.slane %v3261, 2
        %v5569 = vperm.slane %v3262, 2
        %v5570 = vperm.slane %v3263, 2
        %v5571 = vperm.slane %v3264, 2
        %v5572 = vperm.slane %v3265, 2
        %v5573 = vperm.slane %v3266, 2
        %v5574 = vperm.slane %v3267, 2
        %v5575 = vperm.slane %v3268, 2
        %v5576 = vperm.slane %v3269, 2
        %v5577 = vperm.slane %v3270, 2
        %v5578 = vperm.slane %v3271, 2
        %v5579 = vperm.slane %v3272, 2
        %v5580 = vperm.slane %v3273, 2
        %v5581 = vperm.slane %v3274, 2
        %v5582 = vperm.slane %v3275, 2
        %v5583 = vperm.slane %v3276, 2
        %v5584 = vperm.slane %v3277, 2
        %v5585 = vperm.slane %v3278, 2
        %v5586 = vperm.slane %v3279, 2
        %v5587 = vperm.slane %v3280, 2
        %v5588 = vperm.slane %v3281, 2
        %v5589 = vperm.slane %v3282, 2
        %v5590 = vperm.slane %v3283, 2
        %v5591 = vperm.slane %v3284, 2
        %v5592 = vperm.slane %v3285, 2
        %v5593 = vperm.slane %v3286, 2
        %v5594 = vperm.slane %v3287, 2
        %v5595 = vperm.slane %v3288, 2
        %v5596 = vperm.slane %v3289, 2
        %v5597 = vperm.slane %v3290, 2
        %v5598 = vperm.slane %v3291, 2
        %v5599 = vperm.slane %v3292, 2
        %v5600 = vperm.slane %v3293, 2
        %v5601 = vperm.slane %v3294, 2
        %v5602 = vperm.slane %v3295, 2
        %v5603 = vperm.slane %v3296, 2
        %v5604 = vperm.slane %v3297, 2
        %v5605 = vperm.slane %v3298, 2
        %v5606 = vperm.slane %v3299, 2
        %v5607 = vperm.slane %v3300, 2
        %v5608 = vperm.slane %v3301, 2
        %v5609 = vperm.slane %v3302, 2
        %v5610 = vperm.slane %v3303, 2
        %v5611 = vperm.slane %v3304, 2
        %v5612 = vperm.slane %v3305, 2
        %v5613 = vperm.slane %v3306, 2
        %v5614 = vperm.slane %v3307, 2
        %v5615 = vperm.slane %v3308, 2
        %v5616 = vperm.slane %v3309, 2
        %v5617 = vperm.slane %v3310, 2
        %v5618 = vperm.slane %v3311, 2
        %v5619 = vperm.slane %v3312, 2
        %v5620 = vperm.slane %v3313, 2
        %v5621 = vperm.slane %v3314, 2
        %v5622 = vperm.slane %v3315, 2
        %v5623 = vperm.slane %v3316, 2
        %v5624 = vperm.slane %v3317, 2
        %v5625 = vperm.slane %v3318, 2
        %v5626 = vperm.slane %v3319, 2
        %v5627 = vperm.slane %v3320, 2
        %v5628 = vperm.slane %v3321, 2
        %v5629 = vperm.slane %v3322, 2
        %v5630 = vperm.slane %v3323, 2
        %v5631 = vperm.slane %v3324, 2
        %v5632 = vperm.slane %v3325, 2
        %v5633 = vperm.slane %v3326, 2
        %v5634 = vperm.slane %v3327, 2
        %v5635 = vperm.slane %v3328, 2
        %v5636 = vperm.slane %v3329, 2
        %v5637 = vperm.slane %v3330, 2
        %v5638 = vperm.slane %v3331, 2
        %v5639 = vperm.slane %v3332, 2
        %v5640 = vperm.slane %v3333, 2
        %v5641 = vperm.slane %v3334, 2
        %v5642 = vperm.slane %v3335, 2
        %v5643 = vperm.slane %v3336, 2
        %v5644 = vperm.slane %v3337, 2
        %v5645 = vperm.slane %v3338, 2
        %v5646 = vperm.slane %v3339, 2
        %v5647 = vperm.slane %v3340, 2
        %v5648 = vperm.slane %v3341, 2
        %v5649 = vperm.slane %v3342, 2
        %v5650 = vperm.slane %v3343, 2
        %v5651 = vperm.slane %v3344, 2
        %v5652 = vperm.slane %v3345, 2
        %v5653 = vperm.slane %v3346, 2
        %v5654 = vperm.slane %v3347, 2
        %v5655 = vperm.slane %v3348, 2
        %v5656 = vperm.slane %v3349, 2
        %v5657 = vperm.slane %v3350, 2
        %v5658 = vperm.slane %v3351, 2
        %v5659 = vperm.slane %v3352, 2
        %v5660 = vperm.slane %v3353, 2
        %v5661 = vperm.slane %v3354, 2
        %v5662 = vperm.slane %v3355, 2
        %v5663 = vperm.slane %v3356, 2
        %v5664 = vperm.slane %v3357, 2
        %v5665 = vperm.slane %v3358, 2
        %v5666 = vperm.slane %v3359, 2
        %v5667 = vperm.slane %v3360, 2
        %v5668 = vperm.slane %v3361, 2
        %v5669 = vperm.slane %v3362, 2
        %v5670 = vperm.slane %v3363, 2
        %v5671 = vperm.slane %v3364, 2
        %v5672 = vperm.slane %v3365, 2
        %v5673 = vperm.slane %v3366, 2
        %v5674 = vperm.slane %v3367, 2
        %v5675 = vperm.slane %v3368, 2
        %v5676 = vperm.slane %v3369, 2
        %v5677 = vperm.slane %v3370, 2
        %v5678 = vperm.slane %v3371, 2
        %v5679 = vperm.slane %v3372, 2
        %v5680 = vperm.slane %v3373, 2
        %v5681 = vperm.slane %v3374, 2
        %v5682 = vperm.slane %v3375, 2
        %v5683 = vperm.slane %v3376, 2
        %v5684 = vperm.slane %v3377, 2
        %v5685 = vperm.slane %v3378, 2
        %v5686 = vperm.slane %v3379, 2
        %v5687 = vperm.slane %v3380, 2
        %v5688 = vperm.slane %v3381, 2
        %v5689 = vperm.slane %v3382, 2
        %v5690 = vperm.slane %v3383, 2
        %v5691 = vperm.slane %v3384, 2
        %v5692 = vperm.slane %v3385, 2
        %v5693 = vperm.slane %v3386, 2
        %v5694 = vperm.slane %v3387, 2
        %v5695 = vperm.slane %v3388, 2
        %v5696 = vperm.slane %v3389, 2
        %v5697 = vperm.slane %v3390, 2
        %v5698 = vperm.slane %v3391, 2
        %v5699 = vperm.slane %v3392, 2
        %v5700 = vperm.slane %v3393, 2
        %v5701 = vperm.slane %v3394, 2
        %v5702 = vperm.slane %v3395, 2
        %v5703 = vperm.slane %v3396, 2
        %v5704 = vperm.slane %v3397, 2
        %v5705 = vperm.slane %v3398, 2
        %v5706 = vperm.slane %v3399, 2
        %v5707 = vperm.slane %v3400, 2
        %v5708 = vperm.slane %v3401, 2
        %v5709 = vperm.slane %v3402, 2
        %v5710 = vperm.slane %v3403, 2
        %v5711 = vperm.slane %v3404, 2
        %v5712 = vperm.slane %v3405, 2
        %v5713 = vperm.slane %v3406, 2
        %v5714 = vperm.slane %v3407, 2
        %v5715 = vperm.slane %v3408, 2
        %v5716 = vperm.slane %v3409, 2
        %v5717 = vperm.slane %v3410, 2
        %v5718 = vperm.slane %v3411, 2
        %v5719 = vperm.slane %v3412, 2
        %v5720 = vperm.slane %v3413, 2
        %v5721 = vperm.slane %v3414, 2
        %v5722 = vperm.slane %v3415, 2
        %v5723 = vperm.slane %v3416, 2
        %v5724 = vperm.slane %v3417, 2
        %v5725 = vperm.slane %v3418, 2
        %v5726 = vperm.slane %v3419, 2
        %v5727 = vperm.slane %v3420, 2
        %v5728 = vperm.slane %v3421, 2
        %v5729 = vmul.f32 %v2011, %v5473
        %v5730 = vmul.f32 %v2012, %v5474
        %v5731 = vmul.f32 %v2013, %v5475
        %v5732 = vmul.f32 %v2014, %v5476
        %v5733 = vmul.f32 %v2015, %v5477
        %v5734 = vmul.f32 %v2016, %v5478
        %v5735 = vmul.f32 %v2017, %v5479
        %v5736 = vmul.f32 %v2018, %v5480
        %v5737 = vmul.f32 %v2019, %v5481
        %v5738 = vmul.f32 %v2020, %v5482
        %v5739 = vmul.f32 %v2021, %v5483
        %v5740 = vmul.f32 %v2022, %v5484
        %v5741 = vmul.f32 %v2023, %v5485
        %v5742 = vmul.f32 %v2024, %v5486
        %v5743 = vmul.f32 %v2025, %v5487
        %v5744 = vmul.f32 %v2026, %v5488
        %v5745 = vmul.f32 %v2027, %v5489
        %v5746 = vmul.f32 %v2028, %v5490
        %v5747 = vmul.f32 %v2029, %v5491
        %v5748 = vmul.f32 %v2030, %v5492
        %v5749 = vmul.f32 %v2031, %v5493
        %v5750 = vmul.f32 %v2032, %v5494
        %v5751 = vmul.f32 %v2033, %v5495
        %v5752 = vmul.f32 %v2034, %v5496
        %v5753 = vmul.f32 %v2035, %v5497
        %v5754 = vmul.f32 %v2036, %v5498
        %v5755 = vmul.f32 %v2037, %v5499
        %v5756 = vmul.f32 %v2038, %v5500
        %v5757 = vmul.f32 %v2039, %v5501
        %v5758 = vmul.f32 %v2040, %v5502
        %v5759 = vmul.f32 %v2041, %v5503
        %v5760 = vmul.f32 %v2042, %v5504
        %v5761 = vmul.f32 %v2043, %v5505
        %v5762 = vmul.f32 %v2044, %v5506
        %v5763 = vmul.f32 %v2045, %v5507
        %v5764 = vmul.f32 %v2046, %v5508
        %v5765 = vmul.f32 %v2047, %v5509
        %v5766 = vmul.f32 %v2048, %v5510
        %v5767 = vmul.f32 %v2049, %v5511
        %v5768 = vmul.f32 %v2050, %v5512
        %v5769 = vmul.f32 %v2051, %v5513
        %v5770 = vmul.f32 %v2052, %v5514
        %v5771 = vmul.f32 %v2053, %v5515
        %v5772 = vmul.f32 %v2054, %v5516
        %v5773 = vmul.f32 %v2055, %v5517
        %v5774 = vmul.f32 %v2056, %v5518
        %v5775 = vmul.f32 %v2057, %v5519
        %v5776 = vmul.f32 %v2058, %v5520
        %v5777 = vmul.f32 %v2059, %v5521
        %v5778 = vmul.f32 %v2060, %v5522
        %v5779 = vmul.f32 %v2061, %v5523
        %v5780 = vmul.f32 %v2062, %v5524
        %v5781 = vmul.f32 %v2063, %v5525
        %v5782 = vmul.f32 %v2064, %v5526
        %v5783 = vmul.f32 %v2065, %v5527
        %v5784 = vmul.f32 %v2066, %v5528
        %v5785 = vmul.f32 %v2067, %v5529
        %v5786 = vmul.f32 %v2068, %v5530
        %v5787 = vmul.f32 %v2069, %v5531
        %v5788 = vmul.f32 %v2070, %v5532
        %v5789 = vmul.f32 %v2071, %v5533
        %v5790 = vmul.f32 %v2072, %v5534
        %v5791 = vmul.f32 %v2073, %v5535
        %v5792 = vmul.f32 %v2074, %v5536
        %v5793 = vmul.f32 %v2075, %v5537
        %v5794 = vmul.f32 %v2076, %v5538
        %v5795 = vmul.f32 %v2077, %v5539
        %v5796 = vmul.f32 %v2078, %v5540
        %v5797 = vmul.f32 %v2079, %v5541
        %v5798 = vmul.f32 %v2080, %v5542
        %v5799 = vmul.f32 %v2081, %v5543
        %v5800 = vmul.f32 %v2082, %v5544
        %v5801 = vmul.f32 %v2083, %v5545
        %v5802 = vmul.f32 %v2084, %v5546
        %v5803 = vmul.f32 %v2085, %v5547
        %v5804 = vmul.f32 %v2086, %v5548
        %v5805 = vmul.f32 %v2087, %v5549
        %v5806 = vmul.f32 %v2088, %v5550
        %v5807 = vmul.f32 %v2089, %v5551
        %v5808 = vmul.f32 %v2090, %v5552
        %v5809 = vmul.f32 %v2091, %v5553
        %v5810 = vmul.f32 %v2092, %v5554
        %v5811 = vmul.f32 %v2093, %v5555
        %v5812 = vmul.f32 %v2094, %v5556
        %v5813 = vmul.f32 %v2095, %v5557
        %v5814 = vmul.f32 %v2096, %v5558
        %v5815 = vmul.f32 %v2097, %v5559
        %v5816 = vmul.f32 %v2098, %v5560
        %v5817 = vmul.f32 %v2099, %v5561
        %v5818 = vmul.f32 %v2100, %v5562
        %v5819 = vmul.f32 %v2101, %v5563
        %v5820 = vmul.f32 %v2102, %v5564
        %v5821 = vmul.f32 %v2103, %v5565
        %v5822 = vmul.f32 %v2104, %v5566
        %v5823 = vmul.f32 %v2105, %v5567
        %v5824 = vmul.f32 %v2106, %v5568
        %v5825 = vmul.f32 %v2107, %v5569
        %v5826 = vmul.f32 %v2108, %v5570
        %v5827 = vmul.f32 %v2109, %v5571
        %v5828 = vmul.f32 %v2110, %v5572
        %v5829 = vmul.f32 %v2111, %v5573
        %v5830 = vmul.f32 %v2112, %v5574
        %v5831 = vmul.f32 %v2113, %v5575
        %v5832 = vmul.f32 %v2114, %v5576
        %v5833 = vmul.f32 %v2115, %v5577
        %v5834 = vmul.f32 %v2116, %v5578
        %v5835 = vmul.f32 %v2117, %v5579
        %v5836 = vmul.f32 %v2118, %v5580
        %v5837 = vmul.f32 %v2119, %v5581
        %v5838 = vmul.f32 %v2120, %v5582
        %v5839 = vmul.f32 %v2121, %v5583
        %v5840 = vmul.f32 %v2122, %v5584
        %v5841 = vmul.f32 %v2123, %v5585
        %v5842 = vmul.f32 %v2124, %v5586
        %v5843 = vmul.f32 %v2125, %v5587
        %v5844 = vmul.f32 %v2126, %v5588
        %v5845 = vmul.f32 %v2127, %v5589
        %v5846 = vmul.f32 %v2128, %v5590
        %v5847 = vmul.f32 %v2129, %v5591
        %v5848 = vmul.f32 %v2130, %v5592
        %v5849 = vmul.f32 %v2131, %v5593
        %v5850 = vmul.f32 %v2132, %v5594
        %v5851 = vmul.f32 %v2133, %v5595
        %v5852 = vmul.f32 %v2134, %v5596
        %v5853 = vmul.f32 %v2135, %v5597
        %v5854 = vmul.f32 %v2136, %v5598
        %v5855 = vmul.f32 %v2137, %v5599
        %v5856 = vmul.f32 %v2138, %v5600
        %v5857 = vmul.f32 %v2139, %v5601
        %v5858 = vmul.f32 %v2140, %v5602
        %v5859 = vmul.f32 %v2141, %v5603
        %v5860 = vmul.f32 %v2142, %v5604
        %v5861 = vmul.f32 %v2143, %v5605
        %v5862 = vmul.f32 %v2144, %v5606
        %v5863 = vmul.f32 %v2145, %v5607
        %v5864 = vmul.f32 %v2146, %v5608
        %v5865 = vmul.f32 %v2147, %v5609
        %v5866 = vmul.f32 %v2148, %v5610
        %v5867 = vmul.f32 %v2149, %v5611
        %v5868 = vmul.f32 %v2150, %v5612
        %v5869 = vmul.f32 %v2151, %v5613
        %v5870 = vmul.f32 %v2152, %v5614
        %v5871 = vmul.f32 %v2153, %v5615
        %v5872 = vmul.f32 %v2154, %v5616
        %v5873 = vmul.f32 %v2155, %v5617
        %v5874 = vmul.f32 %v2156, %v5618
        %v5875 = vmul.f32 %v2157, %v5619
        %v5876 = vmul.f32 %v2158, %v5620
        %v5877 = vmul.f32 %v2159, %v5621
        %v5878 = vmul.f32 %v2160, %v5622
        %v5879 = vmul.f32 %v2161, %v5623
        %v5880 = vmul.f32 %v2162, %v5624
        %v5881 = vmul.f32 %v2163, %v5625
        %v5882 = vmul.f32 %v2164, %v5626
        %v5883 = vmul.f32 %v2165, %v5627
        %v5884 = vmul.f32 %v2166, %v5628
        %v5885 = vmul.f32 %v2167, %v5629
        %v5886 = vmul.f32 %v2168, %v5630
        %v5887 = vmul.f32 %v2169, %v5631
        %v5888 = vmul.f32 %v2170, %v5632
        %v5889 = vmul.f32 %v2171, %v5633
        %v5890 = vmul.f32 %v2172, %v5634
        %v5891 = vmul.f32 %v2173, %v5635
        %v5892 = vmul.f32 %v2174, %v5636
        %v5893 = vmul.f32 %v2175, %v5637
        %v5894 = vmul.f32 %v2176, %v5638
        %v5895 = vmul.f32 %v2177, %v5639
        %v5896 = vmul.f32 %v2178, %v5640
        %v5897 = vmul.f32 %v2179, %v5641
        %v5898 = vmul.f32 %v2180, %v5642
        %v5899 = vmul.f32 %v2181, %v5643
        %v5900 = vmul.f32 %v2182, %v5644
        %v5901 = vmul.f32 %v2183, %v5645
        %v5902 = vmul.f32 %v2184, %v5646
        %v5903 = vmul.f32 %v2185, %v5647
        %v5904 = vmul.f32 %v2186, %v5648
        %v5905 = vmul.f32 %v2187, %v5649
        %v5906 = vmul.f32 %v2188, %v5650
        %v5907 = vmul.f32 %v2189, %v5651
        %v5908 = vmul.f32 %v2190, %v5652
        %v5909 = vmul.f32 %v2191, %v5653
        %v5910 = vmul.f32 %v2192, %v5654
        %v5911 = vmul.f32 %v2193, %v5655
        %v5912 = vmul.f32 %v2194, %v5656
        %v5913 = vmul.f32 %v2195, %v5657
        %v5914 = vmul.f32 %v2196, %v5658
        %v5915 = vmul.f32 %v2197, %v5659
        %v5916 = vmul.f32 %v2198, %v5660
        %v5917 = vmul.f32 %v2199, %v5661
        %v5918 = vmul.f32 %v2200, %v5662
        %v5919 = vmul.f32 %v2201, %v5663
        %v5920 = vmul.f32 %v2202, %v5664
        %v5921 = vmul.f32 %v2203, %v5665
        %v5922 = vmul.f32 %v2204, %v5666
        %v5923 = vmul.f32 %v2205, %v5667
        %v5924 = vmul.f32 %v2206, %v5668
        %v5925 = vmul.f32 %v2207, %v5669
        %v5926 = vmul.f32 %v2208, %v5670
        %v5927 = vmul.f32 %v2209, %v5671
        %v5928 = vmul.f32 %v2210, %v5672
        %v5929 = vmul.f32 %v2211, %v5673
        %v5930 = vmul.f32 %v2212, %v5674
        %v5931 = vmul.f32 %v2213, %v5675
        %v5932 = vmul.f32 %v2214, %v5676
        %v5933 = vmul.f32 %v2215, %v5677
        %v5934 = vmul.f32 %v2216, %v5678
        %v5935 = vmul.f32 %v2217, %v5679
        %v5936 = vmul.f32 %v2218, %v5680
        %v5937 = vmul.f32 %v2219, %v5681
        %v5938 = vmul.f32 %v2220, %v5682
        %v5939 = vmul.f32 %v2221, %v5683
        %v5940 = vmul.f32 %v2222, %v5684
        %v5941 = vmul.f32 %v2223, %v5685
        %v5942 = vmul.f32 %v2224, %v5686
        %v5943 = vmul.f32 %v2225, %v5687
        %v5944 = vmul.f32 %v2226, %v5688
        %v5945 = vmul.f32 %v2227, %v5689
        %v5946 = vmul.f32 %v2228, %v5690
        %v5947 = vmul.f32 %v2229, %v5691
        %v5948 = vmul.f32 %v2230, %v5692
        %v5949 = vmul.f32 %v2231, %v5693
        %v5950 = vmul.f32 %v2232, %v5694
        %v5951 = vmul.f32 %v2233, %v5695
        %v5952 = vmul.f32 %v2234, %v5696
        %v5953 = vmul.f32 %v2235, %v5697
        %v5954 = vmul.f32 %v2236, %v5698
        %v5955 = vmul.f32 %v2237, %v5699
        %v5956 = vmul.f32 %v2238, %v5700
        %v5957 = vmul.f32 %v2239, %v5701
        %v5958 = vmul.f32 %v2240, %v5702
        %v5959 = vmul.f32 %v2241, %v5703
        %v5960 = vmul.f32 %v2242, %v5704
        %v5961 = vmul.f32 %v2243, %v5705
        %v5962 = vmul.f32 %v2244, %v5706
        %v5963 = vmul.f32 %v2245, %v5707
        %v5964 = vmul.f32 %v2246, %v5708
        %v5965 = vmul.f32 %v2247, %v5709
        %v5966 = vmul.f32 %v2248, %v5710
        %v5967 = vmul.f32 %v2249, %v5711
        %v5968 = vmul.f32 %v2250, %v5712
        %v5969 = vmul.f32 %v2251, %v5713
        %v5970 = vmul.f32 %v2252, %v5714
        %v5971 = vmul.f32 %v2253, %v5715
        %v5972 = vmul.f32 %v2254, %v5716
        %v5973 = vmul.f32 %v2255, %v5717
        %v5974 = vmul.f32 %v2256, %v5718
        %v5975 = vmul.f32 %v2257, %v5719
        %v5976 = vmul.f32 %v2258, %v5720
        %v5977 = vmul.f32 %v2259, %v5721
        %v5978 = vmul.f32 %v2260, %v5722
        %v5979 = vmul.f32 %v2261, %v5723
        %v5980 = vmul.f32 %v2262, %v5724
        %v5981 = vmul.f32 %v2263, %v5725
        %v5982 = vmul.f32 %v2264, %v5726
        %v5983 = vmul.f32 %v2265, %v5727
        %v5984 = vmul.f32 %v2266, %v5728
        %v5985 = vsel %vm3934, %v5729, 0.0
        %v5986 = vsel %vm3934, %v5730, 0.0
        %v5987 = vadd.f32 %v5985, %v5986
        %v5988 = vsel %vm3934, %v5731, 0.0
        %v5989 = vadd.f32 %v5987, %v5988
        %v5990 = vsel %vm3934, %v5732, 0.0
        %v5991 = vadd.f32 %v5989, %v5990
        %v5992 = vsel %vm3934, %v5733, 0.0
        %v5993 = vadd.f32 %v5991, %v5992
        %v5994 = vsel %vm3934, %v5734, 0.0
        %v5995 = vadd.f32 %v5993, %v5994
        %v5996 = vsel %vm3934, %v5735, 0.0
        %v5997 = vadd.f32 %v5995, %v5996
        %v5998 = vsel %vm3934, %v5736, 0.0
        %v5999 = vadd.f32 %v5997, %v5998
        %v6000 = vsel %vm3934, %v5737, 0.0
        %v6001 = vadd.f32 %v5999, %v6000
        %v6002 = vsel %vm3934, %v5738, 0.0
        %v6003 = vadd.f32 %v6001, %v6002
        %v6004 = vsel %vm3934, %v5739, 0.0
        %v6005 = vadd.f32 %v6003, %v6004
        %v6006 = vsel %vm3934, %v5740, 0.0
        %v6007 = vadd.f32 %v6005, %v6006
        %v6008 = vsel %vm3934, %v5741, 0.0
        %v6009 = vadd.f32 %v6007, %v6008
        %v6010 = vsel %vm3934, %v5742, 0.0
        %v6011 = vadd.f32 %v6009, %v6010
        %v6012 = vsel %vm3934, %v5743, 0.0
        %v6013 = vadd.f32 %v6011, %v6012
        %v6014 = vsel %vm3934, %v5744, 0.0
        %v6015 = vadd.f32 %v6013, %v6014
        %v6016 = vsel %vm3934, %v5745, 0.0
        %v6017 = vadd.f32 %v6015, %v6016
        %v6018 = vsel %vm3934, %v5746, 0.0
        %v6019 = vadd.f32 %v6017, %v6018
        %v6020 = vsel %vm3934, %v5747, 0.0
        %v6021 = vadd.f32 %v6019, %v6020
        %v6022 = vsel %vm3934, %v5748, 0.0
        %v6023 = vadd.f32 %v6021, %v6022
        %v6024 = vsel %vm3934, %v5749, 0.0
        %v6025 = vadd.f32 %v6023, %v6024
        %v6026 = vsel %vm3934, %v5750, 0.0
        %v6027 = vadd.f32 %v6025, %v6026
        %v6028 = vsel %vm3934, %v5751, 0.0
        %v6029 = vadd.f32 %v6027, %v6028
        %v6030 = vsel %vm3934, %v5752, 0.0
        %v6031 = vadd.f32 %v6029, %v6030
        %v6032 = vsel %vm3934, %v5753, 0.0
        %v6033 = vadd.f32 %v6031, %v6032
        %v6034 = vsel %vm3934, %v5754, 0.0
        %v6035 = vadd.f32 %v6033, %v6034
        %v6036 = vsel %vm3934, %v5755, 0.0
        %v6037 = vadd.f32 %v6035, %v6036
        %v6038 = vsel %vm3934, %v5756, 0.0
        %v6039 = vadd.f32 %v6037, %v6038
        %v6040 = vsel %vm3934, %v5757, 0.0
        %v6041 = vadd.f32 %v6039, %v6040
        %v6042 = vsel %vm3934, %v5758, 0.0
        %v6043 = vadd.f32 %v6041, %v6042
        %v6044 = vsel %vm3934, %v5759, 0.0
        %v6045 = vadd.f32 %v6043, %v6044
        %v6046 = vsel %vm3934, %v5760, 0.0
        %v6047 = vadd.f32 %v6045, %v6046
        %v6048 = vsel %vm3934, %v5761, 0.0
        %v6049 = vadd.f32 %v6047, %v6048
        %v6050 = vsel %vm3934, %v5762, 0.0
        %v6051 = vadd.f32 %v6049, %v6050
        %v6052 = vsel %vm3934, %v5763, 0.0
        %v6053 = vadd.f32 %v6051, %v6052
        %v6054 = vsel %vm3934, %v5764, 0.0
        %v6055 = vadd.f32 %v6053, %v6054
        %v6056 = vsel %vm3934, %v5765, 0.0
        %v6057 = vadd.f32 %v6055, %v6056
        %v6058 = vsel %vm3934, %v5766, 0.0
        %v6059 = vadd.f32 %v6057, %v6058
        %v6060 = vsel %vm3934, %v5767, 0.0
        %v6061 = vadd.f32 %v6059, %v6060
        %v6062 = vsel %vm3934, %v5768, 0.0
        %v6063 = vadd.f32 %v6061, %v6062
        %v6064 = vsel %vm3934, %v5769, 0.0
        %v6065 = vadd.f32 %v6063, %v6064
        %v6066 = vsel %vm3934, %v5770, 0.0
        %v6067 = vadd.f32 %v6065, %v6066
        %v6068 = vsel %vm3934, %v5771, 0.0
        %v6069 = vadd.f32 %v6067, %v6068
        %v6070 = vsel %vm3934, %v5772, 0.0
        %v6071 = vadd.f32 %v6069, %v6070
        %v6072 = vsel %vm3934, %v5773, 0.0
        %v6073 = vadd.f32 %v6071, %v6072
        %v6074 = vsel %vm3934, %v5774, 0.0
        %v6075 = vadd.f32 %v6073, %v6074
        %v6076 = vsel %vm3934, %v5775, 0.0
        %v6077 = vadd.f32 %v6075, %v6076
        %v6078 = vsel %vm3934, %v5776, 0.0
        %v6079 = vadd.f32 %v6077, %v6078
        %v6080 = vsel %vm3934, %v5777, 0.0
        %v6081 = vadd.f32 %v6079, %v6080
        %v6082 = vsel %vm3934, %v5778, 0.0
        %v6083 = vadd.f32 %v6081, %v6082
        %v6084 = vsel %vm3934, %v5779, 0.0
        %v6085 = vadd.f32 %v6083, %v6084
        %v6086 = vsel %vm3934, %v5780, 0.0
        %v6087 = vadd.f32 %v6085, %v6086
        %v6088 = vsel %vm3934, %v5781, 0.0
        %v6089 = vadd.f32 %v6087, %v6088
        %v6090 = vsel %vm3934, %v5782, 0.0
        %v6091 = vadd.f32 %v6089, %v6090
        %v6092 = vsel %vm3934, %v5783, 0.0
        %v6093 = vadd.f32 %v6091, %v6092
        %v6094 = vsel %vm3934, %v5784, 0.0
        %v6095 = vadd.f32 %v6093, %v6094
        %v6096 = vsel %vm3934, %v5785, 0.0
        %v6097 = vadd.f32 %v6095, %v6096
        %v6098 = vsel %vm3934, %v5786, 0.0
        %v6099 = vadd.f32 %v6097, %v6098
        %v6100 = vsel %vm3934, %v5787, 0.0
        %v6101 = vadd.f32 %v6099, %v6100
        %v6102 = vsel %vm3934, %v5788, 0.0
        %v6103 = vadd.f32 %v6101, %v6102
        %v6104 = vsel %vm3934, %v5789, 0.0
        %v6105 = vadd.f32 %v6103, %v6104
        %v6106 = vsel %vm3934, %v5790, 0.0
        %v6107 = vadd.f32 %v6105, %v6106
        %v6108 = vsel %vm3934, %v5791, 0.0
        %v6109 = vadd.f32 %v6107, %v6108
        %v6110 = vsel %vm3934, %v5792, 0.0
        %v6111 = vadd.f32 %v6109, %v6110
        %v6112 = vsel %vm3934, %v5793, 0.0
        %v6113 = vadd.f32 %v6111, %v6112
        %v6114 = vsel %vm3934, %v5794, 0.0
        %v6115 = vadd.f32 %v6113, %v6114
        %v6116 = vsel %vm3934, %v5795, 0.0
        %v6117 = vadd.f32 %v6115, %v6116
        %v6118 = vsel %vm3934, %v5796, 0.0
        %v6119 = vadd.f32 %v6117, %v6118
        %v6120 = vsel %vm3934, %v5797, 0.0
        %v6121 = vadd.f32 %v6119, %v6120
        %v6122 = vsel %vm3934, %v5798, 0.0
        %v6123 = vadd.f32 %v6121, %v6122
        %v6124 = vsel %vm3934, %v5799, 0.0
        %v6125 = vadd.f32 %v6123, %v6124
        %v6126 = vsel %vm3934, %v5800, 0.0
        %v6127 = vadd.f32 %v6125, %v6126
        %v6128 = vsel %vm3934, %v5801, 0.0
        %v6129 = vadd.f32 %v6127, %v6128
        %v6130 = vsel %vm3934, %v5802, 0.0
        %v6131 = vadd.f32 %v6129, %v6130
        %v6132 = vsel %vm3934, %v5803, 0.0
        %v6133 = vadd.f32 %v6131, %v6132
        %v6134 = vsel %vm3934, %v5804, 0.0
        %v6135 = vadd.f32 %v6133, %v6134
        %v6136 = vsel %vm3934, %v5805, 0.0
        %v6137 = vadd.f32 %v6135, %v6136
        %v6138 = vsel %vm3934, %v5806, 0.0
        %v6139 = vadd.f32 %v6137, %v6138
        %v6140 = vsel %vm3934, %v5807, 0.0
        %v6141 = vadd.f32 %v6139, %v6140
        %v6142 = vsel %vm3934, %v5808, 0.0
        %v6143 = vadd.f32 %v6141, %v6142
        %v6144 = vsel %vm3934, %v5809, 0.0
        %v6145 = vadd.f32 %v6143, %v6144
        %v6146 = vsel %vm3934, %v5810, 0.0
        %v6147 = vadd.f32 %v6145, %v6146
        %v6148 = vsel %vm3934, %v5811, 0.0
        %v6149 = vadd.f32 %v6147, %v6148
        %v6150 = vsel %vm3934, %v5812, 0.0
        %v6151 = vadd.f32 %v6149, %v6150
        %v6152 = vsel %vm3934, %v5813, 0.0
        %v6153 = vadd.f32 %v6151, %v6152
        %v6154 = vsel %vm3934, %v5814, 0.0
        %v6155 = vadd.f32 %v6153, %v6154
        %v6156 = vsel %vm3934, %v5815, 0.0
        %v6157 = vadd.f32 %v6155, %v6156
        %v6158 = vsel %vm3934, %v5816, 0.0
        %v6159 = vadd.f32 %v6157, %v6158
        %v6160 = vsel %vm3934, %v5817, 0.0
        %v6161 = vadd.f32 %v6159, %v6160
        %v6162 = vsel %vm3934, %v5818, 0.0
        %v6163 = vadd.f32 %v6161, %v6162
        %v6164 = vsel %vm3934, %v5819, 0.0
        %v6165 = vadd.f32 %v6163, %v6164
        %v6166 = vsel %vm3934, %v5820, 0.0
        %v6167 = vadd.f32 %v6165, %v6166
        %v6168 = vsel %vm3934, %v5821, 0.0
        %v6169 = vadd.f32 %v6167, %v6168
        %v6170 = vsel %vm3934, %v5822, 0.0
        %v6171 = vadd.f32 %v6169, %v6170
        %v6172 = vsel %vm3934, %v5823, 0.0
        %v6173 = vadd.f32 %v6171, %v6172
        %v6174 = vsel %vm3934, %v5824, 0.0
        %v6175 = vadd.f32 %v6173, %v6174
        %v6176 = vsel %vm3934, %v5825, 0.0
        %v6177 = vadd.f32 %v6175, %v6176
        %v6178 = vsel %vm3934, %v5826, 0.0
        %v6179 = vadd.f32 %v6177, %v6178
        %v6180 = vsel %vm3934, %v5827, 0.0
        %v6181 = vadd.f32 %v6179, %v6180
        %v6182 = vsel %vm3934, %v5828, 0.0
        %v6183 = vadd.f32 %v6181, %v6182
        %v6184 = vsel %vm3934, %v5829, 0.0
        %v6185 = vadd.f32 %v6183, %v6184
        %v6186 = vsel %vm3934, %v5830, 0.0
        %v6187 = vadd.f32 %v6185, %v6186
        %v6188 = vsel %vm3934, %v5831, 0.0
        %v6189 = vadd.f32 %v6187, %v6188
        %v6190 = vsel %vm3934, %v5832, 0.0
        %v6191 = vadd.f32 %v6189, %v6190
        %v6192 = vsel %vm3934, %v5833, 0.0
        %v6193 = vadd.f32 %v6191, %v6192
        %v6194 = vsel %vm3934, %v5834, 0.0
        %v6195 = vadd.f32 %v6193, %v6194
        %v6196 = vsel %vm3934, %v5835, 0.0
        %v6197 = vadd.f32 %v6195, %v6196
        %v6198 = vsel %vm3934, %v5836, 0.0
        %v6199 = vadd.f32 %v6197, %v6198
        %v6200 = vsel %vm3934, %v5837, 0.0
        %v6201 = vadd.f32 %v6199, %v6200
        %v6202 = vsel %vm3934, %v5838, 0.0
        %v6203 = vadd.f32 %v6201, %v6202
        %v6204 = vsel %vm3934, %v5839, 0.0
        %v6205 = vadd.f32 %v6203, %v6204
        %v6206 = vsel %vm3934, %v5840, 0.0
        %v6207 = vadd.f32 %v6205, %v6206
        %v6208 = vsel %vm3934, %v5841, 0.0
        %v6209 = vadd.f32 %v6207, %v6208
        %v6210 = vsel %vm3934, %v5842, 0.0
        %v6211 = vadd.f32 %v6209, %v6210
        %v6212 = vsel %vm3934, %v5843, 0.0
        %v6213 = vadd.f32 %v6211, %v6212
        %v6214 = vsel %vm3934, %v5844, 0.0
        %v6215 = vadd.f32 %v6213, %v6214
        %v6216 = vsel %vm3934, %v5845, 0.0
        %v6217 = vadd.f32 %v6215, %v6216
        %v6218 = vsel %vm3934, %v5846, 0.0
        %v6219 = vadd.f32 %v6217, %v6218
        %v6220 = vsel %vm3934, %v5847, 0.0
        %v6221 = vadd.f32 %v6219, %v6220
        %v6222 = vsel %vm3934, %v5848, 0.0
        %v6223 = vadd.f32 %v6221, %v6222
        %v6224 = vsel %vm3934, %v5849, 0.0
        %v6225 = vadd.f32 %v6223, %v6224
        %v6226 = vsel %vm3934, %v5850, 0.0
        %v6227 = vadd.f32 %v6225, %v6226
        %v6228 = vsel %vm3934, %v5851, 0.0
        %v6229 = vadd.f32 %v6227, %v6228
        %v6230 = vsel %vm3934, %v5852, 0.0
        %v6231 = vadd.f32 %v6229, %v6230
        %v6232 = vsel %vm3934, %v5853, 0.0
        %v6233 = vadd.f32 %v6231, %v6232
        %v6234 = vsel %vm3934, %v5854, 0.0
        %v6235 = vadd.f32 %v6233, %v6234
        %v6236 = vsel %vm3934, %v5855, 0.0
        %v6237 = vadd.f32 %v6235, %v6236
        %v6238 = vsel %vm3934, %v5856, 0.0
        %v6239 = vadd.f32 %v6237, %v6238
        %v6240 = vsel %vm3934, %v5857, 0.0
        %v6241 = vadd.f32 %v6239, %v6240
        %v6242 = vsel %vm3934, %v5858, 0.0
        %v6243 = vadd.f32 %v6241, %v6242
        %v6244 = vsel %vm3934, %v5859, 0.0
        %v6245 = vadd.f32 %v6243, %v6244
        %v6246 = vsel %vm3934, %v5860, 0.0
        %v6247 = vadd.f32 %v6245, %v6246
        %v6248 = vsel %vm3934, %v5861, 0.0
        %v6249 = vadd.f32 %v6247, %v6248
        %v6250 = vsel %vm3934, %v5862, 0.0
        %v6251 = vadd.f32 %v6249, %v6250
        %v6252 = vsel %vm3934, %v5863, 0.0
        %v6253 = vadd.f32 %v6251, %v6252
        %v6254 = vsel %vm3934, %v5864, 0.0
        %v6255 = vadd.f32 %v6253, %v6254
        %v6256 = vsel %vm3934, %v5865, 0.0
        %v6257 = vadd.f32 %v6255, %v6256
        %v6258 = vsel %vm3934, %v5866, 0.0
        %v6259 = vadd.f32 %v6257, %v6258
        %v6260 = vsel %vm3934, %v5867, 0.0
        %v6261 = vadd.f32 %v6259, %v6260
        %v6262 = vsel %vm3934, %v5868, 0.0
        %v6263 = vadd.f32 %v6261, %v6262
        %v6264 = vsel %vm3934, %v5869, 0.0
        %v6265 = vadd.f32 %v6263, %v6264
        %v6266 = vsel %vm3934, %v5870, 0.0
        %v6267 = vadd.f32 %v6265, %v6266
        %v6268 = vsel %vm3934, %v5871, 0.0
        %v6269 = vadd.f32 %v6267, %v6268
        %v6270 = vsel %vm3934, %v5872, 0.0
        %v6271 = vadd.f32 %v6269, %v6270
        %v6272 = vsel %vm3934, %v5873, 0.0
        %v6273 = vadd.f32 %v6271, %v6272
        %v6274 = vsel %vm3934, %v5874, 0.0
        %v6275 = vadd.f32 %v6273, %v6274
        %v6276 = vsel %vm3934, %v5875, 0.0
        %v6277 = vadd.f32 %v6275, %v6276
        %v6278 = vsel %vm3934, %v5876, 0.0
        %v6279 = vadd.f32 %v6277, %v6278
        %v6280 = vsel %vm3934, %v5877, 0.0
        %v6281 = vadd.f32 %v6279, %v6280
        %v6282 = vsel %vm3934, %v5878, 0.0
        %v6283 = vadd.f32 %v6281, %v6282
        %v6284 = vsel %vm3934, %v5879, 0.0
        %v6285 = vadd.f32 %v6283, %v6284
        %v6286 = vsel %vm3934, %v5880, 0.0
        %v6287 = vadd.f32 %v6285, %v6286
        %v6288 = vsel %vm3934, %v5881, 0.0
        %v6289 = vadd.f32 %v6287, %v6288
        %v6290 = vsel %vm3934, %v5882, 0.0
        %v6291 = vadd.f32 %v6289, %v6290
        %v6292 = vsel %vm3934, %v5883, 0.0
        %v6293 = vadd.f32 %v6291, %v6292
        %v6294 = vsel %vm3934, %v5884, 0.0
        %v6295 = vadd.f32 %v6293, %v6294
        %v6296 = vsel %vm3934, %v5885, 0.0
        %v6297 = vadd.f32 %v6295, %v6296
        %v6298 = vsel %vm3934, %v5886, 0.0
        %v6299 = vadd.f32 %v6297, %v6298
        %v6300 = vsel %vm3934, %v5887, 0.0
        %v6301 = vadd.f32 %v6299, %v6300
        %v6302 = vsel %vm3934, %v5888, 0.0
        %v6303 = vadd.f32 %v6301, %v6302
        %v6304 = vsel %vm3934, %v5889, 0.0
        %v6305 = vadd.f32 %v6303, %v6304
        %v6306 = vsel %vm3934, %v5890, 0.0
        %v6307 = vadd.f32 %v6305, %v6306
        %v6308 = vsel %vm3934, %v5891, 0.0
        %v6309 = vadd.f32 %v6307, %v6308
        %v6310 = vsel %vm3934, %v5892, 0.0
        %v6311 = vadd.f32 %v6309, %v6310
        %v6312 = vsel %vm3934, %v5893, 0.0
        %v6313 = vadd.f32 %v6311, %v6312
        %v6314 = vsel %vm3934, %v5894, 0.0
        %v6315 = vadd.f32 %v6313, %v6314
        %v6316 = vsel %vm3934, %v5895, 0.0
        %v6317 = vadd.f32 %v6315, %v6316
        %v6318 = vsel %vm3934, %v5896, 0.0
        %v6319 = vadd.f32 %v6317, %v6318
        %v6320 = vsel %vm3934, %v5897, 0.0
        %v6321 = vadd.f32 %v6319, %v6320
        %v6322 = vsel %vm3934, %v5898, 0.0
        %v6323 = vadd.f32 %v6321, %v6322
        %v6324 = vsel %vm3934, %v5899, 0.0
        %v6325 = vadd.f32 %v6323, %v6324
        %v6326 = vsel %vm3934, %v5900, 0.0
        %v6327 = vadd.f32 %v6325, %v6326
        %v6328 = vsel %vm3934, %v5901, 0.0
        %v6329 = vadd.f32 %v6327, %v6328
        %v6330 = vsel %vm3934, %v5902, 0.0
        %v6331 = vadd.f32 %v6329, %v6330
        %v6332 = vsel %vm3934, %v5903, 0.0
        %v6333 = vadd.f32 %v6331, %v6332
        %v6334 = vsel %vm3934, %v5904, 0.0
        %v6335 = vadd.f32 %v6333, %v6334
        %v6336 = vsel %vm3934, %v5905, 0.0
        %v6337 = vadd.f32 %v6335, %v6336
        %v6338 = vsel %vm3934, %v5906, 0.0
        %v6339 = vadd.f32 %v6337, %v6338
        %v6340 = vsel %vm3934, %v5907, 0.0
        %v6341 = vadd.f32 %v6339, %v6340
        %v6342 = vsel %vm3934, %v5908, 0.0
        %v6343 = vadd.f32 %v6341, %v6342
        %v6344 = vsel %vm3934, %v5909, 0.0
        %v6345 = vadd.f32 %v6343, %v6344
        %v6346 = vsel %vm3934, %v5910, 0.0
        %v6347 = vadd.f32 %v6345, %v6346
        %v6348 = vsel %vm3934, %v5911, 0.0
        %v6349 = vadd.f32 %v6347, %v6348
        %v6350 = vsel %vm3934, %v5912, 0.0
        %v6351 = vadd.f32 %v6349, %v6350
        %v6352 = vsel %vm3934, %v5913, 0.0
        %v6353 = vadd.f32 %v6351, %v6352
        %v6354 = vsel %vm3934, %v5914, 0.0
        %v6355 = vadd.f32 %v6353, %v6354
        %v6356 = vsel %vm3934, %v5915, 0.0
        %v6357 = vadd.f32 %v6355, %v6356
        %v6358 = vsel %vm3934, %v5916, 0.0
        %v6359 = vadd.f32 %v6357, %v6358
        %v6360 = vsel %vm3934, %v5917, 0.0
        %v6361 = vadd.f32 %v6359, %v6360
        %v6362 = vsel %vm3934, %v5918, 0.0
        %v6363 = vadd.f32 %v6361, %v6362
        %v6364 = vsel %vm3934, %v5919, 0.0
        %v6365 = vadd.f32 %v6363, %v6364
        %v6366 = vsel %vm3934, %v5920, 0.0
        %v6367 = vadd.f32 %v6365, %v6366
        %v6368 = vsel %vm3934, %v5921, 0.0
        %v6369 = vadd.f32 %v6367, %v6368
        %v6370 = vsel %vm3934, %v5922, 0.0
        %v6371 = vadd.f32 %v6369, %v6370
        %v6372 = vsel %vm3934, %v5923, 0.0
        %v6373 = vadd.f32 %v6371, %v6372
        %v6374 = vsel %vm3934, %v5924, 0.0
        %v6375 = vadd.f32 %v6373, %v6374
        %v6376 = vsel %vm3934, %v5925, 0.0
        %v6377 = vadd.f32 %v6375, %v6376
        %v6378 = vsel %vm3934, %v5926, 0.0
        %v6379 = vadd.f32 %v6377, %v6378
        %v6380 = vsel %vm3934, %v5927, 0.0
        %v6381 = vadd.f32 %v6379, %v6380
        %v6382 = vsel %vm3934, %v5928, 0.0
        %v6383 = vadd.f32 %v6381, %v6382
        %v6384 = vsel %vm3934, %v5929, 0.0
        %v6385 = vadd.f32 %v6383, %v6384
        %v6386 = vsel %vm3934, %v5930, 0.0
        %v6387 = vadd.f32 %v6385, %v6386
        %v6388 = vsel %vm3934, %v5931, 0.0
        %v6389 = vadd.f32 %v6387, %v6388
        %v6390 = vsel %vm3934, %v5932, 0.0
        %v6391 = vadd.f32 %v6389, %v6390
        %v6392 = vsel %vm3934, %v5933, 0.0
        %v6393 = vadd.f32 %v6391, %v6392
        %v6394 = vsel %vm3934, %v5934, 0.0
        %v6395 = vadd.f32 %v6393, %v6394
        %v6396 = vsel %vm3934, %v5935, 0.0
        %v6397 = vadd.f32 %v6395, %v6396
        %v6398 = vsel %vm3934, %v5936, 0.0
        %v6399 = vadd.f32 %v6397, %v6398
        %v6400 = vsel %vm3934, %v5937, 0.0
        %v6401 = vadd.f32 %v6399, %v6400
        %v6402 = vsel %vm3934, %v5938, 0.0
        %v6403 = vadd.f32 %v6401, %v6402
        %v6404 = vsel %vm3934, %v5939, 0.0
        %v6405 = vadd.f32 %v6403, %v6404
        %v6406 = vsel %vm3934, %v5940, 0.0
        %v6407 = vadd.f32 %v6405, %v6406
        %v6408 = vsel %vm3934, %v5941, 0.0
        %v6409 = vadd.f32 %v6407, %v6408
        %v6410 = vsel %vm3934, %v5942, 0.0
        %v6411 = vadd.f32 %v6409, %v6410
        %v6412 = vsel %vm3934, %v5943, 0.0
        %v6413 = vadd.f32 %v6411, %v6412
        %v6414 = vsel %vm3934, %v5944, 0.0
        %v6415 = vadd.f32 %v6413, %v6414
        %v6416 = vsel %vm3934, %v5945, 0.0
        %v6417 = vadd.f32 %v6415, %v6416
        %v6418 = vsel %vm3934, %v5946, 0.0
        %v6419 = vadd.f32 %v6417, %v6418
        %v6420 = vsel %vm3934, %v5947, 0.0
        %v6421 = vadd.f32 %v6419, %v6420
        %v6422 = vsel %vm3934, %v5948, 0.0
        %v6423 = vadd.f32 %v6421, %v6422
        %v6424 = vsel %vm3934, %v5949, 0.0
        %v6425 = vadd.f32 %v6423, %v6424
        %v6426 = vsel %vm3934, %v5950, 0.0
        %v6427 = vadd.f32 %v6425, %v6426
        %v6428 = vsel %vm3934, %v5951, 0.0
        %v6429 = vadd.f32 %v6427, %v6428
        %v6430 = vsel %vm3934, %v5952, 0.0
        %v6431 = vadd.f32 %v6429, %v6430
        %v6432 = vsel %vm3934, %v5953, 0.0
        %v6433 = vadd.f32 %v6431, %v6432
        %v6434 = vsel %vm3934, %v5954, 0.0
        %v6435 = vadd.f32 %v6433, %v6434
        %v6436 = vsel %vm3934, %v5955, 0.0
        %v6437 = vadd.f32 %v6435, %v6436
        %v6438 = vsel %vm3934, %v5956, 0.0
        %v6439 = vadd.f32 %v6437, %v6438
        %v6440 = vsel %vm3934, %v5957, 0.0
        %v6441 = vadd.f32 %v6439, %v6440
        %v6442 = vsel %vm3934, %v5958, 0.0
        %v6443 = vadd.f32 %v6441, %v6442
        %v6444 = vsel %vm3934, %v5959, 0.0
        %v6445 = vadd.f32 %v6443, %v6444
        %v6446 = vsel %vm3934, %v5960, 0.0
        %v6447 = vadd.f32 %v6445, %v6446
        %v6448 = vsel %vm3934, %v5961, 0.0
        %v6449 = vadd.f32 %v6447, %v6448
        %v6450 = vsel %vm3934, %v5962, 0.0
        %v6451 = vadd.f32 %v6449, %v6450
        %v6452 = vsel %vm3934, %v5963, 0.0
        %v6453 = vadd.f32 %v6451, %v6452
        %v6454 = vsel %vm3934, %v5964, 0.0
        %v6455 = vadd.f32 %v6453, %v6454
        %v6456 = vsel %vm3934, %v5965, 0.0
        %v6457 = vadd.f32 %v6455, %v6456
        %v6458 = vsel %vm3934, %v5966, 0.0
        %v6459 = vadd.f32 %v6457, %v6458
        %v6460 = vsel %vm3934, %v5967, 0.0
        %v6461 = vadd.f32 %v6459, %v6460
        %v6462 = vsel %vm3934, %v5968, 0.0
        %v6463 = vadd.f32 %v6461, %v6462
        %v6464 = vsel %vm3934, %v5969, 0.0
        %v6465 = vadd.f32 %v6463, %v6464
        %v6466 = vsel %vm3934, %v5970, 0.0
        %v6467 = vadd.f32 %v6465, %v6466
        %v6468 = vsel %vm3934, %v5971, 0.0
        %v6469 = vadd.f32 %v6467, %v6468
        %v6470 = vsel %vm3934, %v5972, 0.0
        %v6471 = vadd.f32 %v6469, %v6470
        %v6472 = vsel %vm3934, %v5973, 0.0
        %v6473 = vadd.f32 %v6471, %v6472
        %v6474 = vsel %vm3934, %v5974, 0.0
        %v6475 = vadd.f32 %v6473, %v6474
        %v6476 = vsel %vm3934, %v5975, 0.0
        %v6477 = vadd.f32 %v6475, %v6476
        %v6478 = vsel %vm3934, %v5976, 0.0
        %v6479 = vadd.f32 %v6477, %v6478
        %v6480 = vsel %vm3934, %v5977, 0.0
        %v6481 = vadd.f32 %v6479, %v6480
        %v6482 = vsel %vm3934, %v5978, 0.0
        %v6483 = vadd.f32 %v6481, %v6482
        %v6484 = vsel %vm3934, %v5979, 0.0
        %v6485 = vadd.f32 %v6483, %v6484
        %v6486 = vsel %vm3934, %v5980, 0.0
        %v6487 = vadd.f32 %v6485, %v6486
        %v6488 = vsel %vm3934, %v5981, 0.0
        %v6489 = vadd.f32 %v6487, %v6488
        %v6490 = vsel %vm3934, %v5982, 0.0
        %v6491 = vadd.f32 %v6489, %v6490
        %v6492 = vsel %vm3934, %v5983, 0.0
        %v6493 = vadd.f32 %v6491, %v6492
        %v6494 = vsel %vm3934, %v5984, 0.0
        %v6495 = vadd.f32 %v6493, %v6494
        %6496 = vadd.xlane.f32.xlu0 %v6495
        %v6497 = vpop.xlane.xlu0 %6496
        %v6498 = vld [vmem:[#allocation2] sm:$0x3]
        %vm6499 = vcmask 7168
        %v6500 = vsel %vm6499, %v4447, %v5472
        %vm6501 = vcmask 15360
        %v6502 = vsel %vm6501, %v6500, %v6497
        %v6503 = vadd.f32 %v6498, %v6502
        %vm6504 = vcmask 17408
        %6505 = vst.msk [vmem:[#allocation2] sm:$0x3] %vm6504, %v6503
        %p6506 = scmp.eq.s32.totalorder %s24, 1
        // Predicated region
        $region41: #{mlp_forward.1} parent=27 // pred_check
          %p6507 = pneg %p6506
        $region42: #{mlp_forward.1} parent=27 // pred_check_branch
          %6509 = sbr.rel (%p6507) target = $region44
        $region43: #{mlp_forward.1} parent=27 // pred_region
          %v6510 = vld [vmem:[#allocation2] sm:$0x3]
          %6511 = vst.msk [vmem:[%s269] sm:$0x3] %vm6504, %v6510
        $region44: #{mlp_forward.1} parent=27 // pred_fallthru
          _
        %p6512 = scmp.lt.s32.totalorder %s23, 1
        %s6513 = scalar_select %p6512, %s23, 1
        %s6514 = smul.addr %s6513, 2
        %s6515 = scalar_lea.vmem %s2, %s6514
        // Predicated region
        $region45: #{mlp_forward.1} parent=27 // pred_check
          %p6516 = pneg %p117
        $region46: #{mlp_forward.1} parent=27 // pred_check_branch
          %6518 = sbr.rel (%p6516) target = $region48
        $region47: #{mlp_forward.1} parent=27 // pred_region
          _
        $region48: #{mlp_forward.1} parent=27 // pred_fallthru
          _
      $region28: #{mlp_forward.1} parent=5 // pred_fallthru
        _
      %p6519 = scmp.le.s32.totalorder 2, %s14
      // Predicated region
      $region49: #{mlp_forward.1} parent=5 // pred_check
        %p6520 = pneg %p6519
      $region50: #{mlp_forward.1} parent=5 // pred_check_branch
        %6522 = sbr.rel (%p6520) target = $region52
      $region51: #{mlp_forward.1} parent=5 // pred_region
        %s6523 = ssub.s32 %s14, 2
        // Predicated region
        $region53: #{mlp_forward.1} parent=51 // pred_check
          %p6524 = pneg %p123
        $region54: #{mlp_forward.1} parent=51 // pred_check_branch
          %6526 = sbr.rel (%p6524) target = $region56
        $region55: #{mlp_forward.1} parent=51 // pred_region
          %p6527 = scmp.lt.s32.totalorder %s25, 1
          %s6528 = scalar_select %p6527, %s25, 1
          %s6529 = smul.addr %s6528, 2
          %s6530 = scalar_lea.vmem %s2, %s6529
        $region56: #{mlp_forward.1} parent=51 // pred_fallthru
          _
      $region52: #{mlp_forward.1} parent=5 // pred_fallthru
        _
    $region6: #{mlp_forward.1} parent=1 // loop_footer
      %s18 = sadd.s32 1, %s14
    $region7: #{mlp_forward.1} parent=1 // loop_footer_branch
      %13 = sbr.rel target = $region3
    $region8: #{mlp_forward.1} parent=1 // loop_exit
      _
    %6531 = vsyncpa [#allocation4], 1
    %s6532 = scalar_lea.sflag [#allocation4], 1
    %6533 = vsyncpa %s6532, 1
    %6534 = vsyncpa [#allocation6], 1
    %s6535 = scalar_lea.sflag [#allocation6], 1
    %6536 = vsyncpa %s6535, 1

</llo_original>
